<compile_context>
chip_gen: v7x
topology: tpu7x:2x2x1
jax: 0.10.0
libtpu: 0.0.40
codegen_flags: <defaults>
</compile_context>

<pallas_src>
import math

import jax
import jax.numpy as jnp
from jax.experimental import pallas as pl
from jax.experimental.pallas import tpu as pltpu


def _round_up(x, m):
    return ((x + m - 1) // m) * m


# ---------------------------------------------------------------------------
# Pallas kernels
# ---------------------------------------------------------------------------
def _matmul_bias_relu_kernel(x_ref, w_ref, b_ref, o_ref):
    """One M-tile of the im2col convolution: (tm, K)bf16 @ (K, Cout)bf16 + b, ReLU, f32 out."""
    acc = jnp.dot(x_ref[...], w_ref[...], preferred_element_type=jnp.float32)
    o_ref[...] = jnp.maximum(acc + b_ref[...], 0.0)


# ---------------------------------------------------------------------------
# Wrappers
# ---------------------------------------------------------------------------
def conv_bias_relu(patches, w2d, bias):
    """patches: (M, K) bf16, w2d: (K, Cout) bf16, bias: (Cout,) f32 -> (M, Cout) f32, ReLU'd.

    K must be a multiple of 128 (caller zero-pads); Cout must be lane-friendly
    (128 or the full lane extent). M is left ragged: Pallas handles the edge block.
    """
    M, K = patches.shape
    Cout = w2d.shape[1]
    # >=2 grid steps when possible (keeps both v7x cores busy), capped at 256 rows/tile.
    tm = min(256, _round_up(max(pl.cdiv(M, 2), 16), 16))
    grid_m = pl.cdiv(M, tm)

    return pl.pallas_call(
        _matmul_bias_relu_kernel,
        out_shape=jax.ShapeDtypeStruct((M, Cout), jnp.float32),
        grid=(grid_m,),
        in_specs=[
            pl.BlockSpec((tm, K), lambda i: (i, 0)),
            pl.BlockSpec((K, Cout), lambda i: (0, 0)),
            pl.BlockSpec((1, Cout), lambda i: (0, 0)),
        ],
        out_specs=pl.BlockSpec((tm, Cout), lambda i: (i, 0)),
        compiler_params=pltpu.CompilerParams(dimension_semantics=("parallel",)),
    )(patches, w2d, bias.reshape(1, Cout))


def im2col(x_nhwc, kh, kw, stride, pad):
    """Gather conv patches: NHWC -> (N*OH*OW, kh*kw*C) with (kh, kw, C) ordering."""
    N, H, W, C = x_nhwc.shape
    xp = jnp.pad(x_nhwc, ((0, 0), (pad, pad), (pad, pad), (0, 0)))
    Hp, Wp = H + 2 * pad, W + 2 * pad
    OH = (Hp - kh) // stride + 1
    OW = (Wp - kw) // stride + 1
    ih = stride * jnp.arange(OH)[:, None] + jnp.arange(kh)[None, :]   # (OH, kh)
    iw = stride * jnp.arange(OW)[:, None] + jnp.arange(kw)[None, :]   # (OW, kw)
    p = xp[:, ih]                 # (N, OH, kh, Wp, C)
    p = p[:, :, :, iw]            # (N, OH, kh, OW, kw, C)
    p = p.transpose(0, 1, 3, 2, 4, 5).reshape(N * OH * OW, kh * kw * C)
    return p, OH, OW


def maxpool_relu(x_nhwc, ksize=3, stride=2):
    """MaxPool2d(kernel=3, stride=2) fused with a trailing ReLU. NHWC in/out.

    One image per ("parallel") grid step. The stride-2 column subsample is done by
    splitting the activation into even/odd column planes (an O(1x) XLA strided slice),
    so inside the kernel the 3x3 window max is built purely from unit-stride slices:
        out[i, j] = max over rows 2i..2i+2 of max(xe[:, j], xe[:, j+1], xo[:, j])
    This reads the activation ~1x from HBM instead of materializing a 9x window tensor.
    """
    assert ksize == 3 and stride == 2
    N, H, W, C = x_nhwc.shape
    OH = (H - ksize) // stride + 1
    OW = (W - ksize) // stride + 1
    xe = x_nhwc[:, :, 0::2, :]            # even columns: window cols 2j and 2j+2
    xo = x_nhwc[:, :, 1::2, :]            # odd  columns: window col  2j+1
    We, Wo = xe.shape[2], xo.shape[2]

    def kernel(xe_ref, xo_ref, o_ref):
        for i in range(OH):                                          # static unroll (OH small)
            e = jnp.max(xe_ref[0, 2 * i:2 * i + 3, :, :], axis=0)    # (We, C)
            o = jnp.max(xo_ref[0, 2 * i:2 * i + 3, :, :], axis=0)    # (Wo, C)
            row = jnp.maximum(jnp.maximum(e[:OW, :], e[1:OW + 1, :]), o[:OW, :])  # (OW, C)
            o_ref[0, i] = jnp.maximum(row, 0.0)                      # fused ReLU (no-op here)

    return pl.pallas_call(
        kernel,
        out_shape=jax.ShapeDtypeStruct((N, OH, OW, C), x_nhwc.dtype),
        grid=(N,),
        in_specs=[
            pl.BlockSpec((1, H, We, C), lambda n: (n, 0, 0, 0)),
            pl.BlockSpec((1, H, Wo, C), lambda n: (n, 0, 0, 0)),
        ],
        out_specs=pl.BlockSpec((1, OH, OW, C), lambda n: (n, 0, 0, 0)),
        compiler_params=pltpu.CompilerParams(dimension_semantics=("parallel",)),
    )(xe, xo)


# ---------------------------------------------------------------------------
# Model
# ---------------------------------------------------------------------------
def init_params(key):
    """Deterministic init matching the module's __init__:
       conv weights ~ N(0, sqrt(2/(k*k*out_ch))), biases keep PyTorch's default
       U(-1/sqrt(fan_in), 1/sqrt(fan_in))."""
    k1, k2, k3, k4 = jax.random.split(key, 4)
    n1 = 11 * 11 * 64
    w1 = jax.random.normal(k1, (64, 3, 11, 11), jnp.float32) * math.sqrt(2.0 / n1)
    n2 = 5 * 5 * 192
    w2 = jax.random.normal(k2, (192, 64, 5, 5), jnp.float32) * math.sqrt(2.0 / n2)
    f1 = 1.0 / math.sqrt(3 * 11 * 11)
    b1 = jax.random.uniform(k3, (64,), jnp.float32, -f1, f1)
    f2 = 1.0 / math.sqrt(64 * 5 * 5)
    b2 = jax.random.uniform(k4, (192,), jnp.float32, -f2, f2)
    return {"w1": w1, "b1": b1, "w2": w2, "b2": b2}


def alexnet_client_forward(x_nchw, params):
    """Forward of AlexNet_client_side. Input NCHW, output NCHW (like PyTorch)."""
    w1, b1, w2, b2 = params["w1"], params["b1"], params["w2"], params["b2"]
    x = jnp.transpose(x_nchw, (0, 2, 3, 1)).astype(jnp.bfloat16)     # NCHW -> NHWC, bf16 for MXU
    N = x.shape[0]

    # ---- Conv2d(3, 64, k=11, s=4, p=2) + ReLU (fused) ---------------------
    p1, OH1, OW1 = im2col(x, 11, 11, stride=4, pad=2)                # (M1, 363) bf16
    K1 = p1.shape[1]
    K1p = _round_up(K1, 128)
    C1p = 128                                                        # Cout 64 -> 128: lane-dense stores
    p1 = jnp.pad(p1, ((0, 0), (0, K1p - K1)))                        # zero K pad (no effect on result)
    w1m = jnp.transpose(w1, (2, 3, 1, 0)).reshape(K1, 64)
    w1m = jnp.pad(w1m, ((0, K1p - K1), (0, C1p - 64))).astype(jnp.bfloat16)
    b1p = jnp.pad(b1, (0, C1p - 64)).astype(jnp.float32)
    y1 = conv_bias_relu(p1, w1m, b1p).reshape(N, OH1, OW1, C1p)      # channels 64..127 are exactly 0

    # ---- MaxPool2d(3, 2) (ReLU fused, no-op on non-negative input) --------
    y1 = maxpool_relu(y1)                                            # (N, OH, OW, 128)

    # ---- Conv2d(64, 192, k=5, s=1, p=2) + ReLU (fused) --------------------
    y1 = y1[..., :64].astype(jnp.bfloat16)                           # drop zero pad channels
    p2, OH2, OW2 = im2col(y1, 5, 5, stride=1, pad=2)                 # (M2, 1600) bf16
    K2 = p2.shape[1]
    K2p = _round_up(K2, 128)
    p2 = jnp.pad(p2, ((0, 0), (0, K2p - K2)))
    w2m = jnp.transpose(w2, (2, 3, 1, 0)).reshape(K2, 192)
    w2m = jnp.pad(w2m, ((0, K2p - K2), (0, 0))).astype(jnp.bfloat16)
    y2 = conv_bias_relu(p2, w2m, b2.astype(jnp.float32)).reshape(N, OH2, OW2, 192)

    # ---- MaxPool2d(3, 2) followed by F.relu(F.relu(.)) — fused into pool --
    y2 = maxpool_relu(y2)                                            # (N, 3, 3, 192)

    return jnp.transpose(y2, (0, 3, 1, 2))                           # -> NCHW


if __name__ == "__main__":
    key = jax.random.PRNGKey(0)
    kx, kp = jax.random.split(key)
    # NCHW input, small but large enough to survive AlexNet's downsampling:
    # 64 -> conv(11,4,2) 15 -> pool 7 -> conv(5,1,2) 7 -> pool 3
    x = jax.random.normal(kx, (2, 3, 64, 64), jnp.float32)
    params = init_params(kp)

    out = jax.jit(alexnet_client_forward)(x, params)
    out = jax.block_until_ready(out)
    assert out.shape == (2, 192, 3, 3), out.shape
    assert bool(jnp.all(out >= 0.0))
    print("KERNEL_OK")
</pallas_src>

<mosaic_0001>
module attributes {stable_mosaic.version = 11 : i64} {
  func.func @_matmul_bias_relu_kernel(%arg0: i32, %arg1: memref<240x384xbf16, #tpu.memory_space<vmem>>, %arg2: memref<384x128xbf16, #tpu.memory_space<vmem>>, %arg3: memref<1x128xf32, #tpu.memory_space<vmem>>, %arg4: memref<240x128xf32, #tpu.memory_space<vmem>>) attributes {dimension_semantics = [#tpu.dimension_semantics<parallel>], iteration_bounds = array<i64: 2>, scalar_prefetch = 0 : i64, scratch_operands = 0 : i64, tpu.core_type = #tpu.core_type<tc>, window_params = [{transform_indices = @transform_0, window_bounds = array<i64: 240, 384>}, {pipeline_mode = #tpu.pipeline_mode<synchronous>, transform_indices = @transform_1, window_bounds = array<i64: 384, 128>}, {pipeline_mode = #tpu.pipeline_mode<synchronous>, transform_indices = @transform_2, window_bounds = array<i64: 1, 128>}, {transform_indices = @transform_3, window_bounds = array<i64: 240, 128>}]} {
    %c0 = arith.constant 0 : index
    %c0_0 = arith.constant 0 : index
    %0 = vector.load %arg1[%c0, %c0_0] : memref<240x384xbf16, #tpu.memory_space<vmem>>, vector<240x384xbf16>
    %c0_1 = arith.constant 0 : index
    %c0_2 = arith.constant 0 : index
    %1 = vector.load %arg2[%c0_1, %c0_2] : memref<384x128xbf16, #tpu.memory_space<vmem>>, vector<384x128xbf16>
    %cst = arith.constant dense<0.000000e+00> : vector<240x128xf32>
    %2 = tpu.matmul %0, %1, %cst {dimension_numbers = #tpu.dot_dimension_numbers<[1], [0], [0], [1], [0, 0, 1, 1], [], []>} : vector<240x384xbf16>, vector<384x128xbf16>, vector<240x128xf32> -> vector<240x128xf32>
    %c0_3 = arith.constant 0 : index
    %c0_4 = arith.constant 0 : index
    %3 = vector.load %arg3[%c0_3, %c0_4] : memref<1x128xf32, #tpu.memory_space<vmem>>, vector<1x128xf32>
    %4 = vector.broadcast %3 : vector<1x128xf32> to vector<240x128xf32>
    %5 = arith.addf %2, %4 : vector<240x128xf32>
    %cst_5 = arith.constant 0.000000e+00 : f32
    %6 = vector.broadcast %cst_5 : f32 to vector<240x128xf32>
    %7 = arith.maximumf %5, %6 : vector<240x128xf32>
    %c0_6 = arith.constant 0 : index
    %c0_7 = arith.constant 0 : index
    %8 = vector.load %arg4[%c0_6, %c0_7] : memref<240x128xf32, #tpu.memory_space<vmem>>, vector<240x128xf32>
    tpu.vector_store %arg4[%c0_6, %c0_7], %7 {strides = array<i32>} : memref<240x128xf32, #tpu.memory_space<vmem>>, vector<240x128xf32>,
    return
  }
  func.func @transform_0(%arg0: i32) -> (i32, i32) {
    %c0_i32 = arith.constant 0 : i32
    %c0_i32_0 = arith.constant 0 : i32
    return %arg0, %c0_i32 : i32, i32
  }
  func.func @transform_1(%arg0: i32) -> (i32, i32) {
    %c0_i32 = arith.constant 0 : i32
    %c0_i32_0 = arith.constant 0 : i32
    %c0_i32_1 = arith.constant 0 : i32
    return %c0_i32, %c0_i32_0 : i32, i32
  }
  func.func @transform_2(%arg0: i32) -> (i32, i32) {
    %c0_i32 = arith.constant 0 : i32
    %c0_i32_0 = arith.constant 0 : i32
    %c0_i32_1 = arith.constant 0 : i32
    return %c0_i32, %c0_i32_0 : i32, i32
  }
  func.func @transform_3(%arg0: i32) -> (i32, i32) {
    %c0_i32 = arith.constant 0 : i32
    %c0_i32_0 = arith.constant 0 : i32
    return %arg0, %c0_i32 : i32, i32
  }
}

module attributes {stable_mosaic.version = 11 : i64} {
  func.func @kernel(%arg0: i32, %arg1: memref<1x15x8x128xf32, #tpu.memory_space<vmem>>, %arg2: memref<1x15x7x128xf32, #tpu.memory_space<vmem>>, %arg3: memref<1x7x7x128xf32, #tpu.memory_space<vmem>>) attributes {dimension_semantics = [#tpu.dimension_semantics<parallel>], iteration_bounds = array<i64: 2>, scalar_prefetch = 0 : i64, scratch_operands = 0 : i64, tpu.core_type = #tpu.core_type<tc>, window_params = [{transform_indices = @transform_0, window_bounds = array<i64: 1, 15, 8, 128>}, {transform_indices = @transform_1, window_bounds = array<i64: 1, 15, 7, 128>}, {transform_indices = @transform_2, window_bounds = array<i64: 1, 7, 7, 128>}]} {
    %c0 = arith.constant 0 : index
    %c0_0 = arith.constant 0 : index
    %c0_1 = arith.constant 0 : index
    %c0_2 = arith.constant 0 : index
    %0 = vector.load %arg1[%c0, %c0_0, %c0_1, %c0_2] : memref<1x15x8x128xf32, #tpu.memory_space<vmem>>, vector<1x3x8x128xf32>
    %1 = vector.shape_cast %0 : vector<1x3x8x128xf32> to vector<3x8x128xf32>
    %cst = arith.constant dense<0xFF800000> : vector<8x128xf32>
    %2 = vector.multi_reduction <maximumf>, %1, %cst [0] : vector<3x8x128xf32> to vector<8x128xf32>
    %c0_3 = arith.constant 0 : index
    %c0_4 = arith.constant 0 : index
    %c0_5 = arith.constant 0 : index
    %c0_6 = arith.constant 0 : index
    %3 = vector.load %arg2[%c0_3, %c0_4, %c0_5, %c0_6] : memref<1x15x7x128xf32, #tpu.memory_space<vmem>>, vector<1x3x7x128xf32>
    %4 = vector.shape_cast %3 : vector<1x3x7x128xf32> to vector<3x7x128xf32>
    %cst_7 = arith.constant dense<0xFF800000> : vector<7x128xf32>
    %5 = vector.multi_reduction <maximumf>, %4, %cst_7 [0] : vector<3x7x128xf32> to vector<7x128xf32>
    %6 = vector.extract_strided_slice %2 {offsets = [0, 0], sizes = [7, 128], strides = [1, 1]} : vector<8x128xf32> to vector<7x128xf32>
    %7 = vector.extract_strided_slice %2 {offsets = [1, 0], sizes = [7, 128], strides = [1, 1]} : vector<8x128xf32> to vector<7x128xf32>
    %8 = arith.maximumf %6, %7 : vector<7x128xf32>
    %9 = arith.maximumf %8, %5 : vector<7x128xf32>
    %cst_8 = arith.constant 0.000000e+00 : f32
    %10 = vector.broadcast %cst_8 : f32 to vector<7x128xf32>
    %11 = arith.maximumf %9, %10 : vector<7x128xf32>
    %c0_9 = arith.constant 0 : index
    %c0_10 = arith.constant 0 : index
    %c0_11 = arith.constant 0 : index
    %c0_12 = arith.constant 0 : index
    %12 = vector.load %arg3[%c0_9, %c0_10, %c0_11, %c0_12] : memref<1x7x7x128xf32, #tpu.memory_space<vmem>>, vector<1x1x7x128xf32>
    %13 = vector.shape_cast %12 : vector<1x1x7x128xf32> to vector<7x128xf32>
    %14 = vector.shape_cast %11 : vector<7x128xf32> to vector<1x1x7x128xf32>
    tpu.vector_store %arg3[%c0_9, %c0_10, %c0_11, %c0_12], %14 {strides = array<i32>} : memref<1x7x7x128xf32, #tpu.memory_space<vmem>>, vector<1x1x7x128xf32>,
    %c0_13 = arith.constant 0 : index
    %c2 = arith.constant 2 : index
    %c0_14 = arith.constant 0 : index
    %c0_15 = arith.constant 0 : index
    %15 = vector.load %arg1[%c0_13, %c2, %c0_14, %c0_15] : memref<1x15x8x128xf32, #tpu.memory_space<vmem>>, vector<1x3x8x128xf32>
    %16 = vector.shape_cast %15 : vector<1x3x8x128xf32> to vector<3x8x128xf32>
    %cst_16 = arith.constant dense<0xFF800000> : vector<8x128xf32>
    %17 = vector.multi_reduction <maximumf>, %16, %cst_16 [0] : vector<3x8x128xf32> to vector<8x128xf32>
    %c0_17 = arith.constant 0 : index
    %c2_18 = arith.constant 2 : index
    %c0_19 = arith.constant 0 : index
    %c0_20 = arith.constant 0 : index
    %18 = vector.load %arg2[%c0_17, %c2_18, %c0_19, %c0_20] : memref<1x15x7x128xf32, #tpu.memory_space<vmem>>, vector<1x3x7x128xf32>
    %19 = vector.shape_cast %18 : vector<1x3x7x128xf32> to vector<3x7x128xf32>
    %cst_21 = arith.constant dense<0xFF800000> : vector<7x128xf32>
    %20 = vector.multi_reduction <maximumf>, %19, %cst_21 [0] : vector<3x7x128xf32> to vector<7x128xf32>
    %21 = vector.extract_strided_slice %17 {offsets = [0, 0], sizes = [7, 128], strides = [1, 1]} : vector<8x128xf32> to vector<7x128xf32>
    %22 = vector.extract_strided_slice %17 {offsets = [1, 0], sizes = [7, 128], strides = [1, 1]} : vector<8x128xf32> to vector<7x128xf32>
    %23 = arith.maximumf %21, %22 : vector<7x128xf32>
    %24 = arith.maximumf %23, %20 : vector<7x128xf32>
    %cst_22 = arith.constant 0.000000e+00 : f32
    %25 = vector.broadcast %cst_22 : f32 to vector<7x128xf32>
    %26 = arith.maximumf %24, %25 : vector<7x128xf32>
    %c0_23 = arith.constant 0 : index
    %c1 = arith.constant 1 : index
    %c0_24 = arith.constant 0 : index
    %c0_25 = arith.constant 0 : index
    %27 = vector.load %arg3[%c0_23, %c1, %c0_24, %c0_25] : memref<1x7x7x128xf32, #tpu.memory_space<vmem>>, vector<1x1x7x128xf32>
    %28 = vector.shape_cast %27 : vector<1x1x7x128xf32> to vector<7x128xf32>
    %29 = vector.shape_cast %26 : vector<7x128xf32> to vector<1x1x7x128xf32>
    tpu.vector_store %arg3[%c0_23, %c1, %c0_24, %c0_25], %29 {strides = array<i32>} : memref<1x7x7x128xf32, #tpu.memory_space<vmem>>, vector<1x1x7x128xf32>,
    %c0_26 = arith.constant 0 : index
    %c4 = arith.constant 4 : index
    %c0_27 = arith.constant 0 : index
    %c0_28 = arith.constant 0 : index
    %30 = vector.load %arg1[%c0_26, %c4, %c0_27, %c0_28] : memref<1x15x8x128xf32, #tpu.memory_space<vmem>>, vector<1x3x8x128xf32>
    %31 = vector.shape_cast %30 : vector<1x3x8x128xf32> to vector<3x8x128xf32>
    %cst_29 = arith.constant dense<0xFF800000> : vector<8x128xf32>
    %32 = vector.multi_reduction <maximumf>, %31, %cst_29 [0] : vector<3x8x128xf32> to vector<8x128xf32>
    %c0_30 = arith.constant 0 : index
    %c4_31 = arith.constant 4 : index
    %c0_32 = arith.constant 0 : index
    %c0_33 = arith.constant 0 : index
    %33 = vector.load %arg2[%c0_30, %c4_31, %c0_32, %c0_33] : memref<1x15x7x128xf32, #tpu.memory_space<vmem>>, vector<1x3x7x128xf32>
    %34 = vector.shape_cast %33 : vector<1x3x7x128xf32> to vector<3x7x128xf32>
    %cst_34 = arith.constant dense<0xFF800000> : vector<7x128xf32>
    %35 = vector.multi_reduction <maximumf>, %34, %cst_34 [0] : vector<3x7x128xf32> to vector<7x128xf32>
    %36 = vector.extract_strided_slice %32 {offsets = [0, 0], sizes = [7, 128], strides = [1, 1]} : vector<8x128xf32> to vector<7x128xf32>
    %37 = vector.extract_strided_slice %32 {offsets = [1, 0], sizes = [7, 128], strides = [1, 1]} : vector<8x128xf32> to vector<7x128xf32>
    %38 = arith.maximumf %36, %37 : vector<7x128xf32>
    %39 = arith.maximumf %38, %35 : vector<7x128xf32>
    %cst_35 = arith.constant 0.000000e+00 : f32
    %40 = vector.broadcast %cst_35 : f32 to vector<7x128xf32>
    %41 = arith.maximumf %39, %40 : vector<7x128xf32>
    %c0_36 = arith.constant 0 : index
    %c2_37 = arith.constant 2 : index
    %c0_38 = arith.constant 0 : index
    %c0_39 = arith.constant 0 : index
    %42 = vector.load %arg3[%c0_36, %c2_37, %c0_38, %c0_39] : memref<1x7x7x128xf32, #tpu.memory_space<vmem>>, vector<1x1x7x128xf32>
    %43 = vector.shape_cast %42 : vector<1x1x7x128xf32> to vector<7x128xf32>
    %44 = vector.shape_cast %41 : vector<7x128xf32> to vector<1x1x7x128xf32>
    tpu.vector_store %arg3[%c0_36, %c2_37, %c0_38, %c0_39], %44 {strides = array<i32>} : memref<1x7x7x128xf32, #tpu.memory_space<vmem>>, vector<1x1x7x128xf32>,
    %c0_40 = arith.constant 0 : index
    %c6 = arith.constant 6 : index
    %c0_41 = arith.constant 0 : index
    %c0_42 = arith.constant 0 : index
    %45 = vector.load %arg1[%c0_40, %c6, %c0_41, %c0_42] : memref<1x15x8x128xf32, #tpu.memory_space<vmem>>, vector<1x3x8x128xf32>
    %46 = vector.shape_cast %45 : vector<1x3x8x128xf32> to vector<3x8x128xf32>
    %cst_43 = arith.constant dense<0xFF800000> : vector<8x128xf32>
    %47 = vector.multi_reduction <maximumf>, %46, %cst_43 [0] : vector<3x8x128xf32> to vector<8x128xf32>
    %c0_44 = arith.constant 0 : index
    %c6_45 = arith.constant 6 : index
    %c0_46 = arith.constant 0 : index
    %c0_47 = arith.constant 0 : index
    %48 = vector.load %arg2[%c0_44, %c6_45, %c0_46, %c0_47] : memref<1x15x7x128xf32, #tpu.memory_space<vmem>>, vector<1x3x7x128xf32>
    %49 = vector.shape_cast %48 : vector<1x3x7x128xf32> to vector<3x7x128xf32>
    %cst_48 = arith.constant dense<0xFF800000> : vector<7x128xf32>
    %50 = vector.multi_reduction <maximumf>, %49, %cst_48 [0] : vector<3x7x128xf32> to vector<7x128xf32>
    %51 = vector.extract_strided_slice %47 {offsets = [0, 0], sizes = [7, 128], strides = [1, 1]} : vector<8x128xf32> to vector<7x128xf32>
    %52 = vector.extract_strided_slice %47 {offsets = [1, 0], sizes = [7, 128], strides = [1, 1]} : vector<8x128xf32> to vector<7x128xf32>
    %53 = arith.maximumf %51, %52 : vector<7x128xf32>
    %54 = arith.maximumf %53, %50 : vector<7x128xf32>
    %cst_49 = arith.constant 0.000000e+00 : f32
    %55 = vector.broadcast %cst_49 : f32 to vector<7x128xf32>
    %56 = arith.maximumf %54, %55 : vector<7x128xf32>
    %c0_50 = arith.constant 0 : index
    %c3 = arith.constant 3 : index
    %c0_51 = arith.constant 0 : index
    %c0_52 = arith.constant 0 : index
    %57 = vector.load %arg3[%c0_50, %c3, %c0_51, %c0_52] : memref<1x7x7x128xf32, #tpu.memory_space<vmem>>, vector<1x1x7x128xf32>
    %58 = vector.shape_cast %57 : vector<1x1x7x128xf32> to vector<7x128xf32>
    %59 = vector.shape_cast %56 : vector<7x128xf32> to vector<1x1x7x128xf32>
    tpu.vector_store %arg3[%c0_50, %c3, %c0_51, %c0_52], %59 {strides = array<i32>} : memref<1x7x7x128xf32, #tpu.memory_space<vmem>>, vector<1x1x7x128xf32>,
    %c0_53 = arith.constant 0 : index
    %c8 = arith.constant 8 : index
    %c0_54 = arith.constant 0 : index
    %c0_55 = arith.constant 0 : index
    %60 = vector.load %arg1[%c0_53, %c8, %c0_54, %c0_55] : memref<1x15x8x128xf32, #tpu.memory_space<vmem>>, vector<1x3x8x128xf32>
    %61 = vector.shape_cast %60 : vector<1x3x8x128xf32> to vector<3x8x128xf32>
    %cst_56 = arith.constant dense<0xFF800000> : vector<8x128xf32>
    %62 = vector.multi_reduction <maximumf>, %61, %cst_56 [0] : vector<3x8x128xf32> to vector<8x128xf32>
    %c0_57 = arith.constant 0 : index
    %c8_58 = arith.constant 8 : index
    %c0_59 = arith.constant 0 : index
    %c0_60 = arith.constant 0 : index
    %63 = vector.load %arg2[%c0_57, %c8_58, %c0_59, %c0_60] : memref<1x15x7x128xf32, #tpu.memory_space<vmem>>, vector<1x3x7x128xf32>
    %64 = vector.shape_cast %63 : vector<1x3x7x128xf32> to vector<3x7x128xf32>
    %cst_61 = arith.constant dense<0xFF800000> : vector<7x128xf32>
    %65 = vector.multi_reduction <maximumf>, %64, %cst_61 [0] : vector<3x7x128xf32> to vector<7x128xf32>
    %66 = vector.extract_strided_slice %62 {offsets = [0, 0], sizes = [7, 128], strides = [1, 1]} : vector<8x128xf32> to vector<7x128xf32>
    %67 = vector.extract_strided_slice %62 {offsets = [1, 0], sizes = [7, 128], strides = [1, 1]} : vector<8x128xf32> to vector<7x128xf32>
    %68 = arith.maximumf %66, %67 : vector<7x128xf32>
    %69 = arith.maximumf %68, %65 : vector<7x128xf32>
    %cst_62 = arith.constant 0.000000e+00 : f32
    %70 = vector.broadcast %cst_62 : f32 to vector<7x128xf32>
    %71 = arith.maximumf %69, %70 : vector<7x128xf32>
    %c0_63 = arith.constant 0 : index
    %c4_64 = arith.constant 4 : index
    %c0_65 = arith.constant 0 : index
    %c0_66 = arith.constant 0 : index
    %72 = vector.load %arg3[%c0_63, %c4_64, %c0_65, %c0_66] : memref<1x7x7x128xf32, #tpu.memory_space<vmem>>, vector<1x1x7x128xf32>
    %73 = vector.shape_cast %72 : vector<1x1x7x128xf32> to vector<7x128xf32>
    %74 = vector.shape_cast %71 : vector<7x128xf32> to vector<1x1x7x128xf32>
    tpu.vector_store %arg3[%c0_63, %c4_64, %c0_65, %c0_66], %74 {strides = array<i32>} : memref<1x7x7x128xf32, #tpu.memory_space<vmem>>, vector<1x1x7x128xf32>,
    %c0_67 = arith.constant 0 : index
    %c10 = arith.constant 10 : index
    %c0_68 = arith.constant 0 : index
    %c0_69 = arith.constant 0 : index
    %75 = vector.load %arg1[%c0_67, %c10, %c0_68, %c0_69] : memref<1x15x8x128xf32, #tpu.memory_space<vmem>>, vector<1x3x8x128xf32>
    %76 = vector.shape_cast %75 : vector<1x3x8x128xf32> to vector<3x8x128xf32>
    %cst_70 = arith.constant dense<0xFF800000> : vector<8x128xf32>
    %77 = vector.multi_reduction <maximumf>, %76, %cst_70 [0] : vector<3x8x128xf32> to vector<8x128xf32>
    %c0_71 = arith.constant 0 : index
    %c10_72 = arith.constant 10 : index
    %c0_73 = arith.constant 0 : index
    %c0_74 = arith.constant 0 : index
    %78 = vector.load %arg2[%c0_71, %c10_72, %c0_73, %c0_74] : memref<1x15x7x128xf32, #tpu.memory_space<vmem>>, vector<1x3x7x128xf32>
    %79 = vector.shape_cast %78 : vector<1x3x7x128xf32> to vector<3x7x128xf32>
    %cst_75 = arith.constant dense<0xFF800000> : vector<7x128xf32>
    %80 = vector.multi_reduction <maximumf>, %79, %cst_75 [0] : vector<3x7x128xf32> to vector<7x128xf32>
    %81 = vector.extract_strided_slice %77 {offsets = [0, 0], sizes = [7, 128], strides = [1, 1]} : vector<8x128xf32> to vector<7x128xf32>
    %82 = vector.extract_strided_slice %77 {offsets = [1, 0], sizes = [7, 128], strides = [1, 1]} : vector<8x128xf32> to vector<7x128xf32>
    %83 = arith.maximumf %81, %82 : vector<7x128xf32>
    %84 = arith.maximumf %83, %80 : vector<7x128xf32>
    %cst_76 = arith.constant 0.000000e+00 : f32
    %85 = vector.broadcast %cst_76 : f32 to vector<7x128xf32>
    %86 = arith.maximumf %84, %85 : vector<7x128xf32>
    %c0_77 = arith.constant 0 : index
    %c5 = arith.constant 5 : index
    %c0_78 = arith.constant 0 : index
    %c0_79 = arith.constant 0 : index
    %87 = vector.load %arg3[%c0_77, %c5, %c0_78, %c0_79] : memref<1x7x7x128xf32, #tpu.memory_space<vmem>>, vector<1x1x7x128xf32>
    %88 = vector.shape_cast %87 : vector<1x1x7x128xf32> to vector<7x128xf32>
    %89 = vector.shape_cast %86 : vector<7x128xf32> to vector<1x1x7x128xf32>
    tpu.vector_store %arg3[%c0_77, %c5, %c0_78, %c0_79], %89 {strides = array<i32>} : memref<1x7x7x128xf32, #tpu.memory_space<vmem>>, vector<1x1x7x128xf32>,
    %c0_80 = arith.constant 0 : index
    %c12 = arith.constant 12 : index
    %c0_81 = arith.constant 0 : index
    %c0_82 = arith.constant 0 : index
    %90 = vector.load %arg1[%c0_80, %c12, %c0_81, %c0_82] : memref<1x15x8x128xf32, #tpu.memory_space<vmem>>, vector<1x3x8x128xf32>
    %91 = vector.shape_cast %90 : vector<1x3x8x128xf32> to vector<3x8x128xf32>
    %cst_83 = arith.constant dense<0xFF800000> : vector<8x128xf32>
    %92 = vector.multi_reduction <maximumf>, %91, %cst_83 [0] : vector<3x8x128xf32> to vector<8x128xf32>
    %c0_84 = arith.constant 0 : index
    %c12_85 = arith.constant 12 : index
    %c0_86 = arith.constant 0 : index
    %c0_87 = arith.constant 0 : index
    %93 = vector.load %arg2[%c0_84, %c12_85, %c0_86, %c0_87] : memref<1x15x7x128xf32, #tpu.memory_space<vmem>>, vector<1x3x7x128xf32>
    %94 = vector.shape_cast %93 : vector<1x3x7x128xf32> to vector<3x7x128xf32>
    %cst_88 = arith.constant dense<0xFF800000> : vector<7x128xf32>
    %95 = vector.multi_reduction <maximumf>, %94, %cst_88 [0] : vector<3x7x128xf32> to vector<7x128xf32>
    %96 = vector.extract_strided_slice %92 {offsets = [0, 0], sizes = [7, 128], strides = [1, 1]} : vector<8x128xf32> to vector<7x128xf32>
    %97 = vector.extract_strided_slice %92 {offsets = [1, 0], sizes = [7, 128], strides = [1, 1]} : vector<8x128xf32> to vector<7x128xf32>
    %98 = arith.maximumf %96, %97 : vector<7x128xf32>
    %99 = arith.maximumf %98, %95 : vector<7x128xf32>
    %cst_89 = arith.constant 0.000000e+00 : f32
    %100 = vector.broadcast %cst_89 : f32 to vector<7x128xf32>
    %101 = arith.maximumf %99, %100 : vector<7x128xf32>
    %c0_90 = arith.constant 0 : index
    %c6_91 = arith.constant 6 : index
    %c0_92 = arith.constant 0 : index
    %c0_93 = arith.constant 0 : index
    %102 = vector.load %arg3[%c0_90, %c6_91, %c0_92, %c0_93] : memref<1x7x7x128xf32, #tpu.memory_space<vmem>>, vector<1x1x7x128xf32>
    %103 = vector.shape_cast %102 : vector<1x1x7x128xf32> to vector<7x128xf32>
    %104 = vector.shape_cast %101 : vector<7x128xf32> to vector<1x1x7x128xf32>
    tpu.vector_store %arg3[%c0_90, %c6_91, %c0_92, %c0_93], %104 {strides = array<i32>} : memref<1x7x7x128xf32, #tpu.memory_space<vmem>>, vector<1x1x7x128xf32>,
    return
  }
  func.func @transform_0(%arg0: i32) -> (i32, i32, i32, i32) {
    %c0_i32 = arith.constant 0 : i32
    %c0_i32_0 = arith.constant 0 : i32
    %c0_i32_1 = arith.constant 0 : i32
    %c0_i32_2 = arith.constant 0 : i32
    return %arg0, %c0_i32, %c0_i32_0, %c0_i32_1 : i32, i32, i32, i32
  }
  func.func @transform_1(%arg0: i32) -> (i32, i32, i32, i32) {
    %c0_i32 = arith.constant 0 : i32
    %c0_i32_0 = arith.constant 0 : i32
    %c0_i32_1 = arith.constant 0 : i32
    %c0_i32_2 = arith.constant 0 : i32
    return %arg0, %c0_i32, %c0_i32_0, %c0_i32_1 : i32, i32, i32, i32
  }
  func.func @transform_2(%arg0: i32) -> (i32, i32, i32, i32) {
    %c0_i32 = arith.constant 0 : i32
    %c0_i32_0 = arith.constant 0 : i32
    %c0_i32_1 = arith.constant 0 : i32
    %c0_i32_2 = arith.constant 0 : i32
    return %arg0, %c0_i32, %c0_i32_0, %c0_i32_1 : i32, i32, i32, i32
  }
}

module attributes {stable_mosaic.version = 11 : i64} {
  func.func @_matmul_bias_relu_kernel(%arg0: i32, %arg1: memref<64x1664xbf16, #tpu.memory_space<vmem>>, %arg2: memref<1664x192xbf16, #tpu.memory_space<vmem>>, %arg3: memref<1x192xf32, #tpu.memory_space<vmem>>, %arg4: memref<64x192xf32, #tpu.memory_space<vmem>>) attributes {dimension_semantics = [#tpu.dimension_semantics<parallel>], iteration_bounds = array<i64: 2>, scalar_prefetch = 0 : i64, scratch_operands = 0 : i64, tpu.core_type = #tpu.core_type<tc>, window_params = [{transform_indices = @transform_0, window_bounds = array<i64: 64, 1664>}, {pipeline_mode = #tpu.pipeline_mode<synchronous>, transform_indices = @transform_1, window_bounds = array<i64: 1664, 192>}, {pipeline_mode = #tpu.pipeline_mode<synchronous>, transform_indices = @transform_2, window_bounds = array<i64: 1, 192>}, {transform_indices = @transform_3, window_bounds = array<i64: 64, 192>}]} {
    %c0 = arith.constant 0 : index
    %c0_0 = arith.constant 0 : index
    %0 = vector.load %arg1[%c0, %c0_0] : memref<64x1664xbf16, #tpu.memory_space<vmem>>, vector<64x1664xbf16>
    %c0_1 = arith.constant 0 : index
    %c0_2 = arith.constant 0 : index
    %1 = vector.load %arg2[%c0_1, %c0_2] : memref<1664x192xbf16, #tpu.memory_space<vmem>>, vector<1664x192xbf16>
    %cst = arith.constant dense<0.000000e+00> : vector<64x192xf32>
    %2 = tpu.matmul %0, %1, %cst {dimension_numbers = #tpu.dot_dimension_numbers<[1], [0], [0], [1], [0, 0, 1, 1], [], []>} : vector<64x1664xbf16>, vector<1664x192xbf16>, vector<64x192xf32> -> vector<64x192xf32>
    %c0_3 = arith.constant 0 : index
    %c0_4 = arith.constant 0 : index
    %3 = vector.load %arg3[%c0_3, %c0_4] : memref<1x192xf32, #tpu.memory_space<vmem>>, vector<1x192xf32>
    %4 = vector.broadcast %3 : vector<1x192xf32> to vector<64x192xf32>
    %5 = arith.addf %2, %4 : vector<64x192xf32>
    %cst_5 = arith.constant 0.000000e+00 : f32
    %6 = vector.broadcast %cst_5 : f32 to vector<64x192xf32>
    %7 = arith.maximumf %5, %6 : vector<64x192xf32>
    %c0_6 = arith.constant 0 : index
    %c0_7 = arith.constant 0 : index
    %8 = vector.load %arg4[%c0_6, %c0_7] : memref<64x192xf32, #tpu.memory_space<vmem>>, vector<64x192xf32>
    tpu.vector_store %arg4[%c0_6, %c0_7], %7 {strides = array<i32>} : memref<64x192xf32, #tpu.memory_space<vmem>>, vector<64x192xf32>,
    return
  }
  func.func @transform_0(%arg0: i32) -> (i32, i32) {
    %c0_i32 = arith.constant 0 : i32
    %c0_i32_0 = arith.constant 0 : i32
    return %arg0, %c0_i32 : i32, i32
  }
  func.func @transform_1(%arg0: i32) -> (i32, i32) {
    %c0_i32 = arith.constant 0 : i32
    %c0_i32_0 = arith.constant 0 : i32
    %c0_i32_1 = arith.constant 0 : i32
    return %c0_i32, %c0_i32_0 : i32, i32
  }
  func.func @transform_2(%arg0: i32) -> (i32, i32) {
    %c0_i32 = arith.constant 0 : i32
    %c0_i32_0 = arith.constant 0 : i32
    %c0_i32_1 = arith.constant 0 : i32
    return %c0_i32, %c0_i32_0 : i32, i32
  }
  func.func @transform_3(%arg0: i32) -> (i32, i32) {
    %c0_i32 = arith.constant 0 : i32
    %c0_i32_0 = arith.constant 0 : i32
    return %arg0, %c0_i32 : i32, i32
  }
}

module attributes {stable_mosaic.version = 11 : i64} {
  func.func @kernel(%arg0: i32, %arg1: memref<1x7x4x192xf32, #tpu.memory_space<vmem>>, %arg2: memref<1x7x3x192xf32, #tpu.memory_space<vmem>>, %arg3: memref<1x3x3x192xf32, #tpu.memory_space<vmem>>) attributes {dimension_semantics = [#tpu.dimension_semantics<parallel>], iteration_bounds = array<i64: 2>, scalar_prefetch = 0 : i64, scratch_operands = 0 : i64, tpu.core_type = #tpu.core_type<tc>, window_params = [{transform_indices = @transform_0, window_bounds = array<i64: 1, 7, 4, 192>}, {transform_indices = @transform_1, window_bounds = array<i64: 1, 7, 3, 192>}, {transform_indices = @transform_2, window_bounds = array<i64: 1, 3, 3, 192>}]} {
    %c0 = arith.constant 0 : index
    %c0_0 = arith.constant 0 : index
    %c0_1 = arith.constant 0 : index
    %c0_2 = arith.constant 0 : index
    %0 = vector.load %arg1[%c0, %c0_0, %c0_1, %c0_2] : memref<1x7x4x192xf32, #tpu.memory_space<vmem>>, vector<1x3x4x192xf32>
    %1 = vector.shape_cast %0 : vector<1x3x4x192xf32> to vector<3x4x192xf32>
    %cst = arith.constant dense<0xFF800000> : vector<4x192xf32>
    %2 = vector.multi_reduction <maximumf>, %1, %cst [0] : vector<3x4x192xf32> to vector<4x192xf32>
    %c0_3 = arith.constant 0 : index
    %c0_4 = arith.constant 0 : index
    %c0_5 = arith.constant 0 : index
    %c0_6 = arith.constant 0 : index
    %3 = vector.load %arg2[%c0_3, %c0_4, %c0_5, %c0_6] : memref<1x7x3x192xf32, #tpu.memory_space<vmem>>, vector<1x3x3x192xf32>
    %4 = vector.shape_cast %3 : vector<1x3x3x192xf32> to vector<3x3x192xf32>
    %cst_7 = arith.constant dense<0xFF800000> : vector<3x192xf32>
    %5 = vector.multi_reduction <maximumf>, %4, %cst_7 [0] : vector<3x3x192xf32> to vector<3x192xf32>
    %6 = vector.extract_strided_slice %2 {offsets = [0, 0], sizes = [3, 192], strides = [1, 1]} : vector<4x192xf32> to vector<3x192xf32>
    %7 = vector.extract_strided_slice %2 {offsets = [1, 0], sizes = [3, 192], strides = [1, 1]} : vector<4x192xf32> to vector<3x192xf32>
    %8 = arith.maximumf %6, %7 : vector<3x192xf32>
    %9 = arith.maximumf %8, %5 : vector<3x192xf32>
    %cst_8 = arith.constant 0.000000e+00 : f32
    %10 = vector.broadcast %cst_8 : f32 to vector<3x192xf32>
    %11 = arith.maximumf %9, %10 : vector<3x192xf32>
    %c0_9 = arith.constant 0 : index
    %c0_10 = arith.constant 0 : index
    %c0_11 = arith.constant 0 : index
    %c0_12 = arith.constant 0 : index
    %12 = vector.load %arg3[%c0_9, %c0_10, %c0_11, %c0_12] : memref<1x3x3x192xf32, #tpu.memory_space<vmem>>, vector<1x1x3x192xf32>
    %13 = vector.shape_cast %12 : vector<1x1x3x192xf32> to vector<3x192xf32>
    %14 = vector.shape_cast %11 : vector<3x192xf32> to vector<1x1x3x192xf32>
    tpu.vector_store %arg3[%c0_9, %c0_10, %c0_11, %c0_12], %14 {strides = array<i32>} : memref<1x3x3x192xf32, #tpu.memory_space<vmem>>, vector<1x1x3x192xf32>,
    %c0_13 = arith.constant 0 : index
    %c2 = arith.constant 2 : index
    %c0_14 = arith.constant 0 : index
    %c0_15 = arith.constant 0 : index
    %15 = vector.load %arg1[%c0_13, %c2, %c0_14, %c0_15] : memref<1x7x4x192xf32, #tpu.memory_space<vmem>>, vector<1x3x4x192xf32>
    %16 = vector.shape_cast %15 : vector<1x3x4x192xf32> to vector<3x4x192xf32>
    %cst_16 = arith.constant dense<0xFF800000> : vector<4x192xf32>
    %17 = vector.multi_reduction <maximumf>, %16, %cst_16 [0] : vector<3x4x192xf32> to vector<4x192xf32>
    %c0_17 = arith.constant 0 : index
    %c2_18 = arith.constant 2 : index
    %c0_19 = arith.constant 0 : index
    %c0_20 = arith.constant 0 : index
    %18 = vector.load %arg2[%c0_17, %c2_18, %c0_19, %c0_20] : memref<1x7x3x192xf32, #tpu.memory_space<vmem>>, vector<1x3x3x192xf32>
    %19 = vector.shape_cast %18 : vector<1x3x3x192xf32> to vector<3x3x192xf32>
    %cst_21 = arith.constant dense<0xFF800000> : vector<3x192xf32>
    %20 = vector.multi_reduction <maximumf>, %19, %cst_21 [0] : vector<3x3x192xf32> to vector<3x192xf32>
    %21 = vector.extract_strided_slice %17 {offsets = [0, 0], sizes = [3, 192], strides = [1, 1]} : vector<4x192xf32> to vector<3x192xf32>
    %22 = vector.extract_strided_slice %17 {offsets = [1, 0], sizes = [3, 192], strides = [1, 1]} : vector<4x192xf32> to vector<3x192xf32>
    %23 = arith.maximumf %21, %22 : vector<3x192xf32>
    %24 = arith.maximumf %23, %20 : vector<3x192xf32>
    %cst_22 = arith.constant 0.000000e+00 : f32
    %25 = vector.broadcast %cst_22 : f32 to vector<3x192xf32>
    %26 = arith.maximumf %24, %25 : vector<3x192xf32>
    %c0_23 = arith.constant 0 : index
    %c1 = arith.constant 1 : index
    %c0_24 = arith.constant 0 : index
    %c0_25 = arith.constant 0 : index
    %27 = vector.load %arg3[%c0_23, %c1, %c0_24, %c0_25] : memref<1x3x3x192xf32, #tpu.memory_space<vmem>>, vector<1x1x3x192xf32>
    %28 = vector.shape_cast %27 : vector<1x1x3x192xf32> to vector<3x192xf32>
    %29 = vector.shape_cast %26 : vector<3x192xf32> to vector<1x1x3x192xf32>
    tpu.vector_store %arg3[%c0_23, %c1, %c0_24, %c0_25], %29 {strides = array<i32>} : memref<1x3x3x192xf32, #tpu.memory_space<vmem>>, vector<1x1x3x192xf32>,
    %c0_26 = arith.constant 0 : index
    %c4 = arith.constant 4 : index
    %c0_27 = arith.constant 0 : index
    %c0_28 = arith.constant 0 : index
    %30 = vector.load %arg1[%c0_26, %c4, %c0_27, %c0_28] : memref<1x7x4x192xf32, #tpu.memory_space<vmem>>, vector<1x3x4x192xf32>
    %31 = vector.shape_cast %30 : vector<1x3x4x192xf32> to vector<3x4x192xf32>
    %cst_29 = arith.constant dense<0xFF800000> : vector<4x192xf32>
    %32 = vector.multi_reduction <maximumf>, %31, %cst_29 [0] : vector<3x4x192xf32> to vector<4x192xf32>
    %c0_30 = arith.constant 0 : index
    %c4_31 = arith.constant 4 : index
    %c0_32 = arith.constant 0 : index
    %c0_33 = arith.constant 0 : index
    %33 = vector.load %arg2[%c0_30, %c4_31, %c0_32, %c0_33] : memref<1x7x3x192xf32, #tpu.memory_space<vmem>>, vector<1x3x3x192xf32>
    %34 = vector.shape_cast %33 : vector<1x3x3x192xf32> to vector<3x3x192xf32>
    %cst_34 = arith.constant dense<0xFF800000> : vector<3x192xf32>
    %35 = vector.multi_reduction <maximumf>, %34, %cst_34 [0] : vector<3x3x192xf32> to vector<3x192xf32>
    %36 = vector.extract_strided_slice %32 {offsets = [0, 0], sizes = [3, 192], strides = [1, 1]} : vector<4x192xf32> to vector<3x192xf32>
    %37 = vector.extract_strided_slice %32 {offsets = [1, 0], sizes = [3, 192], strides = [1, 1]} : vector<4x192xf32> to vector<3x192xf32>
    %38 = arith.maximumf %36, %37 : vector<3x192xf32>
    %39 = arith.maximumf %38, %35 : vector<3x192xf32>
    %cst_35 = arith.constant 0.000000e+00 : f32
    %40 = vector.broadcast %cst_35 : f32 to vector<3x192xf32>
    %41 = arith.maximumf %39, %40 : vector<3x192xf32>
    %c0_36 = arith.constant 0 : index
    %c2_37 = arith.constant 2 : index
    %c0_38 = arith.constant 0 : index
    %c0_39 = arith.constant 0 : index
    %42 = vector.load %arg3[%c0_36, %c2_37, %c0_38, %c0_39] : memref<1x3x3x192xf32, #tpu.memory_space<vmem>>, vector<1x1x3x192xf32>
    %43 = vector.shape_cast %42 : vector<1x1x3x192xf32> to vector<3x192xf32>
    %44 = vector.shape_cast %41 : vector<3x192xf32> to vector<1x1x3x192xf32>
    tpu.vector_store %arg3[%c0_36, %c2_37, %c0_38, %c0_39], %44 {strides = array<i32>} : memref<1x3x3x192xf32, #tpu.memory_space<vmem>>, vector<1x1x3x192xf32>,
    return
  }
  func.func @transform_0(%arg0: i32) -> (i32, i32, i32, i32) {
    %c0_i32 = arith.constant 0 : i32
    %c0_i32_0 = arith.constant 0 : i32
    %c0_i32_1 = arith.constant 0 : i32
    %c0_i32_2 = arith.constant 0 : i32
    return %arg0, %c0_i32, %c0_i32_0, %c0_i32_1 : i32, i32, i32, i32
  }
  func.func @transform_1(%arg0: i32) -> (i32, i32, i32, i32) {
    %c0_i32 = arith.constant 0 : i32
    %c0_i32_0 = arith.constant 0 : i32
    %c0_i32_1 = arith.constant 0 : i32
    %c0_i32_2 = arith.constant 0 : i32
    return %arg0, %c0_i32, %c0_i32_0, %c0_i32_1 : i32, i32, i32, i32
  }
  func.func @transform_2(%arg0: i32) -> (i32, i32, i32, i32) {
    %c0_i32 = arith.constant 0 : i32
    %c0_i32_0 = arith.constant 0 : i32
    %c0_i32_1 = arith.constant 0 : i32
    %c0_i32_2 = arith.constant 0 : i32
    return %arg0, %c0_i32, %c0_i32_0, %c0_i32_1 : i32, i32, i32, i32
  }
}

</mosaic_0001>

<llo_original>
// kernel: alexnet_client_forward.4
$region0: #{alexnet_client_forward.4}
  #allocation0 [shape = 'u32[]', space=smem, size = 0x4, offset = 0x4, fixed_abs, tag = 'smem constant byte address 0x4 - core index']
  #allocation1 [shape = 'u32[144,128]{1,0:T(1,128)}', space=vmem, size = 0x12000, scoped, tag = 'internal scratch']
  %s0 = inlined_call_operand.vmem [shape: bf16[450,384], index: 0, kind: input, shape index: {}]
  %s1 = inlined_call_operand.vmem [shape: bf16[384,128], index: 1, kind: input, shape index: {}]
  %s2 = inlined_call_operand.vmem [shape: f32[1,128], index: 2, kind: input, shape index: {}]
  %s3 = inlined_call_operand.vmem [shape: f32[450,128], index: 3, kind: output, shape index: {}]
  %s4 = sld [smem:[#allocation0]]
  $region93: #{alexnet_client_forward.4} parent=0
    _
  %s6 = ssub.s32 1, %s4
  %s7 = scalar_select 0, %s6, %s4
  $region1: #{alexnet_client_forward.4} parent=0
    #allocation2 [shape = 'u8[245760]{0}', space=vmem, size = 0x3c000, scoped, tag = 'output window, operand 0']
    loop: start=0, step=1, limit=4
    $region2: #{alexnet_client_forward.4} parent=1 // loop_pre_header
      _
    $region3: #{alexnet_client_forward.4} parent=1 // loop_header
      %s9 = sphi 0, %s13
      %p10 = scmp.ge.s32.totalorder %s9, 4
      %s19 = sphi 0, %s21
      %s22 = sphi 0, %s19
      %s23 = sphi 0, %s22
      %s39 = sphi 0, %s23
      %s43 = sphi 0, %s43
      %s45 = sphi 0, %s43
      %s46 = sphi 0, %s45
      %s60 = sphi 0, %s46
      %s64 = sphi 0, %s64
      %s66 = sphi 0, %s64
      %s67 = sphi 0, %s66
      %s81 = sphi 0, %s67
      %s87 = sphi 0, %s89
      %s90 = sphi 0, %s87
      %s91 = sphi 0, %s90
      %s107 = sphi 0, %s91
    $region4: #{alexnet_client_forward.4} parent=1 // loop_header_branch
      %12 = sbr.rel (%p10) target = $region8
    $region5: #{alexnet_client_forward.4} parent=1 // loop_body
      %s14 = ssub.s32 %s9, 1
      %s15 = ssub.s32 %s9, 2
      %s16 = sadd.s32 %s9, 1
      %s17 = ssub.s32 %s9, %s16
      %p18 = scmp.eq.s32.totalorder %s17, 0
      %s20 = sadd.s32 %s19, 1
      %s21 = scalar_select %p18, %s19, %s20
      %p24 = pneg %p18
      %p25 = scmp.eq.s32.totalorder %s9, 1
      %p26 = por %p24, %p25
      %p27 = scmp.ne.s32.totalorder %s19, %s22
      %p28 = scmp.eq.s32.totalorder %s9, 0
      %p29 = por %p27, %p28
      %p30 = scmp.ne.s32.totalorder %s19, %s22
      %p31 = scmp.eq.s32.totalorder %s14, 1
      %p32 = por %p30, %p31
      %p33 = scmp.ne.s32.totalorder %s22, %s23
      %p34 = scmp.eq.s32.totalorder %s14, 0
      %p35 = por %p33, %p34
      %p36 = scmp.ne.s32.totalorder %s22, %s23
      %p37 = scmp.eq.s32.totalorder %s15, 1
      %p38 = por %p36, %p37
      %p40 = scmp.ne.s32.totalorder %s23, %s39
      %p41 = scmp.eq.s32.totalorder %s15, 0
      %p42 = por %p40, %p41
      %s44 = sadd.s32 %s43, 1
      %p47 = scmp.eq.s32.totalorder %s9, 1
      %p48 = scmp.ne.s32.totalorder %s43, %s45
      %p49 = scmp.eq.s32.totalorder %s9, 0
      %p50 = por %p48, %p49
      %p51 = scmp.ne.s32.totalorder %s43, %s45
      %p52 = scmp.eq.s32.totalorder %s14, 1
      %p53 = por %p51, %p52
      %p54 = scmp.ne.s32.totalorder %s45, %s46
      %p55 = scmp.eq.s32.totalorder %s14, 0
      %p56 = por %p54, %p55
      %p57 = scmp.ne.s32.totalorder %s45, %s46
      %p58 = scmp.eq.s32.totalorder %s15, 1
      %p59 = por %p57, %p58
      %p61 = scmp.ne.s32.totalorder %s46, %s60
      %p62 = scmp.eq.s32.totalorder %s15, 0
      %p63 = por %p61, %p62
      %s65 = sadd.s32 %s64, 1
      %p68 = scmp.eq.s32.totalorder %s9, 1
      %p69 = scmp.ne.s32.totalorder %s64, %s66
      %p70 = scmp.eq.s32.totalorder %s9, 0
      %p71 = por %p69, %p70
      %p72 = scmp.ne.s32.totalorder %s64, %s66
      %p73 = scmp.eq.s32.totalorder %s14, 1
      %p74 = por %p72, %p73
      %p75 = scmp.ne.s32.totalorder %s66, %s67
      %p76 = scmp.eq.s32.totalorder %s14, 0
      %p77 = por %p75, %p76
      %p78 = scmp.ne.s32.totalorder %s66, %s67
      %p79 = scmp.eq.s32.totalorder %s15, 1
      %p80 = por %p78, %p79
      %p82 = scmp.ne.s32.totalorder %s67, %s81
      %p83 = scmp.eq.s32.totalorder %s15, 0
      %p84 = por %p82, %p83
      %s85 = ssub.s32 %s9, %s16
      %p86 = scmp.eq.s32.totalorder %s85, 0
      %s88 = sadd.s32 %s87, 1
      %s89 = scalar_select %p86, %s87, %s88
      %p92 = pneg %p86
      %p93 = scmp.eq.s32.totalorder %s9, 1
      %p94 = por %p92, %p93
      %p95 = scmp.ne.s32.totalorder %s87, %s90
      %p96 = scmp.eq.s32.totalorder %s9, 0
      %p97 = por %p95, %p96
      %p98 = scmp.ne.s32.totalorder %s87, %s90
      %p99 = scmp.eq.s32.totalorder %s14, 1
      %p100 = por %p98, %p99
      %p101 = scmp.ne.s32.totalorder %s90, %s91
      %p102 = scmp.eq.s32.totalorder %s14, 0
      %p103 = por %p101, %p102
      %p104 = scmp.ne.s32.totalorder %s90, %s91
      %p105 = scmp.eq.s32.totalorder %s15, 1
      %p106 = por %p104, %p105
      %p108 = scmp.ne.s32.totalorder %s91, %s107
      %p109 = scmp.eq.s32.totalorder %s15, 0
      %p110 = por %p108, %p109
      %p111 = scmp.le.s32.totalorder 1, %s9
      %p112 = scmp.lt.s32.totalorder %s9, 3
      %p113 = pnand %p111, %p112
      %p114 = pneg %p113
      // Predicated region
      $region9: #{alexnet_client_forward.4} parent=5 // pred_check
        _
      $region10: #{alexnet_client_forward.4} parent=5 // pred_check_branch
        %116 = sbr.rel (%p113) target = $region12
      $region11: #{alexnet_client_forward.4} parent=5 // pred_region
        %s117 = ssub.s32 %s9, 1
        // Predicated region
        $region13: #{alexnet_client_forward.4} parent=11 // pred_check
          %p118 = pneg %p56
        $region14: #{alexnet_client_forward.4} parent=11 // pred_check_branch
          %120 = sbr.rel (%p118) target = $region16
        $region15: #{alexnet_client_forward.4} parent=11 // pred_region
          _
        $region16: #{alexnet_client_forward.4} parent=11 // pred_fallthru
          _
        // Predicated region
        $region17: #{alexnet_client_forward.4} parent=11 // pred_check
          %p121 = pneg %p77
        $region18: #{alexnet_client_forward.4} parent=11 // pred_check_branch
          %123 = sbr.rel (%p121) target = $region20
        $region19: #{alexnet_client_forward.4} parent=11 // pred_region
          _
        $region20: #{alexnet_client_forward.4} parent=11 // pred_fallthru
          _
      $region12: #{alexnet_client_forward.4} parent=5 // pred_fallthru
        _
      %p124 = scmp.lt.s32.totalorder %s9, 2
      // Predicated region
      $region21: #{alexnet_client_forward.4} parent=5 // pred_check
        %p125 = pneg %p124
      $region22: #{alexnet_client_forward.4} parent=5 // pred_check_branch
        %127 = sbr.rel (%p125) target = $region24
      $region23: #{alexnet_client_forward.4} parent=5 // pred_region
        // Predicated region
        $region25: #{alexnet_client_forward.4} parent=23 // pred_check
          %p128 = pneg %p29
        $region26: #{alexnet_client_forward.4} parent=23 // pred_check_branch
          %130 = sbr.rel (%p128) target = $region28
        $region27: #{alexnet_client_forward.4} parent=23 // pred_region
          %s131 = smul.u32 30, %s9
          %s132 = ssub.s32 57, %s131
          %p133 = scmp.lt.s32.totalorder %s132, 30
          %s134 = scalar_select %p133, %s132, 30
          %s135 = smul.u32 64, %s134
          %s136 = smul.u32 %s135, 3
          %p137 = scmp.lt.s32.totalorder %s131, 56
          %s138 = scalar_select %p137, %s131, 56
          %s139 = smul.addr %s138, 3
          %s140 = smul.addr %s139, 4
          %s141 = scalar_lea.vmem %s0, %s140
          %s142 = smul.u32 30, %s9
          %s143 = ssub.s32 57, %s142
          %p144 = scmp.lt.s32.totalorder %s143, 30
          %s145 = scalar_select %p144, %s143, 30
          %s146 = smul.u32 64, %s145
          %s147 = smul.u32 %s146, 3
        $region28: #{alexnet_client_forward.4} parent=23 // pred_fallthru
          _
      $region24: #{alexnet_client_forward.4} parent=5 // pred_fallthru
        _
      %p148 = scmp.le.s32.totalorder 1, %s9
      %p149 = scmp.lt.s32.totalorder %s9, 3
      %p150 = pnand %p148, %p149
      %p151 = pneg %p150
      // Predicated region
      $region29: #{alexnet_client_forward.4} parent=5 // pred_check
        _
      $region30: #{alexnet_client_forward.4} parent=5 // pred_check_branch
        %153 = sbr.rel (%p150) target = $region32
      $region31: #{alexnet_client_forward.4} parent=5 // pred_region
        %s154 = ssub.s32 %s9, 1
        %s155 = smul.u32 30, %s14
        %s156 = ssub.s32 57, %s155
        %p157 = scmp.lt.s32.totalorder %s156, 30
        %s158 = scalar_select %p157, %s156, 30
        %s159 = smul.u32 64, %s158
        %s160 = smul.u32 %s159, 3
        %p161 = scmp.lt.s32.totalorder %s155, 56
        %s162 = scalar_select %p161, %s155, 56
        %s163 = smul.addr %s162, 3
        %s164 = smul.addr %s163, 4
        %s165 = scalar_lea.vmem %s0, %s164
        %p166 = pneg %p35
        %p167 = pneg %p32
        %p168 = pneg %p56
        %p169 = pneg %p53
        %p170 = pneg %p77
        %p171 = pneg %p74
        %p172 = pneg %p103
        %p173 = pneg %p100
        %s174 = sand.u32 %s90, 1
        %s175 = sand.u32 %s90, 1
        %s176 = smul.addr %s175, 240
        %s177 = scalar_lea.vmem [#allocation2], %s176
        %s178 = smul.u32 30, %s14
        %s179 = ssub.s32 57, %s178
        %p180 = scmp.lt.s32.totalorder %s179, 30
        %s181 = scalar_select %p180, %s179, 30
        %s182 = smul.u32 64, %s181
        %s183 = smul.u32 %s182, 3
        %p184 = scmp.lt.s32.totalorder %s178, 56
        %s185 = scalar_select %p184, %s178, 56
        %s186 = smul.addr %s185, 3
        %s187 = smul.addr %s186, 4
        %s188 = scalar_lea.vmem %s0, %s187
        %s189 = smul.u32 30, %s14
        %s190 = ssub.s32 57, %s189
        %p191 = scmp.lt.s32.totalorder %s190, 30
        %s192 = scalar_select %p191, %s190, 30
        %s193 = smul.u32 64, %s192
        %s194 = smul.u32 %s193, 3
        %s195 = smul.u32 30, %s14
        %s196 = ssub.s32 57, %s195
        %p197 = scmp.lt.s32.totalorder %s196, 30
        %s198 = scalar_select %p197, %s196, 30
        %s199 = smul.u32 128, %s198
        %v201 = vld [vmem:[%s188] sm:$0xff]
        %v202 = vld [vmem:[%s188 + $0x8] sm:$0xf]
        %v203 = vld [vmem:[%s188 + $0xc] sm:$0xff]
        %v204 = vld [vmem:[%s188 + $0x14] sm:$0xf]
        %v205 = vld [vmem:[%s188 + $0x18] sm:$0xff]
        %v206 = vld [vmem:[%s188 + $0x20] sm:$0xf]
        %v207 = vld [vmem:[%s188 + $0x24] sm:$0xff]
        %v208 = vld [vmem:[%s188 + $0x2c] sm:$0xf]
        %v209 = vld [vmem:[%s188 + $0x30] sm:$0xff]
        %v210 = vld [vmem:[%s188 + $0x38] sm:$0xf]
        %v211 = vld [vmem:[%s188 + $0x3c] sm:$0xff]
        %v212 = vld [vmem:[%s188 + $0x44] sm:$0xf]
        %v213 = vld [vmem:[%s188 + $0x48] sm:$0xff]
        %v214 = vld [vmem:[%s188 + $0x50] sm:$0xf]
        %v215 = vld [vmem:[%s188 + $0x54] sm:$0xff]
        %v216 = vld [vmem:[%s188 + $0x5c] sm:$0xf]
        %v217 = vld [vmem:[%s188 + $0x60] sm:$0xff]
        %v218 = vld [vmem:[%s188 + $0x68] sm:$0xf]
        %v219 = vld [vmem:[%s188 + $0x6c] sm:$0xff]
        %v220 = vld [vmem:[%s188 + $0x74] sm:$0xf]
        %v221 = vld [vmem:[%s188 + $0x78] sm:$0xff]
        %v222 = vld [vmem:[%s188 + $0x80] sm:$0xf]
        %v223 = vld [vmem:[%s188 + $0x84] sm:$0xff]
        %v224 = vld [vmem:[%s188 + $0x8c] sm:$0xf]
        %v225 = vld [vmem:[%s188 + $0x90] sm:$0xff]
        %v226 = vld [vmem:[%s188 + $0x98] sm:$0xf]
        %v227 = vld [vmem:[%s188 + $0x9c] sm:$0xff]
        %v228 = vld [vmem:[%s188 + $0xa4] sm:$0xf]
        %v229 = vld [vmem:[%s188 + $0xa8] sm:$0xff]
        %v230 = vld [vmem:[%s188 + $0xb0] sm:$0xf]
        %v231 = vld [vmem:[%s188 + $0xb4] sm:$0xff]
        %v232 = vld [vmem:[%s188 + $0xbc] sm:$0xf]
        %v233 = vld [vmem:[%s188 + $0xc0] sm:$0xff]
        %v234 = vld [vmem:[%s188 + $0xc8] sm:$0xf]
        %v235 = vld [vmem:[%s188 + $0xcc] sm:$0xff]
        %v236 = vld [vmem:[%s188 + $0xd4] sm:$0xf]
        %v237 = vld [vmem:[%s188 + $0xd8] sm:$0xff]
        %v238 = vld [vmem:[%s188 + $0xe0] sm:$0xf]
        %v239 = vld [vmem:[%s188 + $0xe4] sm:$0xff]
        %v240 = vld [vmem:[%s188 + $0xec] sm:$0xf]
        %v241 = vld [vmem:[%s188 + $0xf0] sm:$0xff]
        %v242 = vld [vmem:[%s188 + $0xf8] sm:$0xf]
        %v243 = vld [vmem:[%s188 + $0xfc] sm:$0xff]
        %v244 = vld [vmem:[%s188 + $0x104] sm:$0xf]
        %v245 = vld [vmem:[%s188 + $0x108] sm:$0xff]
        %v246 = vld [vmem:[%s188 + $0x110] sm:$0xf]
        %v247 = vld [vmem:[%s188 + $0x114] sm:$0xff]
        %v248 = vld [vmem:[%s188 + $0x11c] sm:$0xf]
        %v249 = vld [vmem:[%s188 + $0x120] sm:$0xff]
        %v250 = vld [vmem:[%s188 + $0x128] sm:$0xf]
        %v251 = vld [vmem:[%s188 + $0x12c] sm:$0xff]
        %v252 = vld [vmem:[%s188 + $0x134] sm:$0xf]
        %v253 = vld [vmem:[%s188 + $0x138] sm:$0xff]
        %v254 = vld [vmem:[%s188 + $0x140] sm:$0xf]
        %v255 = vld [vmem:[%s188 + $0x144] sm:$0xff]
        %v256 = vld [vmem:[%s188 + $0x14c] sm:$0xf]
        %v257 = vld [vmem:[%s188 + $0x150] sm:$0xff]
        %v258 = vld [vmem:[%s188 + $0x158] sm:$0xf]
        %v259 = vld [vmem:[%s188 + $0x15c] sm:$0xff]
        %v260 = vld [vmem:[%s188 + $0x164] sm:$0xf]
        %v261 = vld [vmem:[%s1] sm:$0xf]
        %v262 = vld [vmem:[%s1 + $0x4] sm:$0xf]
        %v263 = vld [vmem:[%s1 + $0x8] sm:$0xf]
        %v264 = vld [vmem:[%s1 + $0xc] sm:$0xf]
        %v265 = vld [vmem:[%s1 + $0x10] sm:$0xf]
        %v266 = vld [vmem:[%s1 + $0x14] sm:$0xf]
        %v267 = vld [vmem:[%s1 + $0x18] sm:$0xf]
        %v268 = vld [vmem:[%s1 + $0x1c] sm:$0xf]
        %v269 = vld [vmem:[%s1 + $0x20] sm:$0xf]
        %v270 = vld [vmem:[%s1 + $0x24] sm:$0xf]
        %v271 = vld [vmem:[%s1 + $0x28] sm:$0xf]
        %v272 = vld [vmem:[%s1 + $0x2c] sm:$0xf]
        %v273 = vld [vmem:[%s1 + $0x30] sm:$0xf]
        %v274 = vld [vmem:[%s1 + $0x34] sm:$0xf]
        %v275 = vld [vmem:[%s1 + $0x38] sm:$0xf]
        %v276 = vld [vmem:[%s1 + $0x3c] sm:$0xf]
        %v277 = vld [vmem:[%s1 + $0x40] sm:$0xf]
        %v278 = vld [vmem:[%s1 + $0x44] sm:$0xf]
        %v279 = vld [vmem:[%s1 + $0x48] sm:$0xf]
        %v280 = vld [vmem:[%s1 + $0x4c] sm:$0xf]
        %v281 = vld [vmem:[%s1 + $0x50] sm:$0xf]
        %v282 = vld [vmem:[%s1 + $0x54] sm:$0xf]
        %v283 = vld [vmem:[%s1 + $0x58] sm:$0xf]
        %v284 = vld [vmem:[%s1 + $0x5c] sm:$0xf]
        %v285 = vld [vmem:[%s1 + $0x60] sm:$0xf]
        %v286 = vld [vmem:[%s1 + $0x64] sm:$0xf]
        %v287 = vld [vmem:[%s1 + $0x68] sm:$0xf]
        %v288 = vld [vmem:[%s1 + $0x6c] sm:$0xf]
        %v289 = vld [vmem:[%s1 + $0x70] sm:$0xf]
        %v290 = vld [vmem:[%s1 + $0x74] sm:$0xf]
        %v291 = vld [vmem:[%s1 + $0x78] sm:$0xf]
        %v292 = vld [vmem:[%s1 + $0x7c] sm:$0xf]
        %v293 = vld [vmem:[%s1 + $0x80] sm:$0xf]
        %v294 = vld [vmem:[%s1 + $0x84] sm:$0xf]
        %v295 = vld [vmem:[%s1 + $0x88] sm:$0xf]
        %v296 = vld [vmem:[%s1 + $0x8c] sm:$0xf]
        %v297 = vld [vmem:[%s1 + $0x90] sm:$0xf]
        %v298 = vld [vmem:[%s1 + $0x94] sm:$0xf]
        %v299 = vld [vmem:[%s1 + $0x98] sm:$0xf]
        %v300 = vld [vmem:[%s1 + $0x9c] sm:$0xf]
        %v301 = vld [vmem:[%s1 + $0xa0] sm:$0xf]
        %v302 = vld [vmem:[%s1 + $0xa4] sm:$0xf]
        %v303 = vld [vmem:[%s1 + $0xa8] sm:$0xf]
        %v304 = vld [vmem:[%s1 + $0xac] sm:$0xf]
        %v305 = vld [vmem:[%s1 + $0xb0] sm:$0xf]
        %v306 = vld [vmem:[%s1 + $0xb4] sm:$0xf]
        %v307 = vld [vmem:[%s1 + $0xb8] sm:$0xf]
        %v308 = vld [vmem:[%s1 + $0xbc] sm:$0xf]
        %v309 = vld [vmem:[%s2] sm:$0x1]
        %v311 = vlaneseq
        %v312 = vshrl.u32 %v311, 7
        %v313 = vsub.s32 0, %v312
        %v314 = vrot.slane %v309, %v313
        %v376 = vunpack.c.l.b16 %v201
        %v377 = vunpack.c.h.b16 %v201
        %v378 = vunpack.c.l.b16 %v202
        %v379 = vunpack.c.l.b16 %v203
        %v380 = vunpack.c.h.b16 %v203
        %v381 = vunpack.c.l.b16 %v204
        %v382 = vunpack.c.l.b16 %v205
        %v383 = vunpack.c.h.b16 %v205
        %v384 = vunpack.c.l.b16 %v206
        %v385 = vunpack.c.l.b16 %v207
        %v386 = vunpack.c.h.b16 %v207
        %v387 = vunpack.c.l.b16 %v208
        %v388 = vunpack.c.l.b16 %v209
        %v389 = vunpack.c.h.b16 %v209
        %v390 = vunpack.c.l.b16 %v210
        %v391 = vunpack.c.l.b16 %v211
        %v392 = vunpack.c.h.b16 %v211
        %v393 = vunpack.c.l.b16 %v212
        %v394 = vunpack.c.l.b16 %v213
        %v395 = vunpack.c.h.b16 %v213
        %v396 = vunpack.c.l.b16 %v214
        %v397 = vunpack.c.l.b16 %v215
        %v398 = vunpack.c.h.b16 %v215
        %v399 = vunpack.c.l.b16 %v216
        %v400 = vunpack.c.l.b16 %v217
        %v401 = vunpack.c.h.b16 %v217
        %v402 = vunpack.c.l.b16 %v218
        %v403 = vunpack.c.l.b16 %v219
        %v404 = vunpack.c.h.b16 %v219
        %v405 = vunpack.c.l.b16 %v220
        %v406 = vunpack.c.l.b16 %v221
        %v407 = vunpack.c.h.b16 %v221
        %v408 = vunpack.c.l.b16 %v222
        %v409 = vunpack.c.l.b16 %v223
        %v410 = vunpack.c.h.b16 %v223
        %v411 = vunpack.c.l.b16 %v224
        %v412 = vunpack.c.l.b16 %v225
        %v413 = vunpack.c.h.b16 %v225
        %v414 = vunpack.c.l.b16 %v226
        %v415 = vunpack.c.l.b16 %v227
        %v416 = vunpack.c.h.b16 %v227
        %v417 = vunpack.c.l.b16 %v228
        %v418 = vunpack.c.l.b16 %v229
        %v419 = vunpack.c.h.b16 %v229
        %v420 = vunpack.c.l.b16 %v230
        %v421 = vunpack.c.l.b16 %v231
        %v422 = vunpack.c.h.b16 %v231
        %v423 = vunpack.c.l.b16 %v232
        %v424 = vunpack.c.l.b16 %v233
        %v425 = vunpack.c.h.b16 %v233
        %v426 = vunpack.c.l.b16 %v234
        %v427 = vunpack.c.l.b16 %v235
        %v428 = vunpack.c.h.b16 %v235
        %v429 = vunpack.c.l.b16 %v236
        %v430 = vunpack.c.l.b16 %v237
        %v431 = vunpack.c.h.b16 %v237
        %v432 = vunpack.c.l.b16 %v238
        %v433 = vunpack.c.l.b16 %v239
        %v434 = vunpack.c.h.b16 %v239
        %v435 = vunpack.c.l.b16 %v240
        %v436 = vunpack.c.l.b16 %v241
        %v437 = vunpack.c.h.b16 %v241
        %v438 = vunpack.c.l.b16 %v242
        %v439 = vunpack.c.l.b16 %v243
        %v440 = vunpack.c.h.b16 %v243
        %v441 = vunpack.c.l.b16 %v244
        %v442 = vunpack.c.l.b16 %v245
        %v443 = vunpack.c.h.b16 %v245
        %v444 = vunpack.c.l.b16 %v246
        %v445 = vunpack.c.l.b16 %v247
        %v446 = vunpack.c.h.b16 %v247
        %v447 = vunpack.c.l.b16 %v248
        %v448 = vunpack.c.l.b16 %v249
        %v449 = vunpack.c.h.b16 %v249
        %v450 = vunpack.c.l.b16 %v250
        %v451 = vunpack.c.l.b16 %v251
        %v452 = vunpack.c.h.b16 %v251
        %v453 = vunpack.c.l.b16 %v252
        %v454 = vunpack.c.l.b16 %v253
        %v455 = vunpack.c.h.b16 %v253
        %v456 = vunpack.c.l.b16 %v254
        %v457 = vunpack.c.l.b16 %v255
        %v458 = vunpack.c.h.b16 %v255
        %v459 = vunpack.c.l.b16 %v256
        %v460 = vunpack.c.l.b16 %v257
        %v461 = vunpack.c.h.b16 %v257
        %v462 = vunpack.c.l.b16 %v258
        %v463 = vunpack.c.l.b16 %v259
        %v464 = vunpack.c.h.b16 %v259
        %v465 = vunpack.c.l.b16 %v260
        %v466 = vpack.c.b16 %v379, %v376
        %v467 = vpack.c.b16 %v380, %v377
        %v468 = vpack.c.b16 %v381, %v378
        %v469 = vpack.c.b16 %v385, %v382
        %v470 = vpack.c.b16 %v386, %v383
        %v471 = vpack.c.b16 %v387, %v384
        %v472 = vpack.c.b16 %v391, %v388
        %v473 = vpack.c.b16 %v392, %v389
        %v474 = vpack.c.b16 %v393, %v390
        %v475 = vpack.c.b16 %v397, %v394
        %v476 = vpack.c.b16 %v398, %v395
        %v477 = vpack.c.b16 %v399, %v396
        %v478 = vpack.c.b16 %v403, %v400
        %v479 = vpack.c.b16 %v404, %v401
        %v480 = vpack.c.b16 %v405, %v402
        %v481 = vpack.c.b16 %v409, %v406
        %v482 = vpack.c.b16 %v410, %v407
        %v483 = vpack.c.b16 %v411, %v408
        %v484 = vpack.c.b16 %v415, %v412
        %v485 = vpack.c.b16 %v416, %v413
        %v486 = vpack.c.b16 %v417, %v414
        %v487 = vpack.c.b16 %v421, %v418
        %v488 = vpack.c.b16 %v422, %v419
        %v489 = vpack.c.b16 %v423, %v420
        %v490 = vpack.c.b16 %v427, %v424
        %v491 = vpack.c.b16 %v428, %v425
        %v492 = vpack.c.b16 %v429, %v426
        %v493 = vpack.c.b16 %v433, %v430
        %v494 = vpack.c.b16 %v434, %v431
        %v495 = vpack.c.b16 %v435, %v432
        %v496 = vpack.c.b16 %v439, %v436
        %v497 = vpack.c.b16 %v440, %v437
        %v498 = vpack.c.b16 %v441, %v438
        %v499 = vpack.c.b16 %v445, %v442
        %v500 = vpack.c.b16 %v446, %v443
        %v501 = vpack.c.b16 %v447, %v444
        %v502 = vpack.c.b16 %v451, %v448
        %v503 = vpack.c.b16 %v452, %v449
        %v504 = vpack.c.b16 %v453, %v450
        %v505 = vpack.c.b16 %v457, %v454
        %v506 = vpack.c.b16 %v458, %v455
        %v507 = vpack.c.b16 %v459, %v456
        %v508 = vpack.c.b16 %v463, %v460
        %v509 = vpack.c.b16 %v464, %v461
        %v510 = vpack.c.b16 %v465, %v462
        %v604 = vunpack.c.l.b16 %v261
        %v605 = vunpack.c.l.b16 %v262
        %v606 = vunpack.c.l.b16 %v263
        %v607 = vunpack.c.l.b16 %v264
        %v608 = vunpack.c.l.b16 %v265
        %v609 = vunpack.c.l.b16 %v266
        %v610 = vunpack.c.l.b16 %v267
        %v611 = vunpack.c.l.b16 %v268
        %v612 = vunpack.c.l.b16 %v269
        %v613 = vunpack.c.l.b16 %v270
        %v614 = vunpack.c.l.b16 %v271
        %v615 = vunpack.c.l.b16 %v272
        %v616 = vunpack.c.l.b16 %v273
        %v617 = vunpack.c.l.b16 %v274
        %v618 = vunpack.c.l.b16 %v275
        %v619 = vunpack.c.l.b16 %v276
        %v620 = vunpack.c.l.b16 %v277
        %v621 = vunpack.c.l.b16 %v278
        %v622 = vunpack.c.l.b16 %v279
        %v623 = vunpack.c.l.b16 %v280
        %v624 = vunpack.c.l.b16 %v281
        %v625 = vunpack.c.l.b16 %v282
        %v626 = vunpack.c.l.b16 %v283
        %v627 = vunpack.c.l.b16 %v284
        %v628 = vunpack.c.l.b16 %v285
        %v629 = vunpack.c.l.b16 %v286
        %v630 = vunpack.c.l.b16 %v287
        %v631 = vunpack.c.l.b16 %v288
        %v632 = vunpack.c.l.b16 %v289
        %v633 = vunpack.c.l.b16 %v290
        %v634 = vunpack.c.l.b16 %v291
        %v635 = vunpack.c.l.b16 %v292
        %v636 = vunpack.c.l.b16 %v293
        %v637 = vunpack.c.l.b16 %v294
        %v638 = vunpack.c.l.b16 %v295
        %v639 = vunpack.c.l.b16 %v296
        %v640 = vunpack.c.l.b16 %v297
        %v641 = vunpack.c.l.b16 %v298
        %v642 = vunpack.c.l.b16 %v299
        %v643 = vunpack.c.l.b16 %v300
        %v644 = vunpack.c.l.b16 %v301
        %v645 = vunpack.c.l.b16 %v302
        %v646 = vunpack.c.l.b16 %v303
        %v647 = vunpack.c.l.b16 %v304
        %v648 = vunpack.c.l.b16 %v305
        %v649 = vunpack.c.l.b16 %v306
        %v650 = vunpack.c.l.b16 %v307
        %v651 = vunpack.c.l.b16 %v308
        %v652 = vpack.c.b16 %v605, %v604
        %v653 = vpack.c.b16 %v607, %v606
        %v654 = vpack.c.b16 %v609, %v608
        %v655 = vpack.c.b16 %v611, %v610
        %v656 = vpack.c.b16 %v613, %v612
        %v657 = vpack.c.b16 %v615, %v614
        %v658 = vpack.c.b16 %v617, %v616
        %v659 = vpack.c.b16 %v619, %v618
        %v660 = vpack.c.b16 %v621, %v620
        %v661 = vpack.c.b16 %v623, %v622
        %v662 = vpack.c.b16 %v625, %v624
        %v663 = vpack.c.b16 %v627, %v626
        %v664 = vpack.c.b16 %v629, %v628
        %v665 = vpack.c.b16 %v631, %v630
        %v666 = vpack.c.b16 %v633, %v632
        %v667 = vpack.c.b16 %v635, %v634
        %v668 = vpack.c.b16 %v637, %v636
        %v669 = vpack.c.b16 %v639, %v638
        %v670 = vpack.c.b16 %v641, %v640
        %v671 = vpack.c.b16 %v643, %v642
        %v672 = vpack.c.b16 %v645, %v644
        %v673 = vpack.c.b16 %v647, %v646
        %v674 = vpack.c.b16 %v649, %v648
        %v675 = vpack.c.b16 %v651, %v650
        %700 = vmatprep.subr.bf16.mxu0 0
        %701 = vmatpush1.bf16.msra.mxu0 %v652
        %702 = vmatprep.subr.bf16.mxu0 0
        %703 = vmatpush1.bf16.msra.mxu0 %v653
        %704 = vmatprep.subr.bf16.mxu0 0
        %705 = vmatpush1.bf16.msra.mxu0 %v654
        %706 = vmatprep.subr.bf16.mxu0 0
        %707 = vmatpush1.bf16.msra.mxu0 %v655
        %708 = vmatprep.subr.bf16.mxu0 0
        %709 = vmatpush1.bf16.msra.mxu0 %v656
        %710 = vmatprep.subr.bf16.mxu0 0
        %711 = vmatpush1.bf16.msra.mxu0 %v657
        %712 = vmatprep.subr.bf16.mxu0 0
        %713 = vmatpush1.bf16.msra.mxu0 %v658
        %714 = vmatprep.subr.bf16.mxu0 0
        %715 = vmatpush1.bf16.msra.mxu0 %v659
        %716 = vmatprep.subr.bf16.mxu0 0
        %717 = vmatpush1.bf16.msra.mxu0 %v660
        %718 = vmatprep.subr.bf16.mxu0 0
        %719 = vmatpush1.bf16.msra.mxu0 %v661
        %720 = vmatprep.subr.bf16.mxu0 0
        %721 = vmatpush1.bf16.msra.mxu0 %v662
        %722 = vmatprep.subr.bf16.mxu0 0
        %723 = vmatpush1.bf16.msra.mxu0 %v663
        %724 = vmatprep.subr.bf16.mxu0 0
        %725 = vmatpush1.bf16.msra.mxu0 %v664
        %726 = vmatprep.subr.bf16.mxu0 0
        %727 = vmatpush1.bf16.msra.mxu0 %v665
        %728 = vmatprep.subr.bf16.mxu0 0
        %729 = vmatpush1.bf16.msra.mxu0 %v666
        %730 = vmatprep.subr.bf16.mxu0 0
        %731 = vmatpush1.bf16.msra.mxu0 %v667
        %732 = vmatprep.mubr.bf16.mxu0 %v467
        %733 = vmatmul.mubr.bf16.gmra.mrb[0].mxu0 %v466
        %v734 = vpop.f32.mrb[0].mxu0
        %v735 = vadd.f32 %v314, %v734
        %v736 = vpop.f32.mrb[0].mxu0
        %v737 = vpop.f32.mrb[0].mxu0
        %v738 = vadd.f32 %v314, %v737
        %v739 = vpop.f32.mrb[0].mxu0
        %740 = vmatprep.mubr.bf16.mxu0 %v470
        %741 = vmatmul.mubr.bf16.gmra.mrb[0].mxu0 %v469
        %v742 = vpop.f32.mrb[0].mxu0
        %v743 = vadd.f32 %v314, %v742
        %v744 = vpop.f32.mrb[0].mxu0
        %v745 = vpop.f32.mrb[0].mxu0
        %v746 = vadd.f32 %v314, %v745
        %v747 = vpop.f32.mrb[0].mxu0
        %748 = vmatprep.mubr.bf16.mxu0 %v473
        %749 = vmatmul.mubr.bf16.gmra.mrb[0].mxu0 %v472
        %v750 = vpop.f32.mrb[0].mxu0
        %v751 = vadd.f32 %v314, %v750
        %v752 = vpop.f32.mrb[0].mxu0
        %v753 = vpop.f32.mrb[0].mxu0
        %v754 = vadd.f32 %v314, %v753
        %v755 = vpop.f32.mrb[0].mxu0
        %756 = vmatprep.mubr.bf16.mxu0 %v476
        %757 = vmatmul.mubr.bf16.gmra.mrb[0].mxu0 %v475
        %v758 = vpop.f32.mrb[0].mxu0
        %v759 = vadd.f32 %v314, %v758
        %v760 = vpop.f32.mrb[0].mxu0
        %v761 = vpop.f32.mrb[0].mxu0
        %v762 = vadd.f32 %v314, %v761
        %v763 = vpop.f32.mrb[0].mxu0
        %764 = vmatprep.mubr.bf16.mxu0 %v479
        %765 = vmatmul.mubr.bf16.gmra.mrb[0].mxu0 %v478
        %v766 = vpop.f32.mrb[0].mxu0
        %v767 = vadd.f32 %v314, %v766
        %v768 = vpop.f32.mrb[0].mxu0
        %v769 = vpop.f32.mrb[0].mxu0
        %v770 = vadd.f32 %v314, %v769
        %v771 = vpop.f32.mrb[0].mxu0
        %772 = vmatprep.mubr.bf16.mxu0 %v482
        %773 = vmatmul.mubr.bf16.gmra.mrb[0].mxu0 %v481
        %v774 = vpop.f32.mrb[0].mxu0
        %v775 = vadd.f32 %v314, %v774
        %v776 = vpop.f32.mrb[0].mxu0
        %v777 = vpop.f32.mrb[0].mxu0
        %v778 = vadd.f32 %v314, %v777
        %v779 = vpop.f32.mrb[0].mxu0
        %780 = vmatprep.mubr.bf16.mxu0 %v485
        %781 = vmatmul.mubr.bf16.gmra.mrb[0].mxu0 %v484
        %v782 = vpop.f32.mrb[0].mxu0
        %v783 = vadd.f32 %v314, %v782
        %v784 = vpop.f32.mrb[0].mxu0
        %v785 = vpop.f32.mrb[0].mxu0
        %v786 = vadd.f32 %v314, %v785
        %v787 = vpop.f32.mrb[0].mxu0
        %788 = vmatprep.mubr.bf16.mxu0 %v488
        %789 = vmatmul.mubr.bf16.gmra.mrb[0].mxu0 %v487
        %v790 = vpop.f32.mrb[0].mxu0
        %v791 = vadd.f32 %v314, %v790
        %v792 = vpop.f32.mrb[0].mxu0
        %v793 = vpop.f32.mrb[0].mxu0
        %v794 = vadd.f32 %v314, %v793
        %v795 = vpop.f32.mrb[0].mxu0
        %796 = vmatprep.mubr.bf16.mxu0 %v491
        %797 = vmatmul.mubr.bf16.gmra.mrb[0].mxu0 %v490
        %v798 = vpop.f32.mrb[0].mxu0
        %v799 = vadd.f32 %v314, %v798
        %v800 = vpop.f32.mrb[0].mxu0
        %v801 = vpop.f32.mrb[0].mxu0
        %v802 = vadd.f32 %v314, %v801
        %v803 = vpop.f32.mrb[0].mxu0
        %804 = vmatprep.mubr.bf16.mxu0 %v494
        %805 = vmatmul.mubr.bf16.gmra.mrb[0].mxu0 %v493
        %v806 = vpop.f32.mrb[0].mxu0
        %v807 = vadd.f32 %v314, %v806
        %v808 = vpop.f32.mrb[0].mxu0
        %v809 = vpop.f32.mrb[0].mxu0
        %v810 = vadd.f32 %v314, %v809
        %v811 = vpop.f32.mrb[0].mxu0
        %812 = vmatprep.mubr.bf16.mxu0 %v497
        %813 = vmatmul.mubr.bf16.gmra.mrb[0].mxu0 %v496
        %v814 = vpop.f32.mrb[0].mxu0
        %v815 = vadd.f32 %v314, %v814
        %v816 = vpop.f32.mrb[0].mxu0
        %v817 = vpop.f32.mrb[0].mxu0
        %v818 = vadd.f32 %v314, %v817
        %v819 = vpop.f32.mrb[0].mxu0
        %820 = vmatprep.mubr.bf16.mxu0 %v500
        %821 = vmatmul.mubr.bf16.gmra.mrb[0].mxu0 %v499
        %v822 = vpop.f32.mrb[0].mxu0
        %v823 = vadd.f32 %v314, %v822
        %v824 = vpop.f32.mrb[0].mxu0
        %v825 = vpop.f32.mrb[0].mxu0
        %v826 = vadd.f32 %v314, %v825
        %v827 = vpop.f32.mrb[0].mxu0
        %828 = vmatprep.mubr.bf16.mxu0 %v503
        %829 = vmatmul.mubr.bf16.gmra.mrb[0].mxu0 %v502
        %v830 = vpop.f32.mrb[0].mxu0
        %v831 = vadd.f32 %v314, %v830
        %v832 = vpop.f32.mrb[0].mxu0
        %v833 = vpop.f32.mrb[0].mxu0
        %v834 = vadd.f32 %v314, %v833
        %v835 = vpop.f32.mrb[0].mxu0
        %836 = vmatprep.mubr.bf16.mxu0 %v506
        %837 = vmatmul.mubr.bf16.gmra.mrb[0].mxu0 %v505
        %v838 = vpop.f32.mrb[0].mxu0
        %v839 = vadd.f32 %v314, %v838
        %v840 = vpop.f32.mrb[0].mxu0
        %v841 = vpop.f32.mrb[0].mxu0
        %v842 = vadd.f32 %v314, %v841
        %v843 = vpop.f32.mrb[0].mxu0
        %844 = vmatprep.mubr.bf16.mxu0 %v509
        %845 = vmatmul.mubr.bf16.gmra.mrb[0].mxu0 %v508
        %v846 = vpop.f32.mrb[0].mxu0
        %v847 = vadd.f32 %v314, %v846
        %v848 = vpop.f32.mrb[0].mxu0
        %v849 = vpop.f32.mrb[0].mxu0
        %v850 = vadd.f32 %v314, %v849
        %v851 = vpop.f32.mrb[0].mxu0
        %852 = vdwg.mxu0
        %853 = vmatprep.subr.bf16.mxu0 0
        %854 = vmatpush1.bf16.msra.mxu0 %v668
        %855 = vmatprep.subr.bf16.mxu0 0
        %856 = vmatpush1.bf16.msra.mxu0 %v669
        %857 = vmatprep.subr.bf16.mxu0 0
        %858 = vmatpush1.bf16.msra.mxu0 %v670
        %859 = vmatprep.subr.bf16.mxu0 0
        %860 = vmatpush1.bf16.msra.mxu0 %v671
        %861 = vmatprep.subr.bf16.mxu0 0
        %862 = vmatpush1.bf16.msra.mxu0 %v672
        %863 = vmatprep.subr.bf16.mxu0 0
        %864 = vmatpush1.bf16.msra.mxu0 %v673
        %865 = vmatprep.subr.bf16.mxu0 0
        %866 = vmatpush1.bf16.msra.mxu0 %v674
        %867 = vmatprep.subr.bf16.mxu0 0
        %868 = vmatpush1.bf16.msra.mxu0 %v675
        %869 = vmatprep.subr.bf16.mxu0 0
        %870 = vmatpush1.bf16.msra.mxu0 0
        %871 = vmatprep.subr.bf16.mxu0 0
        %872 = vmatpush1.bf16.msra.mxu0 0
        %873 = vmatprep.subr.bf16.mxu0 0
        %874 = vmatpush1.bf16.msra.mxu0 0
        %875 = vmatprep.subr.bf16.mxu0 0
        %876 = vmatpush1.bf16.msra.mxu0 0
        %877 = vmatprep.subr.bf16.mxu0 0
        %878 = vmatpush1.bf16.msra.mxu0 0
        %879 = vmatprep.subr.bf16.mxu0 0
        %880 = vmatpush1.bf16.msra.mxu0 0
        %881 = vmatprep.subr.bf16.mxu0 0
        %882 = vmatpush1.bf16.msra.mxu0 0
        %883 = vmatprep.subr.bf16.mxu0 0
        %884 = vmatpush1.bf16.msra.mxu0 0
        %885 = vmatprep.mubr.bf16.mxu0 0
        %886 = vmatmul.mubr.bf16.gmra.mrb[0].mxu0 %v468
        %v887 = vpop.f32.mrb[0].mxu0
        %v888 = vadd.f32 %v735, %v887
        %v889 = vpop.f32.mrb[0].mxu0
        %v890 = vpop.f32.mrb[0].mxu0
        %v891 = vadd.f32 %v738, %v890
        %v892 = vpop.f32.mrb[0].mxu0
        %893 = vmatprep.mubr.bf16.mxu0 0
        %894 = vmatmul.mubr.bf16.gmra.mrb[0].mxu0 %v471
        %v895 = vpop.f32.mrb[0].mxu0
        %v896 = vadd.f32 %v743, %v895
        %v897 = vpop.f32.mrb[0].mxu0
        %v898 = vpop.f32.mrb[0].mxu0
        %v899 = vadd.f32 %v746, %v898
        %v900 = vpop.f32.mrb[0].mxu0
        %901 = vmatprep.mubr.bf16.mxu0 0
        %902 = vmatmul.mubr.bf16.gmra.mrb[0].mxu0 %v474
        %v903 = vpop.f32.mrb[0].mxu0
        %v904 = vadd.f32 %v751, %v903
        %v905 = vpop.f32.mrb[0].mxu0
        %v906 = vpop.f32.mrb[0].mxu0
        %v907 = vadd.f32 %v754, %v906
        %v908 = vpop.f32.mrb[0].mxu0
        %909 = vmatprep.mubr.bf16.mxu0 0
        %910 = vmatmul.mubr.bf16.gmra.mrb[0].mxu0 %v477
        %v911 = vpop.f32.mrb[0].mxu0
        %v912 = vadd.f32 %v759, %v911
        %v913 = vpop.f32.mrb[0].mxu0
        %v914 = vpop.f32.mrb[0].mxu0
        %v915 = vadd.f32 %v762, %v914
        %v916 = vpop.f32.mrb[0].mxu0
        %917 = vmatprep.mubr.bf16.mxu0 0
        %918 = vmatmul.mubr.bf16.gmra.mrb[0].mxu0 %v480
        %v919 = vpop.f32.mrb[0].mxu0
        %v920 = vadd.f32 %v767, %v919
        %v921 = vpop.f32.mrb[0].mxu0
        %v922 = vpop.f32.mrb[0].mxu0
        %v923 = vadd.f32 %v770, %v922
        %v924 = vpop.f32.mrb[0].mxu0
        %925 = vmatprep.mubr.bf16.mxu0 0
        %926 = vmatmul.mubr.bf16.gmra.mrb[0].mxu0 %v483
        %v927 = vpop.f32.mrb[0].mxu0
        %v928 = vadd.f32 %v775, %v927
        %v929 = vpop.f32.mrb[0].mxu0
        %v930 = vpop.f32.mrb[0].mxu0
        %v931 = vadd.f32 %v778, %v930
        %v932 = vpop.f32.mrb[0].mxu0
        %933 = vmatprep.mubr.bf16.mxu0 0
        %934 = vmatmul.mubr.bf16.gmra.mrb[0].mxu0 %v486
        %v935 = vpop.f32.mrb[0].mxu0
        %v936 = vadd.f32 %v783, %v935
        %v937 = vpop.f32.mrb[0].mxu0
        %v938 = vpop.f32.mrb[0].mxu0
        %v939 = vadd.f32 %v786, %v938
        %v940 = vpop.f32.mrb[0].mxu0
        %941 = vmatprep.mubr.bf16.mxu0 0
        %942 = vmatmul.mubr.bf16.gmra.mrb[0].mxu0 %v489
        %v943 = vpop.f32.mrb[0].mxu0
        %v944 = vadd.f32 %v791, %v943
        %v945 = vpop.f32.mrb[0].mxu0
        %v946 = vpop.f32.mrb[0].mxu0
        %v947 = vadd.f32 %v794, %v946
        %v948 = vpop.f32.mrb[0].mxu0
        %949 = vmatprep.mubr.bf16.mxu0 0
        %950 = vmatmul.mubr.bf16.gmra.mrb[0].mxu0 %v492
        %v951 = vpop.f32.mrb[0].mxu0
        %v952 = vadd.f32 %v799, %v951
        %v953 = vpop.f32.mrb[0].mxu0
        %v954 = vpop.f32.mrb[0].mxu0
        %v955 = vadd.f32 %v802, %v954
        %v956 = vpop.f32.mrb[0].mxu0
        %957 = vmatprep.mubr.bf16.mxu0 0
        %958 = vmatmul.mubr.bf16.gmra.mrb[0].mxu0 %v495
        %v959 = vpop.f32.mrb[0].mxu0
        %v960 = vadd.f32 %v807, %v959
        %v961 = vpop.f32.mrb[0].mxu0
        %v962 = vpop.f32.mrb[0].mxu0
        %v963 = vadd.f32 %v810, %v962
        %v964 = vpop.f32.mrb[0].mxu0
        %965 = vmatprep.mubr.bf16.mxu0 0
        %966 = vmatmul.mubr.bf16.gmra.mrb[0].mxu0 %v498
        %v967 = vpop.f32.mrb[0].mxu0
        %v968 = vadd.f32 %v815, %v967
        %v969 = vpop.f32.mrb[0].mxu0
        %v970 = vpop.f32.mrb[0].mxu0
        %v971 = vadd.f32 %v818, %v970
        %v972 = vpop.f32.mrb[0].mxu0
        %973 = vmatprep.mubr.bf16.mxu0 0
        %974 = vmatmul.mubr.bf16.gmra.mrb[0].mxu0 %v501
        %v975 = vpop.f32.mrb[0].mxu0
        %v976 = vadd.f32 %v823, %v975
        %v977 = vpop.f32.mrb[0].mxu0
        %v978 = vpop.f32.mrb[0].mxu0
        %v979 = vadd.f32 %v826, %v978
        %v980 = vpop.f32.mrb[0].mxu0
        %981 = vmatprep.mubr.bf16.mxu0 0
        %982 = vmatmul.mubr.bf16.gmra.mrb[0].mxu0 %v504
        %v983 = vpop.f32.mrb[0].mxu0
        %v984 = vadd.f32 %v831, %v983
        %v985 = vpop.f32.mrb[0].mxu0
        %v986 = vpop.f32.mrb[0].mxu0
        %v987 = vadd.f32 %v834, %v986
        %v988 = vpop.f32.mrb[0].mxu0
        %989 = vmatprep.mubr.bf16.mxu0 0
        %990 = vmatmul.mubr.bf16.gmra.mrb[0].mxu0 %v507
        %v991 = vpop.f32.mrb[0].mxu0
        %v992 = vadd.f32 %v839, %v991
        %v993 = vpop.f32.mrb[0].mxu0
        %v994 = vpop.f32.mrb[0].mxu0
        %v995 = vadd.f32 %v842, %v994
        %v996 = vpop.f32.mrb[0].mxu0
        %997 = vmatprep.mubr.bf16.mxu0 0
        %998 = vmatmul.mubr.bf16.gmra.mrb[0].mxu0 %v510
        %v999 = vpop.f32.mrb[0].mxu0
        %v1000 = vadd.f32 %v847, %v999
        %v1001 = vpop.f32.mrb[0].mxu0
        %v1002 = vpop.f32.mrb[0].mxu0
        %v1003 = vadd.f32 %v850, %v1002
        %v1004 = vpop.f32.mrb[0].mxu0
        %1005 = vdwg.mxu0
        %v1006 = vmax.f32 %v888, 0.0
        %v1007 = vmax.f32 %v891, 0.0
        %v1008 = vmax.f32 %v896, 0.0
        %v1009 = vmax.f32 %v899, 0.0
        %v1010 = vmax.f32 %v904, 0.0
        %v1011 = vmax.f32 %v907, 0.0
        %v1012 = vmax.f32 %v912, 0.0
        %v1013 = vmax.f32 %v915, 0.0
        %v1014 = vmax.f32 %v920, 0.0
        %v1015 = vmax.f32 %v923, 0.0
        %v1016 = vmax.f32 %v928, 0.0
        %v1017 = vmax.f32 %v931, 0.0
        %v1018 = vmax.f32 %v936, 0.0
        %v1019 = vmax.f32 %v939, 0.0
        %v1020 = vmax.f32 %v944, 0.0
        %v1021 = vmax.f32 %v947, 0.0
        %v1022 = vmax.f32 %v952, 0.0
        %v1023 = vmax.f32 %v955, 0.0
        %v1024 = vmax.f32 %v960, 0.0
        %v1025 = vmax.f32 %v963, 0.0
        %v1026 = vmax.f32 %v968, 0.0
        %v1027 = vmax.f32 %v971, 0.0
        %v1028 = vmax.f32 %v976, 0.0
        %v1029 = vmax.f32 %v979, 0.0
        %v1030 = vmax.f32 %v984, 0.0
        %v1031 = vmax.f32 %v987, 0.0
        %v1032 = vmax.f32 %v992, 0.0
        %v1033 = vmax.f32 %v995, 0.0
        %v1034 = vmax.f32 %v1000, 0.0
        %v1035 = vmax.f32 %v1003, 0.0
        %1036 = vst [vmem:[%s177] sm:$0xff] %v1006
        %1037 = vst [vmem:[%s177 + $0x8] sm:$0xff] %v1007
        %1038 = vst [vmem:[%s177 + $0x10] sm:$0xff] %v1008
        %1039 = vst [vmem:[%s177 + $0x18] sm:$0xff] %v1009
        %1040 = vst [vmem:[%s177 + $0x20] sm:$0xff] %v1010
        %1041 = vst [vmem:[%s177 + $0x28] sm:$0xff] %v1011
        %1042 = vst [vmem:[%s177 + $0x30] sm:$0xff] %v1012
        %1043 = vst [vmem:[%s177 + $0x38] sm:$0xff] %v1013
        %1044 = vst [vmem:[%s177 + $0x40] sm:$0xff] %v1014
        %1045 = vst [vmem:[%s177 + $0x48] sm:$0xff] %v1015
        %1046 = vst [vmem:[%s177 + $0x50] sm:$0xff] %v1016
        %1047 = vst [vmem:[%s177 + $0x58] sm:$0xff] %v1017
        %1048 = vst [vmem:[%s177 + $0x60] sm:$0xff] %v1018
        %1049 = vst [vmem:[%s177 + $0x68] sm:$0xff] %v1019
        %1050 = vst [vmem:[%s177 + $0x70] sm:$0xff] %v1020
        %1051 = vst [vmem:[%s177 + $0x78] sm:$0xff] %v1021
        %1052 = vst [vmem:[%s177 + $0x80] sm:$0xff] %v1022
        %1053 = vst [vmem:[%s177 + $0x88] sm:$0xff] %v1023
        %1054 = vst [vmem:[%s177 + $0x90] sm:$0xff] %v1024
        %1055 = vst [vmem:[%s177 + $0x98] sm:$0xff] %v1025
        %1056 = vst [vmem:[%s177 + $0xa0] sm:$0xff] %v1026
        %1057 = vst [vmem:[%s177 + $0xa8] sm:$0xff] %v1027
        %1058 = vst [vmem:[%s177 + $0xb0] sm:$0xff] %v1028
        %1059 = vst [vmem:[%s177 + $0xb8] sm:$0xff] %v1029
        %1060 = vst [vmem:[%s177 + $0xc0] sm:$0xff] %v1030
        %1061 = vst [vmem:[%s177 + $0xc8] sm:$0xff] %v1031
        %1062 = vst [vmem:[%s177 + $0xd0] sm:$0xff] %v1032
        %1063 = vst [vmem:[%s177 + $0xd8] sm:$0xff] %v1033
        %1064 = vst [vmem:[%s177 + $0xe0] sm:$0xff] %v1034
        %1065 = vst [vmem:[%s177 + $0xe8] sm:$0xff] %v1035
        %s1066 = sand.u32 %s90, 1
        %s1067 = sand.u32 %s90, 1
        %s1068 = smul.addr %s1067, 240
        %s1069 = scalar_lea.vmem [#allocation2], %s1068
        // Predicated region
        $region33: #{alexnet_client_forward.4} parent=31 // pred_check
          %p1070 = pneg %p100
        $region34: #{alexnet_client_forward.4} parent=31 // pred_check_branch
          %1072 = sbr.rel (%p1070) target = $region36
        $region35: #{alexnet_client_forward.4} parent=31 // pred_region
          %s1073 = smul.u32 30, %s14
          %s1074 = ssub.s32 57, %s1073
          %p1075 = scmp.lt.s32.totalorder %s1074, 30
          %s1076 = scalar_select %p1075, %s1074, 30
          %s1077 = smul.u32 128, %s1076
          %p1078 = scmp.ne.s32.totalorder 0, %s1077
          %s1079 = smul.addr %s1073, 8
          %s1080 = scalar_lea.vmem %s3, %s1079
          // Predicated region
          $region37: #{alexnet_client_forward.4} parent=35 // pred_check
            %p1081 = pneg %p1078
          $region38: #{alexnet_client_forward.4} parent=35 // pred_check_branch
            %1083 = sbr.rel (%p1081) target = $region40
          $region39: #{alexnet_client_forward.4} parent=35 // pred_region
            // Predicated region
            $region41: #{alexnet_client_forward.4} parent=39 // pred_check
              _
            $region42: #{alexnet_client_forward.4} parent=39 // pred_check_branch
              %1085 = sbr.rel (0) target = $region44
            $region43: #{alexnet_client_forward.4} parent=39 // pred_region
              // Predicated region
              $region63: #{alexnet_client_forward.4} parent=43 // pred_check
                _
              $region64: #{alexnet_client_forward.4} parent=43 // pred_check_branch
                %1193 = sbr.rel (0) target = $region66
              $region65: #{alexnet_client_forward.4} parent=43 // pred_region
                %s1194 = sdiv.u32.pop %s1076, 30
                %s1195 = srem.u32.pop %s1076, 30
                // While loop
                $region67: #{alexnet_client_forward.4} parent=65 // loop_pre_header
                  _
                $region68: #{alexnet_client_forward.4} parent=65 // loop_header
                  %s1197 = sphi 0, %s1199
                  %p1198 = scmp.ge.s32.totalorder %s1197, %s1194
                  %s1202 = sphi 0, %s1267
                  %s1203 = sphi %s1069, %s1270
                  %s1204 = sphi %s1080, %s1271
                $region69: #{alexnet_client_forward.4} parent=65 // loop_header_branch
                  %1201 = sbr.rel (%p1198) target = $region73
                $region70: #{alexnet_client_forward.4} parent=65 // loop_body
                  %v1205 = vld [vmem:[%s1203] sm:$0xff]
                  %1206 = vst [vmem:[%s1204] sm:$0xff] %v1205
                  %v1207 = vld [vmem:[%s1203 + $0x8] sm:$0xff]
                  %1208 = vst [vmem:[%s1204 + $0x8] sm:$0xff] %v1207
                  %v1209 = vld [vmem:[%s1203 + $0x10] sm:$0xff]
                  %1210 = vst [vmem:[%s1204 + $0x10] sm:$0xff] %v1209
                  %v1211 = vld [vmem:[%s1203 + $0x18] sm:$0xff]
                  %1212 = vst [vmem:[%s1204 + $0x18] sm:$0xff] %v1211
                  %v1213 = vld [vmem:[%s1203 + $0x20] sm:$0xff]
                  %1214 = vst [vmem:[%s1204 + $0x20] sm:$0xff] %v1213
                  %v1215 = vld [vmem:[%s1203 + $0x28] sm:$0xff]
                  %1216 = vst [vmem:[%s1204 + $0x28] sm:$0xff] %v1215
                  %v1217 = vld [vmem:[%s1203 + $0x30] sm:$0xff]
                  %1218 = vst [vmem:[%s1204 + $0x30] sm:$0xff] %v1217
                  %v1219 = vld [vmem:[%s1203 + $0x38] sm:$0xff]
                  %1220 = vst [vmem:[%s1204 + $0x38] sm:$0xff] %v1219
                  %v1221 = vld [vmem:[%s1203 + $0x40] sm:$0xff]
                  %1222 = vst [vmem:[%s1204 + $0x40] sm:$0xff] %v1221
                  %v1223 = vld [vmem:[%s1203 + $0x48] sm:$0xff]
                  %1224 = vst [vmem:[%s1204 + $0x48] sm:$0xff] %v1223
                  %v1225 = vld [vmem:[%s1203 + $0x50] sm:$0xff]
                  %1226 = vst [vmem:[%s1204 + $0x50] sm:$0xff] %v1225
                  %v1227 = vld [vmem:[%s1203 + $0x58] sm:$0xff]
                  %1228 = vst [vmem:[%s1204 + $0x58] sm:$0xff] %v1227
                  %v1229 = vld [vmem:[%s1203 + $0x60] sm:$0xff]
                  %1230 = vst [vmem:[%s1204 + $0x60] sm:$0xff] %v1229
                  %v1231 = vld [vmem:[%s1203 + $0x68] sm:$0xff]
                  %1232 = vst [vmem:[%s1204 + $0x68] sm:$0xff] %v1231
                  %v1233 = vld [vmem:[%s1203 + $0x70] sm:$0xff]
                  %1234 = vst [vmem:[%s1204 + $0x70] sm:$0xff] %v1233
                  %v1235 = vld [vmem:[%s1203 + $0x78] sm:$0xff]
                  %1236 = vst [vmem:[%s1204 + $0x78] sm:$0xff] %v1235
                  %v1237 = vld [vmem:[%s1203 + $0x80] sm:$0xff]
                  %1238 = vst [vmem:[%s1204 + $0x80] sm:$0xff] %v1237
                  %v1239 = vld [vmem:[%s1203 + $0x88] sm:$0xff]
                  %1240 = vst [vmem:[%s1204 + $0x88] sm:$0xff] %v1239
                  %v1241 = vld [vmem:[%s1203 + $0x90] sm:$0xff]
                  %1242 = vst [vmem:[%s1204 + $0x90] sm:$0xff] %v1241
                  %v1243 = vld [vmem:[%s1203 + $0x98] sm:$0xff]
                  %1244 = vst [vmem:[%s1204 + $0x98] sm:$0xff] %v1243
                  %v1245 = vld [vmem:[%s1203 + $0xa0] sm:$0xff]
                  %1246 = vst [vmem:[%s1204 + $0xa0] sm:$0xff] %v1245
                  %v1247 = vld [vmem:[%s1203 + $0xa8] sm:$0xff]
                  %1248 = vst [vmem:[%s1204 + $0xa8] sm:$0xff] %v1247
                  %v1249 = vld [vmem:[%s1203 + $0xb0] sm:$0xff]
                  %1250 = vst [vmem:[%s1204 + $0xb0] sm:$0xff] %v1249
                  %v1251 = vld [vmem:[%s1203 + $0xb8] sm:$0xff]
                  %1252 = vst [vmem:[%s1204 + $0xb8] sm:$0xff] %v1251
                  %v1253 = vld [vmem:[%s1203 + $0xc0] sm:$0xff]
                  %1254 = vst [vmem:[%s1204 + $0xc0] sm:$0xff] %v1253
                  %v1255 = vld [vmem:[%s1203 + $0xc8] sm:$0xff]
                  %1256 = vst [vmem:[%s1204 + $0xc8] sm:$0xff] %v1255
                  %v1257 = vld [vmem:[%s1203 + $0xd0] sm:$0xff]
                  %1258 = vst [vmem:[%s1204 + $0xd0] sm:$0xff] %v1257
                  %v1259 = vld [vmem:[%s1203 + $0xd8] sm:$0xff]
                  %1260 = vst [vmem:[%s1204 + $0xd8] sm:$0xff] %v1259
                  %v1261 = vld [vmem:[%s1203 + $0xe0] sm:$0xff]
                  %1262 = vst [vmem:[%s1204 + $0xe0] sm:$0xff] %v1261
                  %v1263 = vld [vmem:[%s1203 + $0xe8] sm:$0xff]
                  %1264 = vst [vmem:[%s1204 + $0xe8] sm:$0xff] %v1263
                  %s1265 = sadd.s32 1, %s1202
                  %p1266 = scmp.ge.s32.totalorder %s1265, %s1194
                  %s1267 = scalar_select %p1266, 0, %s1265
                  %s1268 = smul.u32 %s1267, 240
                  %s1269 = smul.u32 %s1267, 240
                  %s1270 = scalar_lea.vmem %s1069, %s1268 [#allocation2]
                  %s1271 = scalar_lea.vmem %s1080, %s1269
                $region71: #{alexnet_client_forward.4} parent=65 // loop_footer
                  %s1199 = sadd.s32 %s1197, 1
                $region72: #{alexnet_client_forward.4} parent=65 // loop_footer_branch
                  %1196 = sbr.rel target = $region68
                $region73: #{alexnet_client_forward.4} parent=65 // loop_exit
                  _
                %s1272 = sdiv.u32.pop %s1076, 30
                %s1273 = srem.u32.pop %s1076, 30
                %s1274 = smul.u32 %s1272, 30
                %s1275 = smul.u32 8, %s1274
                %s1276 = scalar_lea.vmem %s1069, %s1275 [#allocation2]
                %s1277 = smul.u32 8, %s1274
                %s1278 = scalar_lea.vmem %s1080, %s1277
                // While loop
                $region74: #{alexnet_client_forward.4} parent=65 // loop_pre_header
                  _
                $region75: #{alexnet_client_forward.4} parent=65 // loop_header
                  %s1280 = sphi 0, %s1282
                  %p1281 = scmp.ge.s32.totalorder %s1280, %s1273
                  %s1285 = sphi 0, %s1292
                  %s1286 = sphi %s1276, %s1295
                  %s1287 = sphi %s1278, %s1296
                $region76: #{alexnet_client_forward.4} parent=65 // loop_header_branch
                  %1284 = sbr.rel (%p1281) target = $region80
                $region77: #{alexnet_client_forward.4} parent=65 // loop_body
                  %v1288 = vld [vmem:[%s1286] sm:$0xff]
                  %1289 = vst [vmem:[%s1287] sm:$0xff] %v1288
                  %s1290 = sadd.s32 1, %s1285
                  %p1291 = scmp.ge.s32.totalorder %s1290, %s1273
                  %s1292 = scalar_select %p1291, 0, %s1290
                  %s1293 = smul.u32 %s1292, 8
                  %s1294 = smul.u32 %s1292, 8
                  %s1295 = scalar_lea.vmem %s1276, %s1293 [#allocation2]
                  %s1296 = scalar_lea.vmem %s1278, %s1294
                $region78: #{alexnet_client_forward.4} parent=65 // loop_footer
                  %s1282 = sadd.s32 %s1280, 1
                $region79: #{alexnet_client_forward.4} parent=65 // loop_footer_branch
                  %1279 = sbr.rel target = $region75
                $region80: #{alexnet_client_forward.4} parent=65 // loop_exit
                  _
              $region66: #{alexnet_client_forward.4} parent=43 // pred_fallthru
                _
              // Predicated region
              $region81: #{alexnet_client_forward.4} parent=43 // pred_check
                _
              $region82: #{alexnet_client_forward.4} parent=43 // pred_check_branch
                %1298 = sbr.rel target = $region84
              $region83: #{alexnet_client_forward.4} parent=43 // pred_region
                _
              $region84: #{alexnet_client_forward.4} parent=43 // pred_fallthru
                _
            $region44: #{alexnet_client_forward.4} parent=39 // pred_fallthru
              _
            // Predicated region
            $region45: #{alexnet_client_forward.4} parent=39 // pred_check
              _
            $region46: #{alexnet_client_forward.4} parent=39 // pred_check_branch
              %1087 = sbr.rel target = $region48
            $region47: #{alexnet_client_forward.4} parent=39 // pred_region
              %s1089 = sdiv.u32.pop %s1076, 30
              %s1090 = srem.u32.pop %s1076, 30
              // While loop
              $region49: #{alexnet_client_forward.4} parent=47 // loop_pre_header
                _
              $region50: #{alexnet_client_forward.4} parent=47 // loop_header
                %s1092 = sphi 0, %s1094
                %p1093 = scmp.ge.s32.totalorder %s1092, %s1089
                %s1097 = sphi 0, %s1162
                %s1098 = sphi %s1069, %s1165
                %s1099 = sphi %s1080, %s1166
              $region51: #{alexnet_client_forward.4} parent=47 // loop_header_branch
                %1096 = sbr.rel (%p1093) target = $region55
              $region52: #{alexnet_client_forward.4} parent=47 // loop_body
                %v1100 = vld [vmem:[%s1098] sm:$0xff]
                %1101 = vst [vmem:[%s1099] sm:$0xff] %v1100
                %v1102 = vld [vmem:[%s1098 + $0x8] sm:$0xff]
                %1103 = vst [vmem:[%s1099 + $0x8] sm:$0xff] %v1102
                %v1104 = vld [vmem:[%s1098 + $0x10] sm:$0xff]
                %1105 = vst [vmem:[%s1099 + $0x10] sm:$0xff] %v1104
                %v1106 = vld [vmem:[%s1098 + $0x18] sm:$0xff]
                %1107 = vst [vmem:[%s1099 + $0x18] sm:$0xff] %v1106
                %v1108 = vld [vmem:[%s1098 + $0x20] sm:$0xff]
                %1109 = vst [vmem:[%s1099 + $0x20] sm:$0xff] %v1108
                %v1110 = vld [vmem:[%s1098 + $0x28] sm:$0xff]
                %1111 = vst [vmem:[%s1099 + $0x28] sm:$0xff] %v1110
                %v1112 = vld [vmem:[%s1098 + $0x30] sm:$0xff]
                %1113 = vst [vmem:[%s1099 + $0x30] sm:$0xff] %v1112
                %v1114 = vld [vmem:[%s1098 + $0x38] sm:$0xff]
                %1115 = vst [vmem:[%s1099 + $0x38] sm:$0xff] %v1114
                %v1116 = vld [vmem:[%s1098 + $0x40] sm:$0xff]
                %1117 = vst [vmem:[%s1099 + $0x40] sm:$0xff] %v1116
                %v1118 = vld [vmem:[%s1098 + $0x48] sm:$0xff]
                %1119 = vst [vmem:[%s1099 + $0x48] sm:$0xff] %v1118
                %v1120 = vld [vmem:[%s1098 + $0x50] sm:$0xff]
                %1121 = vst [vmem:[%s1099 + $0x50] sm:$0xff] %v1120
                %v1122 = vld [vmem:[%s1098 + $0x58] sm:$0xff]
                %1123 = vst [vmem:[%s1099 + $0x58] sm:$0xff] %v1122
                %v1124 = vld [vmem:[%s1098 + $0x60] sm:$0xff]
                %1125 = vst [vmem:[%s1099 + $0x60] sm:$0xff] %v1124
                %v1126 = vld [vmem:[%s1098 + $0x68] sm:$0xff]
                %1127 = vst [vmem:[%s1099 + $0x68] sm:$0xff] %v1126
                %v1128 = vld [vmem:[%s1098 + $0x70] sm:$0xff]
                %1129 = vst [vmem:[%s1099 + $0x70] sm:$0xff] %v1128
                %v1130 = vld [vmem:[%s1098 + $0x78] sm:$0xff]
                %1131 = vst [vmem:[%s1099 + $0x78] sm:$0xff] %v1130
                %v1132 = vld [vmem:[%s1098 + $0x80] sm:$0xff]
                %1133 = vst [vmem:[%s1099 + $0x80] sm:$0xff] %v1132
                %v1134 = vld [vmem:[%s1098 + $0x88] sm:$0xff]
                %1135 = vst [vmem:[%s1099 + $0x88] sm:$0xff] %v1134
                %v1136 = vld [vmem:[%s1098 + $0x90] sm:$0xff]
                %1137 = vst [vmem:[%s1099 + $0x90] sm:$0xff] %v1136
                %v1138 = vld [vmem:[%s1098 + $0x98] sm:$0xff]
                %1139 = vst [vmem:[%s1099 + $0x98] sm:$0xff] %v1138
                %v1140 = vld [vmem:[%s1098 + $0xa0] sm:$0xff]
                %1141 = vst [vmem:[%s1099 + $0xa0] sm:$0xff] %v1140
                %v1142 = vld [vmem:[%s1098 + $0xa8] sm:$0xff]
                %1143 = vst [vmem:[%s1099 + $0xa8] sm:$0xff] %v1142
                %v1144 = vld [vmem:[%s1098 + $0xb0] sm:$0xff]
                %1145 = vst [vmem:[%s1099 + $0xb0] sm:$0xff] %v1144
                %v1146 = vld [vmem:[%s1098 + $0xb8] sm:$0xff]
                %1147 = vst [vmem:[%s1099 + $0xb8] sm:$0xff] %v1146
                %v1148 = vld [vmem:[%s1098 + $0xc0] sm:$0xff]
                %1149 = vst [vmem:[%s1099 + $0xc0] sm:$0xff] %v1148
                %v1150 = vld [vmem:[%s1098 + $0xc8] sm:$0xff]
                %1151 = vst [vmem:[%s1099 + $0xc8] sm:$0xff] %v1150
                %v1152 = vld [vmem:[%s1098 + $0xd0] sm:$0xff]
                %1153 = vst [vmem:[%s1099 + $0xd0] sm:$0xff] %v1152
                %v1154 = vld [vmem:[%s1098 + $0xd8] sm:$0xff]
                %1155 = vst [vmem:[%s1099 + $0xd8] sm:$0xff] %v1154
                %v1156 = vld [vmem:[%s1098 + $0xe0] sm:$0xff]
                %1157 = vst [vmem:[%s1099 + $0xe0] sm:$0xff] %v1156
                %v1158 = vld [vmem:[%s1098 + $0xe8] sm:$0xff]
                %1159 = vst [vmem:[%s1099 + $0xe8] sm:$0xff] %v1158
                %s1160 = sadd.s32 1, %s1097
                %p1161 = scmp.ge.s32.totalorder %s1160, %s1089
                %s1162 = scalar_select %p1161, 0, %s1160
                %s1163 = smul.u32 %s1162, 240
                %s1164 = smul.u32 %s1162, 240
                %s1165 = scalar_lea.vmem %s1069, %s1163 [#allocation2]
                %s1166 = scalar_lea.vmem %s1080, %s1164
              $region53: #{alexnet_client_forward.4} parent=47 // loop_footer
                %s1094 = sadd.s32 %s1092, 1
              $region54: #{alexnet_client_forward.4} parent=47 // loop_footer_branch
                %1091 = sbr.rel target = $region50
              $region55: #{alexnet_client_forward.4} parent=47 // loop_exit
                _
              %s1167 = sdiv.u32.pop %s1076, 30
              %s1168 = srem.u32.pop %s1076, 30
              %s1169 = smul.u32 %s1167, 30
              %s1170 = smul.u32 8, %s1169
              %s1171 = scalar_lea.vmem %s1069, %s1170 [#allocation2]
              %s1172 = smul.u32 8, %s1169
              %s1173 = scalar_lea.vmem %s1080, %s1172
              // While loop
              $region56: #{alexnet_client_forward.4} parent=47 // loop_pre_header
                _
              $region57: #{alexnet_client_forward.4} parent=47 // loop_header
                %s1175 = sphi 0, %s1177
                %p1176 = scmp.ge.s32.totalorder %s1175, %s1168
                %s1180 = sphi 0, %s1187
                %s1181 = sphi %s1171, %s1190
                %s1182 = sphi %s1173, %s1191
              $region58: #{alexnet_client_forward.4} parent=47 // loop_header_branch
                %1179 = sbr.rel (%p1176) target = $region62
              $region59: #{alexnet_client_forward.4} parent=47 // loop_body
                %v1183 = vld [vmem:[%s1181] sm:$0xff]
                %1184 = vst [vmem:[%s1182] sm:$0xff] %v1183
                %s1185 = sadd.s32 1, %s1180
                %p1186 = scmp.ge.s32.totalorder %s1185, %s1168
                %s1187 = scalar_select %p1186, 0, %s1185
                %s1188 = smul.u32 %s1187, 8
                %s1189 = smul.u32 %s1187, 8
                %s1190 = scalar_lea.vmem %s1171, %s1188 [#allocation2]
                %s1191 = scalar_lea.vmem %s1173, %s1189
              $region60: #{alexnet_client_forward.4} parent=47 // loop_footer
                %s1177 = sadd.s32 %s1175, 1
              $region61: #{alexnet_client_forward.4} parent=47 // loop_footer_branch
                %1174 = sbr.rel target = $region57
              $region62: #{alexnet_client_forward.4} parent=47 // loop_exit
                _
            $region48: #{alexnet_client_forward.4} parent=39 // pred_fallthru
              _
          $region40: #{alexnet_client_forward.4} parent=35 // pred_fallthru
            _
          %1299 = vnop
        $region36: #{alexnet_client_forward.4} parent=31 // pred_fallthru
          _
      $region32: #{alexnet_client_forward.4} parent=5 // pred_fallthru
        _
      %p1300 = scmp.le.s32.totalorder 2, %s9
      // Predicated region
      $region85: #{alexnet_client_forward.4} parent=5 // pred_check
        %p1301 = pneg %p1300
      $region86: #{alexnet_client_forward.4} parent=5 // pred_check_branch
        %1303 = sbr.rel (%p1301) target = $region88
      $region87: #{alexnet_client_forward.4} parent=5 // pred_region
        %s1304 = ssub.s32 %s9, 2
        // Predicated region
        $region89: #{alexnet_client_forward.4} parent=87 // pred_check
          %p1305 = pneg %p106
        $region90: #{alexnet_client_forward.4} parent=87 // pred_check_branch
          %1307 = sbr.rel (%p1305) target = $region92
        $region91: #{alexnet_client_forward.4} parent=87 // pred_region
          %s1308 = sand.u32 %s91, 1
          %s1309 = sand.u32 %s91, 1
          %s1310 = smul.addr %s1309, 240
          %s1311 = scalar_lea.vmem [#allocation2], %s1310
        $region92: #{alexnet_client_forward.4} parent=87 // pred_fallthru
          _
      $region88: #{alexnet_client_forward.4} parent=5 // pred_fallthru
        _
    $region6: #{alexnet_client_forward.4} parent=1 // loop_footer
      %s13 = sadd.s32 1, %s9
    $region7: #{alexnet_client_forward.4} parent=1 // loop_footer_branch
      %8 = sbr.rel target = $region3
    $region8: #{alexnet_client_forward.4} parent=1 // loop_exit
      _

// kernel: alexnet_client_forward.5
$region0: #{alexnet_client_forward.5}
  #allocation0 [shape = 'u32[]', space=smem, size = 0x4, offset = 0x4, fixed_abs, tag = 'smem constant byte address 0x4 - core index']
  #allocation1 [shape = 'u32[144,128]{1,0:T(1,128)}', space=vmem, size = 0x12000, scoped, tag = 'internal scratch']
  %s0 = inlined_call_operand.vmem [shape: f32[2,15,8,128], index: 0, kind: input, shape index: {}]
  %s1 = inlined_call_operand.vmem [shape: f32[2,15,7,128], index: 1, kind: input, shape index: {}]
  %s2 = inlined_call_operand.vmem [shape: f32[2,7,7,128], index: 2, kind: output, shape index: {}]
  %s3 = sld [smem:[#allocation0]]
  $region41: #{alexnet_client_forward.5} parent=0
    _
  %s5 = ssub.s32 1, %s3
  %s6 = scalar_select 0, %s5, %s3
  loop: start=0, step=1, limit=4
  $region2: #{alexnet_client_forward.5} parent=0 // loop_pre_header
    _
  $region3: #{alexnet_client_forward.5} parent=0 // loop_header
    %s8 = sphi 0, %s12
    %p9 = scmp.ge.s32.totalorder %s8, 4
    %s18 = sphi 0, %s20
    %s21 = sphi 0, %s18
    %s22 = sphi 0, %s21
    %s38 = sphi 0, %s22
    %s44 = sphi 0, %s46
    %s47 = sphi 0, %s44
    %s48 = sphi 0, %s47
    %s64 = sphi 0, %s48
    %s70 = sphi 0, %s72
    %s73 = sphi 0, %s70
    %s74 = sphi 0, %s73
    %s90 = sphi 0, %s74
  $region4: #{alexnet_client_forward.5} parent=0 // loop_header_branch
    %11 = sbr.rel (%p9) target = $region8
  $region5: #{alexnet_client_forward.5} parent=0 // loop_body
    %s13 = ssub.s32 %s8, 1
    %s14 = ssub.s32 %s8, 2
    %s15 = sadd.s32 %s8, 1
    %s16 = ssub.s32 %s8, %s15
    %p17 = scmp.eq.s32.totalorder %s16, 0
    %s19 = sadd.s32 %s18, 1
    %s20 = scalar_select %p17, %s18, %s19
    %p23 = pneg %p17
    %p24 = scmp.eq.s32.totalorder %s8, 1
    %p25 = por %p23, %p24
    %p26 = scmp.ne.s32.totalorder %s18, %s21
    %p27 = scmp.eq.s32.totalorder %s8, 0
    %p28 = por %p26, %p27
    %p29 = scmp.ne.s32.totalorder %s18, %s21
    %p30 = scmp.eq.s32.totalorder %s13, 1
    %p31 = por %p29, %p30
    %p32 = scmp.ne.s32.totalorder %s21, %s22
    %p33 = scmp.eq.s32.totalorder %s13, 0
    %p34 = por %p32, %p33
    %p35 = scmp.ne.s32.totalorder %s21, %s22
    %p36 = scmp.eq.s32.totalorder %s14, 1
    %p37 = por %p35, %p36
    %p39 = scmp.ne.s32.totalorder %s22, %s38
    %p40 = scmp.eq.s32.totalorder %s14, 0
    %p41 = por %p39, %p40
    %s42 = ssub.s32 %s8, %s15
    %p43 = scmp.eq.s32.totalorder %s42, 0
    %s45 = sadd.s32 %s44, 1
    %s46 = scalar_select %p43, %s44, %s45
    %p49 = pneg %p43
    %p50 = scmp.eq.s32.totalorder %s8, 1
    %p51 = por %p49, %p50
    %p52 = scmp.ne.s32.totalorder %s44, %s47
    %p53 = scmp.eq.s32.totalorder %s8, 0
    %p54 = por %p52, %p53
    %p55 = scmp.ne.s32.totalorder %s44, %s47
    %p56 = scmp.eq.s32.totalorder %s13, 1
    %p57 = por %p55, %p56
    %p58 = scmp.ne.s32.totalorder %s47, %s48
    %p59 = scmp.eq.s32.totalorder %s13, 0
    %p60 = por %p58, %p59
    %p61 = scmp.ne.s32.totalorder %s47, %s48
    %p62 = scmp.eq.s32.totalorder %s14, 1
    %p63 = por %p61, %p62
    %p65 = scmp.ne.s32.totalorder %s48, %s64
    %p66 = scmp.eq.s32.totalorder %s14, 0
    %p67 = por %p65, %p66
    %s68 = ssub.s32 %s8, %s15
    %p69 = scmp.eq.s32.totalorder %s68, 0
    %s71 = sadd.s32 %s70, 1
    %s72 = scalar_select %p69, %s70, %s71
    %p75 = pneg %p69
    %p76 = scmp.eq.s32.totalorder %s8, 1
    %p77 = por %p75, %p76
    %p78 = scmp.ne.s32.totalorder %s70, %s73
    %p79 = scmp.eq.s32.totalorder %s8, 0
    %p80 = por %p78, %p79
    %p81 = scmp.ne.s32.totalorder %s70, %s73
    %p82 = scmp.eq.s32.totalorder %s13, 1
    %p83 = por %p81, %p82
    %p84 = scmp.ne.s32.totalorder %s73, %s74
    %p85 = scmp.eq.s32.totalorder %s13, 0
    %p86 = por %p84, %p85
    %p87 = scmp.ne.s32.totalorder %s73, %s74
    %p88 = scmp.eq.s32.totalorder %s14, 1
    %p89 = por %p87, %p88
    %p91 = scmp.ne.s32.totalorder %s74, %s90
    %p92 = scmp.eq.s32.totalorder %s14, 0
    %p93 = por %p91, %p92
    %p94 = scmp.le.s32.totalorder 1, %s8
    %p95 = scmp.lt.s32.totalorder %s8, 3
    %p96 = pnand %p94, %p95
    %p97 = pneg %p96
    // Predicated region
    $region9: #{alexnet_client_forward.5} parent=5 // pred_check
      _
    $region10: #{alexnet_client_forward.5} parent=5 // pred_check_branch
      %99 = sbr.rel (%p96) target = $region12
    $region11: #{alexnet_client_forward.5} parent=5 // pred_region
      %s100 = ssub.s32 %s8, 1
    $region12: #{alexnet_client_forward.5} parent=5 // pred_fallthru
      _
    %p101 = scmp.lt.s32.totalorder %s8, 2
    // Predicated region
    $region13: #{alexnet_client_forward.5} parent=5 // pred_check
      %p102 = pneg %p101
    $region14: #{alexnet_client_forward.5} parent=5 // pred_check_branch
      %104 = sbr.rel (%p102) target = $region16
    $region15: #{alexnet_client_forward.5} parent=5 // pred_region
      // Predicated region
      $region17: #{alexnet_client_forward.5} parent=15 // pred_check
        %p105 = pneg %p28
      $region18: #{alexnet_client_forward.5} parent=15 // pred_check_branch
        %107 = sbr.rel (%p105) target = $region20
      $region19: #{alexnet_client_forward.5} parent=15 // pred_region
        %p108 = scmp.lt.s32.totalorder %s8, 1
        %s109 = scalar_select %p108, %s8, 1
        %s110 = smul.addr %s109, 15
        %s111 = smul.addr %s110, 8
        %s112 = scalar_lea.vmem %s0, %s111
      $region20: #{alexnet_client_forward.5} parent=15 // pred_fallthru
        _
      // Predicated region
      $region21: #{alexnet_client_forward.5} parent=15 // pred_check
        %p113 = pneg %p54
      $region22: #{alexnet_client_forward.5} parent=15 // pred_check_branch
        %115 = sbr.rel (%p113) target = $region24
      $region23: #{alexnet_client_forward.5} parent=15 // pred_region
        %p116 = scmp.lt.s32.totalorder %s8, 1
        %s117 = scalar_select %p116, %s8, 1
        %s118 = smul.addr %s117, 15
        %s119 = smul.addr %s118, 8
        %s120 = scalar_lea.vmem %s1, %s119
      $region24: #{alexnet_client_forward.5} parent=15 // pred_fallthru
        _
    $region16: #{alexnet_client_forward.5} parent=5 // pred_fallthru
      _
    %p121 = scmp.le.s32.totalorder 1, %s8
    %p122 = scmp.lt.s32.totalorder %s8, 3
    %p123 = pnand %p121, %p122
    %p124 = pneg %p123
    // Predicated region
    $region25: #{alexnet_client_forward.5} parent=5 // pred_check
      _
    $region26: #{alexnet_client_forward.5} parent=5 // pred_check_branch
      %126 = sbr.rel (%p123) target = $region28
    $region27: #{alexnet_client_forward.5} parent=5 // pred_region
      %s127 = ssub.s32 %s8, 1
      %p128 = scmp.lt.s32.totalorder %s13, 1
      %s129 = scalar_select %p128, %s13, 1
      %s130 = smul.addr %s129, 15
      %s131 = smul.addr %s130, 8
      %s132 = scalar_lea.vmem %s0, %s131
      %p133 = pneg %p34
      %p134 = pneg %p31
      %p135 = scmp.lt.s32.totalorder %s13, 1
      %s136 = scalar_select %p135, %s13, 1
      %s137 = smul.addr %s136, 15
      %s138 = smul.addr %s137, 8
      %s139 = scalar_lea.vmem %s1, %s138
      %p140 = pneg %p60
      %p141 = pneg %p57
      %p142 = pneg %p86
      %p143 = pneg %p83
      %p144 = scmp.lt.s32.totalorder %s13, 1
      %s145 = scalar_select %p144, %s13, 1
      %s146 = smul.addr %s145, 7
      %s147 = smul.addr %s146, 8
      %s148 = scalar_lea.vmem %s2, %s147
      %p149 = scmp.lt.s32.totalorder %s13, 1
      %s150 = scalar_select %p149, %s13, 1
      %s151 = smul.addr %s150, 15
      %s152 = smul.addr %s151, 8
      %s153 = scalar_lea.vmem %s0, %s152
      %p154 = scmp.lt.s32.totalorder %s13, 1
      %s155 = scalar_select %p154, %s13, 1
      %s156 = smul.addr %s155, 15
      %s157 = smul.addr %s156, 8
      %s158 = scalar_lea.vmem %s1, %s157
      %p159 = scmp.lt.s32.totalorder %s13, 1
      %s160 = scalar_select %p159, %s13, 1
      %s161 = smul.addr %s160, 7
      %s162 = smul.addr %s161, 8
      %s163 = scalar_lea.vmem %s2, %s162
      %v164 = vld [vmem:[%s153] sm:$0xff]
      %v165 = vld [vmem:[%s153 + $0x8] sm:$0xff]
      %v166 = vld [vmem:[%s153 + $0x10] sm:$0xff]
      %v167 = vmax.f32 %v164, %v165
      %v168 = vmax.f32 %v167, %v166
      %v169 = vld [vmem:[%s158] sm:$0x7f]
      %v170 = vld [vmem:[%s158 + $0x8] sm:$0x7f]
      %v171 = vld [vmem:[%s158 + $0x10] sm:$0x7f]
      %vm172 = vcmask 1046528
      %v173 = vsel %vm172, %v169, -inf
      %v174 = vsel %vm172, %v170, -inf
      %v175 = vsel %vm172, %v171, -inf
      %v176 = vmax.f32 %v173, %v174
      %v177 = vmax.f32 %v176, %v175
      %v179 = vrot.slane %v168, 1
      %v181 = vmax.f32 %v168, %v179
      %v182 = vmax.f32 %v181, %v177
      %v183 = vmax.f32 %v182, 0.0
      %184 = vst [vmem:[%s163] sm:$0x7f] %v183
      %s185 = scalar_lea.vmem %s153, 16
      %v186 = vld [vmem:[%s185] sm:$0xff]
      %v187 = vld [vmem:[%s185 + $0x8] sm:$0xff]
      %v188 = vld [vmem:[%s185 + $0x10] sm:$0xff]
      %v189 = vmax.f32 %v186, %v187
      %v190 = vmax.f32 %v189, %v188
      %s191 = scalar_lea.vmem %s158, 16
      %v192 = vld [vmem:[%s191] sm:$0x7f]
      %v193 = vld [vmem:[%s191 + $0x8] sm:$0x7f]
      %v194 = vld [vmem:[%s191 + $0x10] sm:$0x7f]
      %v195 = vsel %vm172, %v192, -inf
      %v196 = vsel %vm172, %v193, -inf
      %v197 = vsel %vm172, %v194, -inf
      %v198 = vmax.f32 %v195, %v196
      %v199 = vmax.f32 %v198, %v197
      %v201 = vrot.slane %v190, 1
      %v203 = vmax.f32 %v190, %v201
      %v204 = vmax.f32 %v203, %v199
      %v205 = vmax.f32 %v204, 0.0
      %s206 = scalar_lea.vmem %s163, 8
      %207 = vst [vmem:[%s206] sm:$0x7f] %v205
      %s208 = scalar_lea.vmem %s153, 32
      %v209 = vld [vmem:[%s208] sm:$0xff]
      %v210 = vld [vmem:[%s208 + $0x8] sm:$0xff]
      %v211 = vld [vmem:[%s208 + $0x10] sm:$0xff]
      %v212 = vmax.f32 %v209, %v210
      %v213 = vmax.f32 %v212, %v211
      %s214 = scalar_lea.vmem %s158, 32
      %v215 = vld [vmem:[%s214] sm:$0x7f]
      %v216 = vld [vmem:[%s214 + $0x8] sm:$0x7f]
      %v217 = vld [vmem:[%s214 + $0x10] sm:$0x7f]
      %v218 = vsel %vm172, %v215, -inf
      %v219 = vsel %vm172, %v216, -inf
      %v220 = vsel %vm172, %v217, -inf
      %v221 = vmax.f32 %v218, %v219
      %v222 = vmax.f32 %v221, %v220
      %v224 = vrot.slane %v213, 1
      %v226 = vmax.f32 %v213, %v224
      %v227 = vmax.f32 %v226, %v222
      %v228 = vmax.f32 %v227, 0.0
      %s229 = scalar_lea.vmem %s163, 16
      %230 = vst [vmem:[%s229] sm:$0x7f] %v228
      %s231 = scalar_lea.vmem %s153, 48
      %v232 = vld [vmem:[%s231] sm:$0xff]
      %v233 = vld [vmem:[%s231 + $0x8] sm:$0xff]
      %v234 = vld [vmem:[%s231 + $0x10] sm:$0xff]
      %v235 = vmax.f32 %v232, %v233
      %v236 = vmax.f32 %v235, %v234
      %s237 = scalar_lea.vmem %s158, 48
      %v238 = vld [vmem:[%s237] sm:$0x7f]
      %v239 = vld [vmem:[%s237 + $0x8] sm:$0x7f]
      %v240 = vld [vmem:[%s237 + $0x10] sm:$0x7f]
      %v241 = vsel %vm172, %v238, -inf
      %v242 = vsel %vm172, %v239, -inf
      %v243 = vsel %vm172, %v240, -inf
      %v244 = vmax.f32 %v241, %v242
      %v245 = vmax.f32 %v244, %v243
      %v247 = vrot.slane %v236, 1
      %v249 = vmax.f32 %v236, %v247
      %v250 = vmax.f32 %v249, %v245
      %v251 = vmax.f32 %v250, 0.0
      %s252 = scalar_lea.vmem %s163, 24
      %253 = vst [vmem:[%s252] sm:$0x7f] %v251
      %s254 = scalar_lea.vmem %s153, 64
      %v255 = vld [vmem:[%s254] sm:$0xff]
      %v256 = vld [vmem:[%s254 + $0x8] sm:$0xff]
      %v257 = vld [vmem:[%s254 + $0x10] sm:$0xff]
      %v258 = vmax.f32 %v255, %v256
      %v259 = vmax.f32 %v258, %v257
      %s260 = scalar_lea.vmem %s158, 64
      %v261 = vld [vmem:[%s260] sm:$0x7f]
      %v262 = vld [vmem:[%s260 + $0x8] sm:$0x7f]
      %v263 = vld [vmem:[%s260 + $0x10] sm:$0x7f]
      %v264 = vsel %vm172, %v261, -inf
      %v265 = vsel %vm172, %v262, -inf
      %v266 = vsel %vm172, %v263, -inf
      %v267 = vmax.f32 %v264, %v265
      %v268 = vmax.f32 %v267, %v266
      %v270 = vrot.slane %v259, 1
      %v272 = vmax.f32 %v259, %v270
      %v273 = vmax.f32 %v272, %v268
      %v274 = vmax.f32 %v273, 0.0
      %s275 = scalar_lea.vmem %s163, 32
      %276 = vst [vmem:[%s275] sm:$0x7f] %v274
      %s277 = scalar_lea.vmem %s153, 80
      %v278 = vld [vmem:[%s277] sm:$0xff]
      %v279 = vld [vmem:[%s277 + $0x8] sm:$0xff]
      %v280 = vld [vmem:[%s277 + $0x10] sm:$0xff]
      %v281 = vmax.f32 %v278, %v279
      %v282 = vmax.f32 %v281, %v280
      %s283 = scalar_lea.vmem %s158, 80
      %v284 = vld [vmem:[%s283] sm:$0x7f]
      %v285 = vld [vmem:[%s283 + $0x8] sm:$0x7f]
      %v286 = vld [vmem:[%s283 + $0x10] sm:$0x7f]
      %v287 = vsel %vm172, %v284, -inf
      %v288 = vsel %vm172, %v285, -inf
      %v289 = vsel %vm172, %v286, -inf
      %v290 = vmax.f32 %v287, %v288
      %v291 = vmax.f32 %v290, %v289
      %v293 = vrot.slane %v282, 1
      %v295 = vmax.f32 %v282, %v293
      %v296 = vmax.f32 %v295, %v291
      %v297 = vmax.f32 %v296, 0.0
      %s298 = scalar_lea.vmem %s163, 40
      %299 = vst [vmem:[%s298] sm:$0x7f] %v297
      %s300 = scalar_lea.vmem %s153, 96
      %v301 = vld [vmem:[%s300] sm:$0xff]
      %v302 = vld [vmem:[%s300 + $0x8] sm:$0xff]
      %v303 = vld [vmem:[%s300 + $0x10] sm:$0xff]
      %v304 = vmax.f32 %v301, %v302
      %v305 = vmax.f32 %v304, %v303
      %s306 = scalar_lea.vmem %s158, 96
      %v307 = vld [vmem:[%s306] sm:$0x7f]
      %v308 = vld [vmem:[%s306 + $0x8] sm:$0x7f]
      %v309 = vld [vmem:[%s306 + $0x10] sm:$0x7f]
      %v310 = vsel %vm172, %v307, -inf
      %v311 = vsel %vm172, %v308, -inf
      %v312 = vsel %vm172, %v309, -inf
      %v313 = vmax.f32 %v310, %v311
      %v314 = vmax.f32 %v313, %v312
      %v316 = vrot.slane %v305, 1
      %v318 = vmax.f32 %v305, %v316
      %v319 = vmax.f32 %v318, %v314
      %v320 = vmax.f32 %v319, 0.0
      %s321 = scalar_lea.vmem %s163, 48
      %322 = vst [vmem:[%s321] sm:$0x7f] %v320
      %p323 = scmp.lt.s32.totalorder %s13, 1
      %s324 = scalar_select %p323, %s13, 1
      %s325 = smul.addr %s324, 7
      %s326 = smul.addr %s325, 8
      %s327 = scalar_lea.vmem %s2, %s326
      // Predicated region
      $region29: #{alexnet_client_forward.5} parent=27 // pred_check
        %p328 = pneg %p83
      $region30: #{alexnet_client_forward.5} parent=27 // pred_check_branch
        %330 = sbr.rel (%p328) target = $region32
      $region31: #{alexnet_client_forward.5} parent=27 // pred_region
        _
      $region32: #{alexnet_client_forward.5} parent=27 // pred_fallthru
        _
    $region28: #{alexnet_client_forward.5} parent=5 // pred_fallthru
      _
    %p331 = scmp.le.s32.totalorder 2, %s8
    // Predicated region
    $region33: #{alexnet_client_forward.5} parent=5 // pred_check
      %p332 = pneg %p331
    $region34: #{alexnet_client_forward.5} parent=5 // pred_check_branch
      %334 = sbr.rel (%p332) target = $region36
    $region35: #{alexnet_client_forward.5} parent=5 // pred_region
      %s335 = ssub.s32 %s8, 2
      // Predicated region
      $region37: #{alexnet_client_forward.5} parent=35 // pred_check
        %p336 = pneg %p89
      $region38: #{alexnet_client_forward.5} parent=35 // pred_check_branch
        %338 = sbr.rel (%p336) target = $region40
      $region39: #{alexnet_client_forward.5} parent=35 // pred_region
        %p339 = scmp.lt.s32.totalorder %s14, 1
        %s340 = scalar_select %p339, %s14, 1
        %s341 = smul.addr %s340, 7
        %s342 = smul.addr %s341, 8
        %s343 = scalar_lea.vmem %s2, %s342
      $region40: #{alexnet_client_forward.5} parent=35 // pred_fallthru
        _
    $region36: #{alexnet_client_forward.5} parent=5 // pred_fallthru
      _
  $region6: #{alexnet_client_forward.5} parent=0 // loop_footer
    %s12 = sadd.s32 1, %s8
  $region7: #{alexnet_client_forward.5} parent=0 // loop_footer_branch
    %7 = sbr.rel target = $region3
  $region8: #{alexnet_client_forward.5} parent=0 // loop_exit
    _

// kernel: alexnet_client_forward.6
$region0: #{alexnet_client_forward.6}
  #allocation0 [shape = 'u32[]', space=smem, size = 0x4, offset = 0x4, fixed_abs, tag = 'smem constant byte address 0x4 - core index']
  #allocation1 [shape = 'u32[144,128]{1,0:T(1,128)}', space=vmem, size = 0x12000, scoped, tag = 'internal scratch']
  %s0 = inlined_call_operand.vmem [shape: bf16[98,1664], index: 0, kind: input, shape index: {}]
  %s1 = inlined_call_operand.vmem [shape: bf16[1664,192], index: 1, kind: input, shape index: {}]
  %s2 = inlined_call_operand.vmem [shape: f32[1,192], index: 2, kind: input, shape index: {}]
  %s3 = inlined_call_operand.vmem [shape: f32[98,192], index: 3, kind: output, shape index: {}]
  %s4 = sld [smem:[#allocation0]]
  $region71: #{alexnet_client_forward.6} parent=0
    _
  %s6 = ssub.s32 1, %s4
  %s7 = scalar_select 0, %s6, %s4
  $region1: #{alexnet_client_forward.6} parent=0
    #allocation2 [shape = 'u8[131072]{0}', space=vmem, size = 0x20000, scoped, tag = 'output window, operand 0']
    loop: start=0, step=1, limit=4
    $region2: #{alexnet_client_forward.6} parent=1 // loop_pre_header
      _
    $region3: #{alexnet_client_forward.6} parent=1 // loop_header
      %s9 = sphi 0, %s13
      %p10 = scmp.ge.s32.totalorder %s9, 4
      %s19 = sphi 0, %s21
      %s22 = sphi 0, %s19
      %s23 = sphi 0, %s22
      %s39 = sphi 0, %s23
      %s43 = sphi 0, %s43
      %s45 = sphi 0, %s43
      %s46 = sphi 0, %s45
      %s60 = sphi 0, %s46
      %s64 = sphi 0, %s64
      %s66 = sphi 0, %s64
      %s67 = sphi 0, %s66
      %s81 = sphi 0, %s67
      %s87 = sphi 0, %s89
      %s90 = sphi 0, %s87
      %s91 = sphi 0, %s90
      %s107 = sphi 0, %s91
    $region4: #{alexnet_client_forward.6} parent=1 // loop_header_branch
      %12 = sbr.rel (%p10) target = $region8
    $region5: #{alexnet_client_forward.6} parent=1 // loop_body
      %s14 = ssub.s32 %s9, 1
      %s15 = ssub.s32 %s9, 2
      %s16 = sadd.s32 %s9, 1
      %s17 = ssub.s32 %s9, %s16
      %p18 = scmp.eq.s32.totalorder %s17, 0
      %s20 = sadd.s32 %s19, 1
      %s21 = scalar_select %p18, %s19, %s20
      %p24 = pneg %p18
      %p25 = scmp.eq.s32.totalorder %s9, 1
      %p26 = por %p24, %p25
      %p27 = scmp.ne.s32.totalorder %s19, %s22
      %p28 = scmp.eq.s32.totalorder %s9, 0
      %p29 = por %p27, %p28
      %p30 = scmp.ne.s32.totalorder %s19, %s22
      %p31 = scmp.eq.s32.totalorder %s14, 1
      %p32 = por %p30, %p31
      %p33 = scmp.ne.s32.totalorder %s22, %s23
      %p34 = scmp.eq.s32.totalorder %s14, 0
      %p35 = por %p33, %p34
      %p36 = scmp.ne.s32.totalorder %s22, %s23
      %p37 = scmp.eq.s32.totalorder %s15, 1
      %p38 = por %p36, %p37
      %p40 = scmp.ne.s32.totalorder %s23, %s39
      %p41 = scmp.eq.s32.totalorder %s15, 0
      %p42 = por %p40, %p41
      %s44 = sadd.s32 %s43, 1
      %p47 = scmp.eq.s32.totalorder %s9, 1
      %p48 = scmp.ne.s32.totalorder %s43, %s45
      %p49 = scmp.eq.s32.totalorder %s9, 0
      %p50 = por %p48, %p49
      %p51 = scmp.ne.s32.totalorder %s43, %s45
      %p52 = scmp.eq.s32.totalorder %s14, 1
      %p53 = por %p51, %p52
      %p54 = scmp.ne.s32.totalorder %s45, %s46
      %p55 = scmp.eq.s32.totalorder %s14, 0
      %p56 = por %p54, %p55
      %p57 = scmp.ne.s32.totalorder %s45, %s46
      %p58 = scmp.eq.s32.totalorder %s15, 1
      %p59 = por %p57, %p58
      %p61 = scmp.ne.s32.totalorder %s46, %s60
      %p62 = scmp.eq.s32.totalorder %s15, 0
      %p63 = por %p61, %p62
      %s65 = sadd.s32 %s64, 1
      %p68 = scmp.eq.s32.totalorder %s9, 1
      %p69 = scmp.ne.s32.totalorder %s64, %s66
      %p70 = scmp.eq.s32.totalorder %s9, 0
      %p71 = por %p69, %p70
      %p72 = scmp.ne.s32.totalorder %s64, %s66
      %p73 = scmp.eq.s32.totalorder %s14, 1
      %p74 = por %p72, %p73
      %p75 = scmp.ne.s32.totalorder %s66, %s67
      %p76 = scmp.eq.s32.totalorder %s14, 0
      %p77 = por %p75, %p76
      %p78 = scmp.ne.s32.totalorder %s66, %s67
      %p79 = scmp.eq.s32.totalorder %s15, 1
      %p80 = por %p78, %p79
      %p82 = scmp.ne.s32.totalorder %s67, %s81
      %p83 = scmp.eq.s32.totalorder %s15, 0
      %p84 = por %p82, %p83
      %s85 = ssub.s32 %s9, %s16
      %p86 = scmp.eq.s32.totalorder %s85, 0
      %s88 = sadd.s32 %s87, 1
      %s89 = scalar_select %p86, %s87, %s88
      %p92 = pneg %p86
      %p93 = scmp.eq.s32.totalorder %s9, 1
      %p94 = por %p92, %p93
      %p95 = scmp.ne.s32.totalorder %s87, %s90
      %p96 = scmp.eq.s32.totalorder %s9, 0
      %p97 = por %p95, %p96
      %p98 = scmp.ne.s32.totalorder %s87, %s90
      %p99 = scmp.eq.s32.totalorder %s14, 1
      %p100 = por %p98, %p99
      %p101 = scmp.ne.s32.totalorder %s90, %s91
      %p102 = scmp.eq.s32.totalorder %s14, 0
      %p103 = por %p101, %p102
      %p104 = scmp.ne.s32.totalorder %s90, %s91
      %p105 = scmp.eq.s32.totalorder %s15, 1
      %p106 = por %p104, %p105
      %p108 = scmp.ne.s32.totalorder %s91, %s107
      %p109 = scmp.eq.s32.totalorder %s15, 0
      %p110 = por %p108, %p109
      %p111 = scmp.le.s32.totalorder 1, %s9
      %p112 = scmp.lt.s32.totalorder %s9, 3
      %p113 = pnand %p111, %p112
      %p114 = pneg %p113
      // Predicated region
      $region9: #{alexnet_client_forward.6} parent=5 // pred_check
        _
      $region10: #{alexnet_client_forward.6} parent=5 // pred_check_branch
        %116 = sbr.rel (%p113) target = $region12
      $region11: #{alexnet_client_forward.6} parent=5 // pred_region
        %s117 = ssub.s32 %s9, 1
        // Predicated region
        $region13: #{alexnet_client_forward.6} parent=11 // pred_check
          %p118 = pneg %p56
        $region14: #{alexnet_client_forward.6} parent=11 // pred_check_branch
          %120 = sbr.rel (%p118) target = $region16
        $region15: #{alexnet_client_forward.6} parent=11 // pred_region
          _
        $region16: #{alexnet_client_forward.6} parent=11 // pred_fallthru
          _
        // Predicated region
        $region17: #{alexnet_client_forward.6} parent=11 // pred_check
          %p121 = pneg %p77
        $region18: #{alexnet_client_forward.6} parent=11 // pred_check_branch
          %123 = sbr.rel (%p121) target = $region20
        $region19: #{alexnet_client_forward.6} parent=11 // pred_region
          _
        $region20: #{alexnet_client_forward.6} parent=11 // pred_fallthru
          _
      $region12: #{alexnet_client_forward.6} parent=5 // pred_fallthru
        _
      %p124 = scmp.lt.s32.totalorder %s9, 2
      // Predicated region
      $region21: #{alexnet_client_forward.6} parent=5 // pred_check
        %p125 = pneg %p124
      $region22: #{alexnet_client_forward.6} parent=5 // pred_check_branch
        %127 = sbr.rel (%p125) target = $region24
      $region23: #{alexnet_client_forward.6} parent=5 // pred_region
        // Predicated region
        $region25: #{alexnet_client_forward.6} parent=23 // pred_check
          %p128 = pneg %p29
        $region26: #{alexnet_client_forward.6} parent=23 // pred_check_branch
          %130 = sbr.rel (%p128) target = $region28
        $region27: #{alexnet_client_forward.6} parent=23 // pred_region
          %s131 = smul.u32 8, %s9
          %s132 = ssub.s32 13, %s131
          %p133 = scmp.lt.s32.totalorder %s132, 8
          %s134 = scalar_select %p133, %s132, 8
          %s135 = smul.u32 64, %s134
          %s136 = smul.u32 %s135, 13
          %p137 = scmp.lt.s32.totalorder %s131, 12
          %s138 = scalar_select %p137, %s131, 12
          %s139 = smul.addr %s138, 13
          %s140 = smul.addr %s139, 4
          %s141 = scalar_lea.vmem %s0, %s140
          %s142 = smul.u32 8, %s9
          %s143 = ssub.s32 13, %s142
          %p144 = scmp.lt.s32.totalorder %s143, 8
          %s145 = scalar_select %p144, %s143, 8
          %s146 = smul.u32 64, %s145
          %s147 = smul.u32 %s146, 13
        $region28: #{alexnet_client_forward.6} parent=23 // pred_fallthru
          _
      $region24: #{alexnet_client_forward.6} parent=5 // pred_fallthru
        _
      %p148 = scmp.le.s32.totalorder 1, %s9
      %p149 = scmp.lt.s32.totalorder %s9, 3
      %p150 = pnand %p148, %p149
      %p151 = pneg %p150
      // Predicated region
      $region29: #{alexnet_client_forward.6} parent=5 // pred_check
        _
      $region30: #{alexnet_client_forward.6} parent=5 // pred_check_branch
        %153 = sbr.rel (%p150) target = $region32
      $region31: #{alexnet_client_forward.6} parent=5 // pred_region
        %s154 = ssub.s32 %s9, 1
        %s155 = smul.u32 8, %s14
        %s156 = ssub.s32 13, %s155
        %p157 = scmp.lt.s32.totalorder %s156, 8
        %s158 = scalar_select %p157, %s156, 8
        %s159 = smul.u32 64, %s158
        %s160 = smul.u32 %s159, 13
        %p161 = scmp.lt.s32.totalorder %s155, 12
        %s162 = scalar_select %p161, %s155, 12
        %s163 = smul.addr %s162, 13
        %s164 = smul.addr %s163, 4
        %s165 = scalar_lea.vmem %s0, %s164
        %p166 = pneg %p35
        %p167 = pneg %p32
        %p168 = pneg %p56
        %p169 = pneg %p53
        %p170 = pneg %p77
        %p171 = pneg %p74
        %p172 = pneg %p103
        %p173 = pneg %p100
        %s174 = sand.u32 %s90, 1
        %s175 = sand.u32 %s90, 1
        %s176 = smul.addr %s175, 128
        %s177 = scalar_lea.vmem [#allocation2], %s176
        %s178 = smul.u32 8, %s14
        %s179 = ssub.s32 13, %s178
        %p180 = scmp.lt.s32.totalorder %s179, 8
        %s181 = scalar_select %p180, %s179, 8
        %s182 = smul.u32 64, %s181
        %s183 = smul.u32 %s182, 13
        %p184 = scmp.lt.s32.totalorder %s178, 12
        %s185 = scalar_select %p184, %s178, 12
        %s186 = smul.addr %s185, 13
        %s187 = smul.addr %s186, 4
        %s188 = scalar_lea.vmem %s0, %s187
        %s189 = smul.u32 8, %s14
        %s190 = ssub.s32 13, %s189
        %p191 = scmp.lt.s32.totalorder %s190, 8
        %s192 = scalar_select %p191, %s190, 8
        %s193 = smul.u32 64, %s192
        %s194 = smul.u32 %s193, 13
        %s195 = smul.u32 8, %s14
        %s196 = ssub.s32 13, %s195
        %p197 = scmp.lt.s32.totalorder %s196, 8
        %s198 = scalar_select %p197, %s196, 8
        %s199 = smul.u32 128, %s198
        %s200 = smul.u32 %s199, 2
        %v202 = vld [vmem:[%s188] sm:$0xff]
        %v203 = vld [vmem:[%s188 + $0x8] sm:$0xff]
        %v204 = vld [vmem:[%s188 + $0x10] sm:$0xff]
        %v205 = vld [vmem:[%s188 + $0x18] sm:$0xff]
        %v206 = vld [vmem:[%s188 + $0x20] sm:$0xff]
        %v207 = vld [vmem:[%s188 + $0x28] sm:$0xff]
        %v208 = vld [vmem:[%s188 + $0x30] sm:$0xf]
        %v209 = vld [vmem:[%s188 + $0x34] sm:$0xff]
        %v210 = vld [vmem:[%s188 + $0x3c] sm:$0xff]
        %v211 = vld [vmem:[%s188 + $0x44] sm:$0xff]
        %v212 = vld [vmem:[%s188 + $0x4c] sm:$0xff]
        %v213 = vld [vmem:[%s188 + $0x54] sm:$0xff]
        %v214 = vld [vmem:[%s188 + $0x5c] sm:$0xff]
        %v215 = vld [vmem:[%s188 + $0x64] sm:$0xf]
        %v216 = vld [vmem:[%s188 + $0x68] sm:$0xff]
        %v217 = vld [vmem:[%s188 + $0x70] sm:$0xff]
        %v218 = vld [vmem:[%s188 + $0x78] sm:$0xff]
        %v219 = vld [vmem:[%s188 + $0x80] sm:$0xff]
        %v220 = vld [vmem:[%s188 + $0x88] sm:$0xff]
        %v221 = vld [vmem:[%s188 + $0x90] sm:$0xff]
        %v222 = vld [vmem:[%s188 + $0x98] sm:$0xf]
        %v223 = vld [vmem:[%s188 + $0x9c] sm:$0xff]
        %v224 = vld [vmem:[%s188 + $0xa4] sm:$0xff]
        %v225 = vld [vmem:[%s188 + $0xac] sm:$0xff]
        %v226 = vld [vmem:[%s188 + $0xb4] sm:$0xff]
        %v227 = vld [vmem:[%s188 + $0xbc] sm:$0xff]
        %v228 = vld [vmem:[%s188 + $0xc4] sm:$0xff]
        %v229 = vld [vmem:[%s188 + $0xcc] sm:$0xf]
        %v230 = vld [vmem:[%s188 + $0xd0] sm:$0xff]
        %v231 = vld [vmem:[%s188 + $0xd8] sm:$0xff]
        %v232 = vld [vmem:[%s188 + $0xe0] sm:$0xff]
        %v233 = vld [vmem:[%s188 + $0xe8] sm:$0xff]
        %v234 = vld [vmem:[%s188 + $0xf0] sm:$0xff]
        %v235 = vld [vmem:[%s188 + $0xf8] sm:$0xff]
        %v236 = vld [vmem:[%s188 + $0x100] sm:$0xf]
        %v237 = vld [vmem:[%s188 + $0x104] sm:$0xff]
        %v238 = vld [vmem:[%s188 + $0x10c] sm:$0xff]
        %v239 = vld [vmem:[%s188 + $0x114] sm:$0xff]
        %v240 = vld [vmem:[%s188 + $0x11c] sm:$0xff]
        %v241 = vld [vmem:[%s188 + $0x124] sm:$0xff]
        %v242 = vld [vmem:[%s188 + $0x12c] sm:$0xff]
        %v243 = vld [vmem:[%s188 + $0x134] sm:$0xf]
        %v244 = vld [vmem:[%s188 + $0x138] sm:$0xff]
        %v245 = vld [vmem:[%s188 + $0x140] sm:$0xff]
        %v246 = vld [vmem:[%s188 + $0x148] sm:$0xff]
        %v247 = vld [vmem:[%s188 + $0x150] sm:$0xff]
        %v248 = vld [vmem:[%s188 + $0x158] sm:$0xff]
        %v249 = vld [vmem:[%s188 + $0x160] sm:$0xff]
        %v250 = vld [vmem:[%s188 + $0x168] sm:$0xf]
        %v251 = vld [vmem:[%s188 + $0x16c] sm:$0xff]
        %v252 = vld [vmem:[%s188 + $0x174] sm:$0xff]
        %v253 = vld [vmem:[%s188 + $0x17c] sm:$0xff]
        %v254 = vld [vmem:[%s188 + $0x184] sm:$0xff]
        %v255 = vld [vmem:[%s188 + $0x18c] sm:$0xff]
        %v256 = vld [vmem:[%s188 + $0x194] sm:$0xff]
        %v257 = vld [vmem:[%s188 + $0x19c] sm:$0xf]
        %v258 = vld [vmem:[%s1] sm:$0xff]
        %v259 = vld [vmem:[%s1 + $0x8] sm:$0xff]
        %v260 = vld [vmem:[%s1 + $0x10] sm:$0xff]
        %v261 = vld [vmem:[%s1 + $0x18] sm:$0xff]
        %v262 = vld [vmem:[%s1 + $0x20] sm:$0xff]
        %v263 = vld [vmem:[%s1 + $0x28] sm:$0xff]
        %v264 = vld [vmem:[%s1 + $0x30] sm:$0xff]
        %v265 = vld [vmem:[%s1 + $0x38] sm:$0xff]
        %v266 = vld [vmem:[%s1 + $0x40] sm:$0xff]
        %v267 = vld [vmem:[%s1 + $0x48] sm:$0xff]
        %v268 = vld [vmem:[%s1 + $0x50] sm:$0xff]
        %v269 = vld [vmem:[%s1 + $0x58] sm:$0xff]
        %v270 = vld [vmem:[%s1 + $0x60] sm:$0xff]
        %v271 = vld [vmem:[%s1 + $0x68] sm:$0xff]
        %v272 = vld [vmem:[%s1 + $0x70] sm:$0xff]
        %v273 = vld [vmem:[%s1 + $0x78] sm:$0xff]
        %v274 = vld [vmem:[%s1 + $0x80] sm:$0xff]
        %v275 = vld [vmem:[%s1 + $0x88] sm:$0xff]
        %v276 = vld [vmem:[%s1 + $0x90] sm:$0xff]
        %v277 = vld [vmem:[%s1 + $0x98] sm:$0xff]
        %v278 = vld [vmem:[%s1 + $0xa0] sm:$0xff]
        %v279 = vld [vmem:[%s1 + $0xa8] sm:$0xff]
        %v280 = vld [vmem:[%s1 + $0xb0] sm:$0xff]
        %v281 = vld [vmem:[%s1 + $0xb8] sm:$0xff]
        %v282 = vld [vmem:[%s1 + $0xc0] sm:$0xff]
        %v283 = vld [vmem:[%s1 + $0xc8] sm:$0xff]
        %v284 = vld [vmem:[%s1 + $0xd0] sm:$0xff]
        %v285 = vld [vmem:[%s1 + $0xd8] sm:$0xff]
        %v286 = vld [vmem:[%s1 + $0xe0] sm:$0xff]
        %v287 = vld [vmem:[%s1 + $0xe8] sm:$0xff]
        %v288 = vld [vmem:[%s1 + $0xf0] sm:$0xff]
        %v289 = vld [vmem:[%s1 + $0xf8] sm:$0xff]
        %v290 = vld [vmem:[%s1 + $0x100] sm:$0xff]
        %v291 = vld [vmem:[%s1 + $0x108] sm:$0xff]
        %v292 = vld [vmem:[%s1 + $0x110] sm:$0xff]
        %v293 = vld [vmem:[%s1 + $0x118] sm:$0xff]
        %v294 = vld [vmem:[%s1 + $0x120] sm:$0xff]
        %v295 = vld [vmem:[%s1 + $0x128] sm:$0xff]
        %v296 = vld [vmem:[%s1 + $0x130] sm:$0xff]
        %v297 = vld [vmem:[%s1 + $0x138] sm:$0xff]
        %v298 = vld [vmem:[%s1 + $0x140] sm:$0xff]
        %v299 = vld [vmem:[%s1 + $0x148] sm:$0xff]
        %v300 = vld [vmem:[%s1 + $0x150] sm:$0xff]
        %v301 = vld [vmem:[%s1 + $0x158] sm:$0xff]
        %v302 = vld [vmem:[%s1 + $0x160] sm:$0xff]
        %v303 = vld [vmem:[%s1 + $0x168] sm:$0xff]
        %v304 = vld [vmem:[%s1 + $0x170] sm:$0xff]
        %v305 = vld [vmem:[%s1 + $0x178] sm:$0xff]
        %v306 = vld [vmem:[%s1 + $0x180] sm:$0xff]
        %v307 = vld [vmem:[%s1 + $0x188] sm:$0xff]
        %v308 = vld [vmem:[%s1 + $0x190] sm:$0xff]
        %v309 = vld [vmem:[%s1 + $0x198] sm:$0xff]
        %v310 = vld [vmem:[%s1 + $0x1a0] sm:$0xff]
        %v311 = vld [vmem:[%s1 + $0x1a8] sm:$0xff]
        %v312 = vld [vmem:[%s1 + $0x1b0] sm:$0xff]
        %v313 = vld [vmem:[%s1 + $0x1b8] sm:$0xff]
        %v314 = vld [vmem:[%s1 + $0x1c0] sm:$0xff]
        %v315 = vld [vmem:[%s1 + $0x1c8] sm:$0xff]
        %v316 = vld [vmem:[%s1 + $0x1d0] sm:$0xff]
        %v317 = vld [vmem:[%s1 + $0x1d8] sm:$0xff]
        %v318 = vld [vmem:[%s1 + $0x1e0] sm:$0xff]
        %v319 = vld [vmem:[%s1 + $0x1e8] sm:$0xff]
        %v320 = vld [vmem:[%s1 + $0x1f0] sm:$0xff]
        %v321 = vld [vmem:[%s1 + $0x1f8] sm:$0xff]
        %v322 = vld [vmem:[%s1 + $0x200] sm:$0xff]
        %v323 = vld [vmem:[%s1 + $0x208] sm:$0xff]
        %v324 = vld [vmem:[%s1 + $0x210] sm:$0xff]
        %v325 = vld [vmem:[%s1 + $0x218] sm:$0xff]
        %v326 = vld [vmem:[%s1 + $0x220] sm:$0xff]
        %v327 = vld [vmem:[%s1 + $0x228] sm:$0xff]
        %v328 = vld [vmem:[%s1 + $0x230] sm:$0xff]
        %v329 = vld [vmem:[%s1 + $0x238] sm:$0xff]
        %v330 = vld [vmem:[%s1 + $0x240] sm:$0xff]
        %v331 = vld [vmem:[%s1 + $0x248] sm:$0xff]
        %v332 = vld [vmem:[%s1 + $0x250] sm:$0xff]
        %v333 = vld [vmem:[%s1 + $0x258] sm:$0xff]
        %v334 = vld [vmem:[%s1 + $0x260] sm:$0xff]
        %v335 = vld [vmem:[%s1 + $0x268] sm:$0xff]
        %v336 = vld [vmem:[%s1 + $0x270] sm:$0xff]
        %v337 = vld [vmem:[%s1 + $0x278] sm:$0xff]
        %v338 = vld [vmem:[%s1 + $0x280] sm:$0xff]
        %v339 = vld [vmem:[%s1 + $0x288] sm:$0xff]
        %v340 = vld [vmem:[%s1 + $0x290] sm:$0xff]
        %v341 = vld [vmem:[%s1 + $0x298] sm:$0xff]
        %v342 = vld [vmem:[%s1 + $0x2a0] sm:$0xff]
        %v343 = vld [vmem:[%s1 + $0x2a8] sm:$0xff]
        %v344 = vld [vmem:[%s1 + $0x2b0] sm:$0xff]
        %v345 = vld [vmem:[%s1 + $0x2b8] sm:$0xff]
        %v346 = vld [vmem:[%s1 + $0x2c0] sm:$0xff]
        %v347 = vld [vmem:[%s1 + $0x2c8] sm:$0xff]
        %v348 = vld [vmem:[%s1 + $0x2d0] sm:$0xff]
        %v349 = vld [vmem:[%s1 + $0x2d8] sm:$0xff]
        %v350 = vld [vmem:[%s1 + $0x2e0] sm:$0xff]
        %v351 = vld [vmem:[%s1 + $0x2e8] sm:$0xff]
        %v352 = vld [vmem:[%s1 + $0x2f0] sm:$0xff]
        %v353 = vld [vmem:[%s1 + $0x2f8] sm:$0xff]
        %v354 = vld [vmem:[%s1 + $0x300] sm:$0xff]
        %v355 = vld [vmem:[%s1 + $0x308] sm:$0xff]
        %v356 = vld [vmem:[%s1 + $0x310] sm:$0xff]
        %v357 = vld [vmem:[%s1 + $0x318] sm:$0xff]
        %v358 = vld [vmem:[%s1 + $0x320] sm:$0xff]
        %v359 = vld [vmem:[%s1 + $0x328] sm:$0xff]
        %v360 = vld [vmem:[%s1 + $0x330] sm:$0xff]
        %v361 = vld [vmem:[%s1 + $0x338] sm:$0xff]
        %v362 = vld [vmem:[%s1 + $0x340] sm:$0xff]
        %v363 = vld [vmem:[%s1 + $0x348] sm:$0xff]
        %v364 = vld [vmem:[%s1 + $0x350] sm:$0xff]
        %v365 = vld [vmem:[%s1 + $0x358] sm:$0xff]
        %v366 = vld [vmem:[%s1 + $0x360] sm:$0xff]
        %v367 = vld [vmem:[%s1 + $0x368] sm:$0xff]
        %v368 = vld [vmem:[%s1 + $0x370] sm:$0xff]
        %v369 = vld [vmem:[%s1 + $0x378] sm:$0xff]
        %v370 = vld [vmem:[%s1 + $0x380] sm:$0xff]
        %v371 = vld [vmem:[%s1 + $0x388] sm:$0xff]
        %v372 = vld [vmem:[%s1 + $0x390] sm:$0xff]
        %v373 = vld [vmem:[%s1 + $0x398] sm:$0xff]
        %v374 = vld [vmem:[%s1 + $0x3a0] sm:$0xff]
        %v375 = vld [vmem:[%s1 + $0x3a8] sm:$0xff]
        %v376 = vld [vmem:[%s1 + $0x3b0] sm:$0xff]
        %v377 = vld [vmem:[%s1 + $0x3b8] sm:$0xff]
        %v378 = vld [vmem:[%s1 + $0x3c0] sm:$0xff]
        %v379 = vld [vmem:[%s1 + $0x3c8] sm:$0xff]
        %v380 = vld [vmem:[%s1 + $0x3d0] sm:$0xff]
        %v381 = vld [vmem:[%s1 + $0x3d8] sm:$0xff]
        %v382 = vld [vmem:[%s1 + $0x3e0] sm:$0xff]
        %v383 = vld [vmem:[%s1 + $0x3e8] sm:$0xff]
        %v384 = vld [vmem:[%s1 + $0x3f0] sm:$0xff]
        %v385 = vld [vmem:[%s1 + $0x3f8] sm:$0xff]
        %v386 = vld [vmem:[%s1 + $0x400] sm:$0xff]
        %v387 = vld [vmem:[%s1 + $0x408] sm:$0xff]
        %v388 = vld [vmem:[%s1 + $0x410] sm:$0xff]
        %v389 = vld [vmem:[%s1 + $0x418] sm:$0xff]
        %v390 = vld [vmem:[%s1 + $0x420] sm:$0xff]
        %v391 = vld [vmem:[%s1 + $0x428] sm:$0xff]
        %v392 = vld [vmem:[%s1 + $0x430] sm:$0xff]
        %v393 = vld [vmem:[%s1 + $0x438] sm:$0xff]
        %v394 = vld [vmem:[%s1 + $0x440] sm:$0xff]
        %v395 = vld [vmem:[%s1 + $0x448] sm:$0xff]
        %v396 = vld [vmem:[%s1 + $0x450] sm:$0xff]
        %v397 = vld [vmem:[%s1 + $0x458] sm:$0xff]
        %v398 = vld [vmem:[%s1 + $0x460] sm:$0xff]
        %v399 = vld [vmem:[%s1 + $0x468] sm:$0xff]
        %v400 = vld [vmem:[%s1 + $0x470] sm:$0xff]
        %v401 = vld [vmem:[%s1 + $0x478] sm:$0xff]
        %v402 = vld [vmem:[%s1 + $0x480] sm:$0xff]
        %v403 = vld [vmem:[%s1 + $0x488] sm:$0xff]
        %v404 = vld [vmem:[%s1 + $0x490] sm:$0xff]
        %v405 = vld [vmem:[%s1 + $0x498] sm:$0xff]
        %v406 = vld [vmem:[%s1 + $0x4a0] sm:$0xff]
        %v407 = vld [vmem:[%s1 + $0x4a8] sm:$0xff]
        %v408 = vld [vmem:[%s1 + $0x4b0] sm:$0xff]
        %v409 = vld [vmem:[%s1 + $0x4b8] sm:$0xff]
        %v410 = vld [vmem:[%s1 + $0x4c0] sm:$0xff]
        %v411 = vld [vmem:[%s1 + $0x4c8] sm:$0xff]
        %v412 = vld [vmem:[%s1 + $0x4d0] sm:$0xff]
        %v413 = vld [vmem:[%s1 + $0x4d8] sm:$0xff]
        %v414 = vld [vmem:[%s1 + $0x4e0] sm:$0xff]
        %v415 = vld [vmem:[%s1 + $0x4e8] sm:$0xff]
        %v416 = vld [vmem:[%s1 + $0x4f0] sm:$0xff]
        %v417 = vld [vmem:[%s1 + $0x4f8] sm:$0xff]
        %v418 = vld [vmem:[%s1 + $0x500] sm:$0xff]
        %v419 = vld [vmem:[%s1 + $0x508] sm:$0xff]
        %v420 = vld [vmem:[%s1 + $0x510] sm:$0xff]
        %v421 = vld [vmem:[%s1 + $0x518] sm:$0xff]
        %v422 = vld [vmem:[%s1 + $0x520] sm:$0xff]
        %v423 = vld [vmem:[%s1 + $0x528] sm:$0xff]
        %v424 = vld [vmem:[%s1 + $0x530] sm:$0xff]
        %v425 = vld [vmem:[%s1 + $0x538] sm:$0xff]
        %v426 = vld [vmem:[%s1 + $0x540] sm:$0xff]
        %v427 = vld [vmem:[%s1 + $0x548] sm:$0xff]
        %v428 = vld [vmem:[%s1 + $0x550] sm:$0xff]
        %v429 = vld [vmem:[%s1 + $0x558] sm:$0xff]
        %v430 = vld [vmem:[%s1 + $0x560] sm:$0xff]
        %v431 = vld [vmem:[%s1 + $0x568] sm:$0xff]
        %v432 = vld [vmem:[%s1 + $0x570] sm:$0xff]
        %v433 = vld [vmem:[%s1 + $0x578] sm:$0xff]
        %v434 = vld [vmem:[%s1 + $0x580] sm:$0xff]
        %v435 = vld [vmem:[%s1 + $0x588] sm:$0xff]
        %v436 = vld [vmem:[%s1 + $0x590] sm:$0xff]
        %v437 = vld [vmem:[%s1 + $0x598] sm:$0xff]
        %v438 = vld [vmem:[%s1 + $0x5a0] sm:$0xff]
        %v439 = vld [vmem:[%s1 + $0x5a8] sm:$0xff]
        %v440 = vld [vmem:[%s1 + $0x5b0] sm:$0xff]
        %v441 = vld [vmem:[%s1 + $0x5b8] sm:$0xff]
        %v442 = vld [vmem:[%s1 + $0x5c0] sm:$0xff]
        %v443 = vld [vmem:[%s1 + $0x5c8] sm:$0xff]
        %v444 = vld [vmem:[%s1 + $0x5d0] sm:$0xff]
        %v445 = vld [vmem:[%s1 + $0x5d8] sm:$0xff]
        %v446 = vld [vmem:[%s1 + $0x5e0] sm:$0xff]
        %v447 = vld [vmem:[%s1 + $0x5e8] sm:$0xff]
        %v448 = vld [vmem:[%s1 + $0x5f0] sm:$0xff]
        %v449 = vld [vmem:[%s1 + $0x5f8] sm:$0xff]
        %v450 = vld [vmem:[%s1 + $0x600] sm:$0xff]
        %v451 = vld [vmem:[%s1 + $0x608] sm:$0xff]
        %v452 = vld [vmem:[%s1 + $0x610] sm:$0xff]
        %v453 = vld [vmem:[%s1 + $0x618] sm:$0xff]
        %v454 = vld [vmem:[%s1 + $0x620] sm:$0xff]
        %v455 = vld [vmem:[%s1 + $0x628] sm:$0xff]
        %v456 = vld [vmem:[%s1 + $0x630] sm:$0xff]
        %v457 = vld [vmem:[%s1 + $0x638] sm:$0xff]
        %v458 = vld [vmem:[%s1 + $0x640] sm:$0xff]
        %v459 = vld [vmem:[%s1 + $0x648] sm:$0xff]
        %v460 = vld [vmem:[%s1 + $0x650] sm:$0xff]
        %v461 = vld [vmem:[%s1 + $0x658] sm:$0xff]
        %v462 = vld [vmem:[%s1 + $0x660] sm:$0xff]
        %v463 = vld [vmem:[%s1 + $0x668] sm:$0xff]
        %v464 = vld [vmem:[%s1 + $0x670] sm:$0xff]
        %v465 = vld [vmem:[%s1 + $0x678] sm:$0xff]
        %v466 = vld [vmem:[%s2] sm:$0x3]
        %v468 = vlaneseq
        %v469 = vshrl.u32 %v468, 7
        %v470 = vsub.s32 0, %v469
        %v471 = vrot.slane %v466, %v470
        %v472 = vlaneseq
        %v473 = vshrl.u32 %v472, 7
        %v474 = vsub.s32 1, %v473
        %v475 = vrot.slane %v466, %v474
        %v534 = vunpack.c.l.b16 %v202
        %v535 = vunpack.c.h.b16 %v202
        %v536 = vunpack.c.l.b16 %v203
        %v537 = vunpack.c.h.b16 %v203
        %v538 = vunpack.c.l.b16 %v204
        %v539 = vunpack.c.h.b16 %v204
        %v540 = vunpack.c.l.b16 %v205
        %v541 = vunpack.c.h.b16 %v205
        %v542 = vunpack.c.l.b16 %v206
        %v543 = vunpack.c.h.b16 %v206
        %v544 = vunpack.c.l.b16 %v207
        %v545 = vunpack.c.h.b16 %v207
        %v546 = vunpack.c.l.b16 %v208
        %v547 = vunpack.c.l.b16 %v209
        %v548 = vunpack.c.h.b16 %v209
        %v549 = vunpack.c.l.b16 %v210
        %v550 = vunpack.c.h.b16 %v210
        %v551 = vunpack.c.l.b16 %v211
        %v552 = vunpack.c.h.b16 %v211
        %v553 = vunpack.c.l.b16 %v212
        %v554 = vunpack.c.h.b16 %v212
        %v555 = vunpack.c.l.b16 %v213
        %v556 = vunpack.c.h.b16 %v213
        %v557 = vunpack.c.l.b16 %v214
        %v558 = vunpack.c.h.b16 %v214
        %v559 = vunpack.c.l.b16 %v215
        %v560 = vunpack.c.l.b16 %v216
        %v561 = vunpack.c.h.b16 %v216
        %v562 = vunpack.c.l.b16 %v217
        %v563 = vunpack.c.h.b16 %v217
        %v564 = vunpack.c.l.b16 %v218
        %v565 = vunpack.c.h.b16 %v218
        %v566 = vunpack.c.l.b16 %v219
        %v567 = vunpack.c.h.b16 %v219
        %v568 = vunpack.c.l.b16 %v220
        %v569 = vunpack.c.h.b16 %v220
        %v570 = vunpack.c.l.b16 %v221
        %v571 = vunpack.c.h.b16 %v221
        %v572 = vunpack.c.l.b16 %v222
        %v573 = vunpack.c.l.b16 %v223
        %v574 = vunpack.c.h.b16 %v223
        %v575 = vunpack.c.l.b16 %v224
        %v576 = vunpack.c.h.b16 %v224
        %v577 = vunpack.c.l.b16 %v225
        %v578 = vunpack.c.h.b16 %v225
        %v579 = vunpack.c.l.b16 %v226
        %v580 = vunpack.c.h.b16 %v226
        %v581 = vunpack.c.l.b16 %v227
        %v582 = vunpack.c.h.b16 %v227
        %v583 = vunpack.c.l.b16 %v228
        %v584 = vunpack.c.h.b16 %v228
        %v585 = vunpack.c.l.b16 %v229
        %v586 = vunpack.c.l.b16 %v230
        %v587 = vunpack.c.h.b16 %v230
        %v588 = vunpack.c.l.b16 %v231
        %v589 = vunpack.c.h.b16 %v231
        %v590 = vunpack.c.l.b16 %v232
        %v591 = vunpack.c.h.b16 %v232
        %v592 = vunpack.c.l.b16 %v233
        %v593 = vunpack.c.h.b16 %v233
        %v594 = vunpack.c.l.b16 %v234
        %v595 = vunpack.c.h.b16 %v234
        %v596 = vunpack.c.l.b16 %v235
        %v597 = vunpack.c.h.b16 %v235
        %v598 = vunpack.c.l.b16 %v236
        %v599 = vunpack.c.l.b16 %v237
        %v600 = vunpack.c.h.b16 %v237
        %v601 = vunpack.c.l.b16 %v238
        %v602 = vunpack.c.h.b16 %v238
        %v603 = vunpack.c.l.b16 %v239
        %v604 = vunpack.c.h.b16 %v239
        %v605 = vunpack.c.l.b16 %v240
        %v606 = vunpack.c.h.b16 %v240
        %v607 = vunpack.c.l.b16 %v241
        %v608 = vunpack.c.h.b16 %v241
        %v609 = vunpack.c.l.b16 %v242
        %v610 = vunpack.c.h.b16 %v242
        %v611 = vunpack.c.l.b16 %v243
        %v612 = vunpack.c.l.b16 %v244
        %v613 = vunpack.c.h.b16 %v244
        %v614 = vunpack.c.l.b16 %v245
        %v615 = vunpack.c.h.b16 %v245
        %v616 = vunpack.c.l.b16 %v246
        %v617 = vunpack.c.h.b16 %v246
        %v618 = vunpack.c.l.b16 %v247
        %v619 = vunpack.c.h.b16 %v247
        %v620 = vunpack.c.l.b16 %v248
        %v621 = vunpack.c.h.b16 %v248
        %v622 = vunpack.c.l.b16 %v249
        %v623 = vunpack.c.h.b16 %v249
        %v624 = vunpack.c.l.b16 %v250
        %v625 = vunpack.c.l.b16 %v251
        %v626 = vunpack.c.h.b16 %v251
        %v627 = vunpack.c.l.b16 %v252
        %v628 = vunpack.c.h.b16 %v252
        %v629 = vunpack.c.l.b16 %v253
        %v630 = vunpack.c.h.b16 %v253
        %v631 = vunpack.c.l.b16 %v254
        %v632 = vunpack.c.h.b16 %v254
        %v633 = vunpack.c.l.b16 %v255
        %v634 = vunpack.c.h.b16 %v255
        %v635 = vunpack.c.l.b16 %v256
        %v636 = vunpack.c.h.b16 %v256
        %v637 = vunpack.c.l.b16 %v257
        %v638 = vpack.c.b16 %v547, %v534
        %v639 = vpack.c.b16 %v548, %v535
        %v640 = vpack.c.b16 %v549, %v536
        %v641 = vpack.c.b16 %v550, %v537
        %v642 = vpack.c.b16 %v551, %v538
        %v643 = vpack.c.b16 %v552, %v539
        %v644 = vpack.c.b16 %v553, %v540
        %v645 = vpack.c.b16 %v554, %v541
        %v646 = vpack.c.b16 %v555, %v542
        %v647 = vpack.c.b16 %v556, %v543
        %v648 = vpack.c.b16 %v557, %v544
        %v649 = vpack.c.b16 %v558, %v545
        %v650 = vpack.c.b16 %v559, %v546
        %v651 = vpack.c.b16 %v573, %v560
        %v652 = vpack.c.b16 %v574, %v561
        %v653 = vpack.c.b16 %v575, %v562
        %v654 = vpack.c.b16 %v576, %v563
        %v655 = vpack.c.b16 %v577, %v564
        %v656 = vpack.c.b16 %v578, %v565
        %v657 = vpack.c.b16 %v579, %v566
        %v658 = vpack.c.b16 %v580, %v567
        %v659 = vpack.c.b16 %v581, %v568
        %v660 = vpack.c.b16 %v582, %v569
        %v661 = vpack.c.b16 %v583, %v570
        %v662 = vpack.c.b16 %v584, %v571
        %v663 = vpack.c.b16 %v585, %v572
        %v664 = vpack.c.b16 %v599, %v586
        %v665 = vpack.c.b16 %v600, %v587
        %v666 = vpack.c.b16 %v601, %v588
        %v667 = vpack.c.b16 %v602, %v589
        %v668 = vpack.c.b16 %v603, %v590
        %v669 = vpack.c.b16 %v604, %v591
        %v670 = vpack.c.b16 %v605, %v592
        %v671 = vpack.c.b16 %v606, %v593
        %v672 = vpack.c.b16 %v607, %v594
        %v673 = vpack.c.b16 %v608, %v595
        %v674 = vpack.c.b16 %v609, %v596
        %v675 = vpack.c.b16 %v610, %v597
        %v676 = vpack.c.b16 %v611, %v598
        %v677 = vpack.c.b16 %v625, %v612
        %v678 = vpack.c.b16 %v626, %v613
        %v679 = vpack.c.b16 %v627, %v614
        %v680 = vpack.c.b16 %v628, %v615
        %v681 = vpack.c.b16 %v629, %v616
        %v682 = vpack.c.b16 %v630, %v617
        %v683 = vpack.c.b16 %v631, %v618
        %v684 = vpack.c.b16 %v632, %v619
        %v685 = vpack.c.b16 %v633, %v620
        %v686 = vpack.c.b16 %v634, %v621
        %v687 = vpack.c.b16 %v635, %v622
        %v688 = vpack.c.b16 %v636, %v623
        %v689 = vpack.c.b16 %v637, %v624
        %v950 = vunpack.c.l.b16 %v258
        %v951 = vunpack.c.h.b16 %v258
        %v952 = vunpack.c.l.b16 %v259
        %v953 = vunpack.c.h.b16 %v259
        %v954 = vunpack.c.l.b16 %v260
        %v955 = vunpack.c.h.b16 %v260
        %v956 = vunpack.c.l.b16 %v261
        %v957 = vunpack.c.h.b16 %v261
        %v958 = vunpack.c.l.b16 %v262
        %v959 = vunpack.c.h.b16 %v262
        %v960 = vunpack.c.l.b16 %v263
        %v961 = vunpack.c.h.b16 %v263
        %v962 = vunpack.c.l.b16 %v264
        %v963 = vunpack.c.h.b16 %v264
        %v964 = vunpack.c.l.b16 %v265
        %v965 = vunpack.c.h.b16 %v265
        %v966 = vunpack.c.l.b16 %v266
        %v967 = vunpack.c.h.b16 %v266
        %v968 = vunpack.c.l.b16 %v267
        %v969 = vunpack.c.h.b16 %v267
        %v970 = vunpack.c.l.b16 %v268
        %v971 = vunpack.c.h.b16 %v268
        %v972 = vunpack.c.l.b16 %v269
        %v973 = vunpack.c.h.b16 %v269
        %v974 = vunpack.c.l.b16 %v270
        %v975 = vunpack.c.h.b16 %v270
        %v976 = vunpack.c.l.b16 %v271
        %v977 = vunpack.c.h.b16 %v271
        %v978 = vunpack.c.l.b16 %v272
        %v979 = vunpack.c.h.b16 %v272
        %v980 = vunpack.c.l.b16 %v273
        %v981 = vunpack.c.h.b16 %v273
        %v982 = vunpack.c.l.b16 %v274
        %v983 = vunpack.c.h.b16 %v274
        %v984 = vunpack.c.l.b16 %v275
        %v985 = vunpack.c.h.b16 %v275
        %v986 = vunpack.c.l.b16 %v276
        %v987 = vunpack.c.h.b16 %v276
        %v988 = vunpack.c.l.b16 %v277
        %v989 = vunpack.c.h.b16 %v277
        %v990 = vunpack.c.l.b16 %v278
        %v991 = vunpack.c.h.b16 %v278
        %v992 = vunpack.c.l.b16 %v279
        %v993 = vunpack.c.h.b16 %v279
        %v994 = vunpack.c.l.b16 %v280
        %v995 = vunpack.c.h.b16 %v280
        %v996 = vunpack.c.l.b16 %v281
        %v997 = vunpack.c.h.b16 %v281
        %v998 = vunpack.c.l.b16 %v282
        %v999 = vunpack.c.h.b16 %v282
        %v1000 = vunpack.c.l.b16 %v283
        %v1001 = vunpack.c.h.b16 %v283
        %v1002 = vunpack.c.l.b16 %v284
        %v1003 = vunpack.c.h.b16 %v284
        %v1004 = vunpack.c.l.b16 %v285
        %v1005 = vunpack.c.h.b16 %v285
        %v1006 = vunpack.c.l.b16 %v286
        %v1007 = vunpack.c.h.b16 %v286
        %v1008 = vunpack.c.l.b16 %v287
        %v1009 = vunpack.c.h.b16 %v287
        %v1010 = vunpack.c.l.b16 %v288
        %v1011 = vunpack.c.h.b16 %v288
        %v1012 = vunpack.c.l.b16 %v289
        %v1013 = vunpack.c.h.b16 %v289
        %v1014 = vunpack.c.l.b16 %v290
        %v1015 = vunpack.c.h.b16 %v290
        %v1016 = vunpack.c.l.b16 %v291
        %v1017 = vunpack.c.h.b16 %v291
        %v1018 = vunpack.c.l.b16 %v292
        %v1019 = vunpack.c.h.b16 %v292
        %v1020 = vunpack.c.l.b16 %v293
        %v1021 = vunpack.c.h.b16 %v293
        %v1022 = vunpack.c.l.b16 %v294
        %v1023 = vunpack.c.h.b16 %v294
        %v1024 = vunpack.c.l.b16 %v295
        %v1025 = vunpack.c.h.b16 %v295
        %v1026 = vunpack.c.l.b16 %v296
        %v1027 = vunpack.c.h.b16 %v296
        %v1028 = vunpack.c.l.b16 %v297
        %v1029 = vunpack.c.h.b16 %v297
        %v1030 = vunpack.c.l.b16 %v298
        %v1031 = vunpack.c.h.b16 %v298
        %v1032 = vunpack.c.l.b16 %v299
        %v1033 = vunpack.c.h.b16 %v299
        %v1034 = vunpack.c.l.b16 %v300
        %v1035 = vunpack.c.h.b16 %v300
        %v1036 = vunpack.c.l.b16 %v301
        %v1037 = vunpack.c.h.b16 %v301
        %v1038 = vunpack.c.l.b16 %v302
        %v1039 = vunpack.c.h.b16 %v302
        %v1040 = vunpack.c.l.b16 %v303
        %v1041 = vunpack.c.h.b16 %v303
        %v1042 = vunpack.c.l.b16 %v304
        %v1043 = vunpack.c.h.b16 %v304
        %v1044 = vunpack.c.l.b16 %v305
        %v1045 = vunpack.c.h.b16 %v305
        %v1046 = vunpack.c.l.b16 %v306
        %v1047 = vunpack.c.h.b16 %v306
        %v1048 = vunpack.c.l.b16 %v307
        %v1049 = vunpack.c.h.b16 %v307
        %v1050 = vunpack.c.l.b16 %v308
        %v1051 = vunpack.c.h.b16 %v308
        %v1052 = vunpack.c.l.b16 %v309
        %v1053 = vunpack.c.h.b16 %v309
        %v1054 = vunpack.c.l.b16 %v310
        %v1055 = vunpack.c.h.b16 %v310
        %v1056 = vunpack.c.l.b16 %v311
        %v1057 = vunpack.c.h.b16 %v311
        %v1058 = vunpack.c.l.b16 %v312
        %v1059 = vunpack.c.h.b16 %v312
        %v1060 = vunpack.c.l.b16 %v313
        %v1061 = vunpack.c.h.b16 %v313
        %v1062 = vunpack.c.l.b16 %v314
        %v1063 = vunpack.c.h.b16 %v314
        %v1064 = vunpack.c.l.b16 %v315
        %v1065 = vunpack.c.h.b16 %v315
        %v1066 = vunpack.c.l.b16 %v316
        %v1067 = vunpack.c.h.b16 %v316
        %v1068 = vunpack.c.l.b16 %v317
        %v1069 = vunpack.c.h.b16 %v317
        %v1070 = vunpack.c.l.b16 %v318
        %v1071 = vunpack.c.h.b16 %v318
        %v1072 = vunpack.c.l.b16 %v319
        %v1073 = vunpack.c.h.b16 %v319
        %v1074 = vunpack.c.l.b16 %v320
        %v1075 = vunpack.c.h.b16 %v320
        %v1076 = vunpack.c.l.b16 %v321
        %v1077 = vunpack.c.h.b16 %v321
        %v1078 = vunpack.c.l.b16 %v322
        %v1079 = vunpack.c.h.b16 %v322
        %v1080 = vunpack.c.l.b16 %v323
        %v1081 = vunpack.c.h.b16 %v323
        %v1082 = vunpack.c.l.b16 %v324
        %v1083 = vunpack.c.h.b16 %v324
        %v1084 = vunpack.c.l.b16 %v325
        %v1085 = vunpack.c.h.b16 %v325
        %v1086 = vunpack.c.l.b16 %v326
        %v1087 = vunpack.c.h.b16 %v326
        %v1088 = vunpack.c.l.b16 %v327
        %v1089 = vunpack.c.h.b16 %v327
        %v1090 = vunpack.c.l.b16 %v328
        %v1091 = vunpack.c.h.b16 %v328
        %v1092 = vunpack.c.l.b16 %v329
        %v1093 = vunpack.c.h.b16 %v329
        %v1094 = vunpack.c.l.b16 %v330
        %v1095 = vunpack.c.h.b16 %v330
        %v1096 = vunpack.c.l.b16 %v331
        %v1097 = vunpack.c.h.b16 %v331
        %v1098 = vunpack.c.l.b16 %v332
        %v1099 = vunpack.c.h.b16 %v332
        %v1100 = vunpack.c.l.b16 %v333
        %v1101 = vunpack.c.h.b16 %v333
        %v1102 = vunpack.c.l.b16 %v334
        %v1103 = vunpack.c.h.b16 %v334
        %v1104 = vunpack.c.l.b16 %v335
        %v1105 = vunpack.c.h.b16 %v335
        %v1106 = vunpack.c.l.b16 %v336
        %v1107 = vunpack.c.h.b16 %v336
        %v1108 = vunpack.c.l.b16 %v337
        %v1109 = vunpack.c.h.b16 %v337
        %v1110 = vunpack.c.l.b16 %v338
        %v1111 = vunpack.c.h.b16 %v338
        %v1112 = vunpack.c.l.b16 %v339
        %v1113 = vunpack.c.h.b16 %v339
        %v1114 = vunpack.c.l.b16 %v340
        %v1115 = vunpack.c.h.b16 %v340
        %v1116 = vunpack.c.l.b16 %v341
        %v1117 = vunpack.c.h.b16 %v341
        %v1118 = vunpack.c.l.b16 %v342
        %v1119 = vunpack.c.h.b16 %v342
        %v1120 = vunpack.c.l.b16 %v343
        %v1121 = vunpack.c.h.b16 %v343
        %v1122 = vunpack.c.l.b16 %v344
        %v1123 = vunpack.c.h.b16 %v344
        %v1124 = vunpack.c.l.b16 %v345
        %v1125 = vunpack.c.h.b16 %v345
        %v1126 = vunpack.c.l.b16 %v346
        %v1127 = vunpack.c.h.b16 %v346
        %v1128 = vunpack.c.l.b16 %v347
        %v1129 = vunpack.c.h.b16 %v347
        %v1130 = vunpack.c.l.b16 %v348
        %v1131 = vunpack.c.h.b16 %v348
        %v1132 = vunpack.c.l.b16 %v349
        %v1133 = vunpack.c.h.b16 %v349
        %v1134 = vunpack.c.l.b16 %v350
        %v1135 = vunpack.c.h.b16 %v350
        %v1136 = vunpack.c.l.b16 %v351
        %v1137 = vunpack.c.h.b16 %v351
        %v1138 = vunpack.c.l.b16 %v352
        %v1139 = vunpack.c.h.b16 %v352
        %v1140 = vunpack.c.l.b16 %v353
        %v1141 = vunpack.c.h.b16 %v353
        %v1142 = vunpack.c.l.b16 %v354
        %v1143 = vunpack.c.h.b16 %v354
        %v1144 = vunpack.c.l.b16 %v355
        %v1145 = vunpack.c.h.b16 %v355
        %v1146 = vunpack.c.l.b16 %v356
        %v1147 = vunpack.c.h.b16 %v356
        %v1148 = vunpack.c.l.b16 %v357
        %v1149 = vunpack.c.h.b16 %v357
        %v1150 = vunpack.c.l.b16 %v358
        %v1151 = vunpack.c.h.b16 %v358
        %v1152 = vunpack.c.l.b16 %v359
        %v1153 = vunpack.c.h.b16 %v359
        %v1154 = vunpack.c.l.b16 %v360
        %v1155 = vunpack.c.h.b16 %v360
        %v1156 = vunpack.c.l.b16 %v361
        %v1157 = vunpack.c.h.b16 %v361
        %v1158 = vunpack.c.l.b16 %v362
        %v1159 = vunpack.c.h.b16 %v362
        %v1160 = vunpack.c.l.b16 %v363
        %v1161 = vunpack.c.h.b16 %v363
        %v1162 = vunpack.c.l.b16 %v364
        %v1163 = vunpack.c.h.b16 %v364
        %v1164 = vunpack.c.l.b16 %v365
        %v1165 = vunpack.c.h.b16 %v365
        %v1166 = vunpack.c.l.b16 %v366
        %v1167 = vunpack.c.h.b16 %v366
        %v1168 = vunpack.c.l.b16 %v367
        %v1169 = vunpack.c.h.b16 %v367
        %v1170 = vunpack.c.l.b16 %v368
        %v1171 = vunpack.c.h.b16 %v368
        %v1172 = vunpack.c.l.b16 %v369
        %v1173 = vunpack.c.h.b16 %v369
        %v1174 = vunpack.c.l.b16 %v370
        %v1175 = vunpack.c.h.b16 %v370
        %v1176 = vunpack.c.l.b16 %v371
        %v1177 = vunpack.c.h.b16 %v371
        %v1178 = vunpack.c.l.b16 %v372
        %v1179 = vunpack.c.h.b16 %v372
        %v1180 = vunpack.c.l.b16 %v373
        %v1181 = vunpack.c.h.b16 %v373
        %v1182 = vunpack.c.l.b16 %v374
        %v1183 = vunpack.c.h.b16 %v374
        %v1184 = vunpack.c.l.b16 %v375
        %v1185 = vunpack.c.h.b16 %v375
        %v1186 = vunpack.c.l.b16 %v376
        %v1187 = vunpack.c.h.b16 %v376
        %v1188 = vunpack.c.l.b16 %v377
        %v1189 = vunpack.c.h.b16 %v377
        %v1190 = vunpack.c.l.b16 %v378
        %v1191 = vunpack.c.h.b16 %v378
        %v1192 = vunpack.c.l.b16 %v379
        %v1193 = vunpack.c.h.b16 %v379
        %v1194 = vunpack.c.l.b16 %v380
        %v1195 = vunpack.c.h.b16 %v380
        %v1196 = vunpack.c.l.b16 %v381
        %v1197 = vunpack.c.h.b16 %v381
        %v1198 = vunpack.c.l.b16 %v382
        %v1199 = vunpack.c.h.b16 %v382
        %v1200 = vunpack.c.l.b16 %v383
        %v1201 = vunpack.c.h.b16 %v383
        %v1202 = vunpack.c.l.b16 %v384
        %v1203 = vunpack.c.h.b16 %v384
        %v1204 = vunpack.c.l.b16 %v385
        %v1205 = vunpack.c.h.b16 %v385
        %v1206 = vunpack.c.l.b16 %v386
        %v1207 = vunpack.c.h.b16 %v386
        %v1208 = vunpack.c.l.b16 %v387
        %v1209 = vunpack.c.h.b16 %v387
        %v1210 = vunpack.c.l.b16 %v388
        %v1211 = vunpack.c.h.b16 %v388
        %v1212 = vunpack.c.l.b16 %v389
        %v1213 = vunpack.c.h.b16 %v389
        %v1214 = vunpack.c.l.b16 %v390
        %v1215 = vunpack.c.h.b16 %v390
        %v1216 = vunpack.c.l.b16 %v391
        %v1217 = vunpack.c.h.b16 %v391
        %v1218 = vunpack.c.l.b16 %v392
        %v1219 = vunpack.c.h.b16 %v392
        %v1220 = vunpack.c.l.b16 %v393
        %v1221 = vunpack.c.h.b16 %v393
        %v1222 = vunpack.c.l.b16 %v394
        %v1223 = vunpack.c.h.b16 %v394
        %v1224 = vunpack.c.l.b16 %v395
        %v1225 = vunpack.c.h.b16 %v395
        %v1226 = vunpack.c.l.b16 %v396
        %v1227 = vunpack.c.h.b16 %v396
        %v1228 = vunpack.c.l.b16 %v397
        %v1229 = vunpack.c.h.b16 %v397
        %v1230 = vunpack.c.l.b16 %v398
        %v1231 = vunpack.c.h.b16 %v398
        %v1232 = vunpack.c.l.b16 %v399
        %v1233 = vunpack.c.h.b16 %v399
        %v1234 = vunpack.c.l.b16 %v400
        %v1235 = vunpack.c.h.b16 %v400
        %v1236 = vunpack.c.l.b16 %v401
        %v1237 = vunpack.c.h.b16 %v401
        %v1238 = vunpack.c.l.b16 %v402
        %v1239 = vunpack.c.h.b16 %v402
        %v1240 = vunpack.c.l.b16 %v403
        %v1241 = vunpack.c.h.b16 %v403
        %v1242 = vunpack.c.l.b16 %v404
        %v1243 = vunpack.c.h.b16 %v404
        %v1244 = vunpack.c.l.b16 %v405
        %v1245 = vunpack.c.h.b16 %v405
        %v1246 = vunpack.c.l.b16 %v406
        %v1247 = vunpack.c.h.b16 %v406
        %v1248 = vunpack.c.l.b16 %v407
        %v1249 = vunpack.c.h.b16 %v407
        %v1250 = vunpack.c.l.b16 %v408
        %v1251 = vunpack.c.h.b16 %v408
        %v1252 = vunpack.c.l.b16 %v409
        %v1253 = vunpack.c.h.b16 %v409
        %v1254 = vunpack.c.l.b16 %v410
        %v1255 = vunpack.c.h.b16 %v410
        %v1256 = vunpack.c.l.b16 %v411
        %v1257 = vunpack.c.h.b16 %v411
        %v1258 = vunpack.c.l.b16 %v412
        %v1259 = vunpack.c.h.b16 %v412
        %v1260 = vunpack.c.l.b16 %v413
        %v1261 = vunpack.c.h.b16 %v413
        %v1262 = vunpack.c.l.b16 %v414
        %v1263 = vunpack.c.h.b16 %v414
        %v1264 = vunpack.c.l.b16 %v415
        %v1265 = vunpack.c.h.b16 %v415
        %v1266 = vunpack.c.l.b16 %v416
        %v1267 = vunpack.c.h.b16 %v416
        %v1268 = vunpack.c.l.b16 %v417
        %v1269 = vunpack.c.h.b16 %v417
        %v1270 = vunpack.c.l.b16 %v418
        %v1271 = vunpack.c.h.b16 %v418
        %v1272 = vunpack.c.l.b16 %v419
        %v1273 = vunpack.c.h.b16 %v419
        %v1274 = vunpack.c.l.b16 %v420
        %v1275 = vunpack.c.h.b16 %v420
        %v1276 = vunpack.c.l.b16 %v421
        %v1277 = vunpack.c.h.b16 %v421
        %v1278 = vunpack.c.l.b16 %v422
        %v1279 = vunpack.c.h.b16 %v422
        %v1280 = vunpack.c.l.b16 %v423
        %v1281 = vunpack.c.h.b16 %v423
        %v1282 = vunpack.c.l.b16 %v424
        %v1283 = vunpack.c.h.b16 %v424
        %v1284 = vunpack.c.l.b16 %v425
        %v1285 = vunpack.c.h.b16 %v425
        %v1286 = vunpack.c.l.b16 %v426
        %v1287 = vunpack.c.h.b16 %v426
        %v1288 = vunpack.c.l.b16 %v427
        %v1289 = vunpack.c.h.b16 %v427
        %v1290 = vunpack.c.l.b16 %v428
        %v1291 = vunpack.c.h.b16 %v428
        %v1292 = vunpack.c.l.b16 %v429
        %v1293 = vunpack.c.h.b16 %v429
        %v1294 = vunpack.c.l.b16 %v430
        %v1295 = vunpack.c.h.b16 %v430
        %v1296 = vunpack.c.l.b16 %v431
        %v1297 = vunpack.c.h.b16 %v431
        %v1298 = vunpack.c.l.b16 %v432
        %v1299 = vunpack.c.h.b16 %v432
        %v1300 = vunpack.c.l.b16 %v433
        %v1301 = vunpack.c.h.b16 %v433
        %v1302 = vunpack.c.l.b16 %v434
        %v1303 = vunpack.c.h.b16 %v434
        %v1304 = vunpack.c.l.b16 %v435
        %v1305 = vunpack.c.h.b16 %v435
        %v1306 = vunpack.c.l.b16 %v436
        %v1307 = vunpack.c.h.b16 %v436
        %v1308 = vunpack.c.l.b16 %v437
        %v1309 = vunpack.c.h.b16 %v437
        %v1310 = vunpack.c.l.b16 %v438
        %v1311 = vunpack.c.h.b16 %v438
        %v1312 = vunpack.c.l.b16 %v439
        %v1313 = vunpack.c.h.b16 %v439
        %v1314 = vunpack.c.l.b16 %v440
        %v1315 = vunpack.c.h.b16 %v440
        %v1316 = vunpack.c.l.b16 %v441
        %v1317 = vunpack.c.h.b16 %v441
        %v1318 = vunpack.c.l.b16 %v442
        %v1319 = vunpack.c.h.b16 %v442
        %v1320 = vunpack.c.l.b16 %v443
        %v1321 = vunpack.c.h.b16 %v443
        %v1322 = vunpack.c.l.b16 %v444
        %v1323 = vunpack.c.h.b16 %v444
        %v1324 = vunpack.c.l.b16 %v445
        %v1325 = vunpack.c.h.b16 %v445
        %v1326 = vunpack.c.l.b16 %v446
        %v1327 = vunpack.c.h.b16 %v446
        %v1328 = vunpack.c.l.b16 %v447
        %v1329 = vunpack.c.h.b16 %v447
        %v1330 = vunpack.c.l.b16 %v448
        %v1331 = vunpack.c.h.b16 %v448
        %v1332 = vunpack.c.l.b16 %v449
        %v1333 = vunpack.c.h.b16 %v449
        %v1334 = vunpack.c.l.b16 %v450
        %v1335 = vunpack.c.h.b16 %v450
        %v1336 = vunpack.c.l.b16 %v451
        %v1337 = vunpack.c.h.b16 %v451
        %v1338 = vunpack.c.l.b16 %v452
        %v1339 = vunpack.c.h.b16 %v452
        %v1340 = vunpack.c.l.b16 %v453
        %v1341 = vunpack.c.h.b16 %v453
        %v1342 = vunpack.c.l.b16 %v454
        %v1343 = vunpack.c.h.b16 %v454
        %v1344 = vunpack.c.l.b16 %v455
        %v1345 = vunpack.c.h.b16 %v455
        %v1346 = vunpack.c.l.b16 %v456
        %v1347 = vunpack.c.h.b16 %v456
        %v1348 = vunpack.c.l.b16 %v457
        %v1349 = vunpack.c.h.b16 %v457
        %v1350 = vunpack.c.l.b16 %v458
        %v1351 = vunpack.c.h.b16 %v458
        %v1352 = vunpack.c.l.b16 %v459
        %v1353 = vunpack.c.h.b16 %v459
        %v1354 = vunpack.c.l.b16 %v460
        %v1355 = vunpack.c.h.b16 %v460
        %v1356 = vunpack.c.l.b16 %v461
        %v1357 = vunpack.c.h.b16 %v461
        %v1358 = vunpack.c.l.b16 %v462
        %v1359 = vunpack.c.h.b16 %v462
        %v1360 = vunpack.c.l.b16 %v463
        %v1361 = vunpack.c.h.b16 %v463
        %v1362 = vunpack.c.l.b16 %v464
        %v1363 = vunpack.c.h.b16 %v464
        %v1364 = vunpack.c.l.b16 %v465
        %v1365 = vunpack.c.h.b16 %v465
        %v1366 = vpack.c.b16 %v952, %v950
        %v1367 = vpack.c.b16 %v953, %v951
        %v1368 = vpack.c.b16 %v956, %v954
        %v1369 = vpack.c.b16 %v957, %v955
        %v1370 = vpack.c.b16 %v960, %v958
        %v1371 = vpack.c.b16 %v961, %v959
        %v1372 = vpack.c.b16 %v964, %v962
        %v1373 = vpack.c.b16 %v965, %v963
        %v1374 = vpack.c.b16 %v968, %v966
        %v1375 = vpack.c.b16 %v969, %v967
        %v1376 = vpack.c.b16 %v972, %v970
        %v1377 = vpack.c.b16 %v973, %v971
        %v1378 = vpack.c.b16 %v976, %v974
        %v1379 = vpack.c.b16 %v977, %v975
        %v1380 = vpack.c.b16 %v980, %v978
        %v1381 = vpack.c.b16 %v981, %v979
        %v1382 = vpack.c.b16 %v984, %v982
        %v1383 = vpack.c.b16 %v985, %v983
        %v1384 = vpack.c.b16 %v988, %v986
        %v1385 = vpack.c.b16 %v989, %v987
        %v1386 = vpack.c.b16 %v992, %v990
        %v1387 = vpack.c.b16 %v993, %v991
        %v1388 = vpack.c.b16 %v996, %v994
        %v1389 = vpack.c.b16 %v997, %v995
        %v1390 = vpack.c.b16 %v1000, %v998
        %v1391 = vpack.c.b16 %v1001, %v999
        %v1392 = vpack.c.b16 %v1004, %v1002
        %v1393 = vpack.c.b16 %v1005, %v1003
        %v1394 = vpack.c.b16 %v1008, %v1006
        %v1395 = vpack.c.b16 %v1009, %v1007
        %v1396 = vpack.c.b16 %v1012, %v1010
        %v1397 = vpack.c.b16 %v1013, %v1011
        %v1398 = vpack.c.b16 %v1016, %v1014
        %v1399 = vpack.c.b16 %v1017, %v1015
        %v1400 = vpack.c.b16 %v1020, %v1018
        %v1401 = vpack.c.b16 %v1021, %v1019
        %v1402 = vpack.c.b16 %v1024, %v1022
        %v1403 = vpack.c.b16 %v1025, %v1023
        %v1404 = vpack.c.b16 %v1028, %v1026
        %v1405 = vpack.c.b16 %v1029, %v1027
        %v1406 = vpack.c.b16 %v1032, %v1030
        %v1407 = vpack.c.b16 %v1033, %v1031
        %v1408 = vpack.c.b16 %v1036, %v1034
        %v1409 = vpack.c.b16 %v1037, %v1035
        %v1410 = vpack.c.b16 %v1040, %v1038
        %v1411 = vpack.c.b16 %v1041, %v1039
        %v1412 = vpack.c.b16 %v1044, %v1042
        %v1413 = vpack.c.b16 %v1045, %v1043
        %v1414 = vpack.c.b16 %v1048, %v1046
        %v1415 = vpack.c.b16 %v1049, %v1047
        %v1416 = vpack.c.b16 %v1052, %v1050
        %v1417 = vpack.c.b16 %v1053, %v1051
        %v1418 = vpack.c.b16 %v1056, %v1054
        %v1419 = vpack.c.b16 %v1057, %v1055
        %v1420 = vpack.c.b16 %v1060, %v1058
        %v1421 = vpack.c.b16 %v1061, %v1059
        %v1422 = vpack.c.b16 %v1064, %v1062
        %v1423 = vpack.c.b16 %v1065, %v1063
        %v1424 = vpack.c.b16 %v1068, %v1066
        %v1425 = vpack.c.b16 %v1069, %v1067
        %v1426 = vpack.c.b16 %v1072, %v1070
        %v1427 = vpack.c.b16 %v1073, %v1071
        %v1428 = vpack.c.b16 %v1076, %v1074
        %v1429 = vpack.c.b16 %v1077, %v1075
        %v1430 = vpack.c.b16 %v1080, %v1078
        %v1431 = vpack.c.b16 %v1081, %v1079
        %v1432 = vpack.c.b16 %v1084, %v1082
        %v1433 = vpack.c.b16 %v1085, %v1083
        %v1434 = vpack.c.b16 %v1088, %v1086
        %v1435 = vpack.c.b16 %v1089, %v1087
        %v1436 = vpack.c.b16 %v1092, %v1090
        %v1437 = vpack.c.b16 %v1093, %v1091
        %v1438 = vpack.c.b16 %v1096, %v1094
        %v1439 = vpack.c.b16 %v1097, %v1095
        %v1440 = vpack.c.b16 %v1100, %v1098
        %v1441 = vpack.c.b16 %v1101, %v1099
        %v1442 = vpack.c.b16 %v1104, %v1102
        %v1443 = vpack.c.b16 %v1105, %v1103
        %v1444 = vpack.c.b16 %v1108, %v1106
        %v1445 = vpack.c.b16 %v1109, %v1107
        %v1446 = vpack.c.b16 %v1112, %v1110
        %v1447 = vpack.c.b16 %v1113, %v1111
        %v1448 = vpack.c.b16 %v1116, %v1114
        %v1449 = vpack.c.b16 %v1117, %v1115
        %v1450 = vpack.c.b16 %v1120, %v1118
        %v1451 = vpack.c.b16 %v1121, %v1119
        %v1452 = vpack.c.b16 %v1124, %v1122
        %v1453 = vpack.c.b16 %v1125, %v1123
        %v1454 = vpack.c.b16 %v1128, %v1126
        %v1455 = vpack.c.b16 %v1129, %v1127
        %v1456 = vpack.c.b16 %v1132, %v1130
        %v1457 = vpack.c.b16 %v1133, %v1131
        %v1458 = vpack.c.b16 %v1136, %v1134
        %v1459 = vpack.c.b16 %v1137, %v1135
        %v1460 = vpack.c.b16 %v1140, %v1138
        %v1461 = vpack.c.b16 %v1141, %v1139
        %v1462 = vpack.c.b16 %v1144, %v1142
        %v1463 = vpack.c.b16 %v1145, %v1143
        %v1464 = vpack.c.b16 %v1148, %v1146
        %v1465 = vpack.c.b16 %v1149, %v1147
        %v1466 = vpack.c.b16 %v1152, %v1150
        %v1467 = vpack.c.b16 %v1153, %v1151
        %v1468 = vpack.c.b16 %v1156, %v1154
        %v1469 = vpack.c.b16 %v1157, %v1155
        %v1470 = vpack.c.b16 %v1160, %v1158
        %v1471 = vpack.c.b16 %v1161, %v1159
        %v1472 = vpack.c.b16 %v1164, %v1162
        %v1473 = vpack.c.b16 %v1165, %v1163
        %v1474 = vpack.c.b16 %v1168, %v1166
        %v1475 = vpack.c.b16 %v1169, %v1167
        %v1476 = vpack.c.b16 %v1172, %v1170
        %v1477 = vpack.c.b16 %v1173, %v1171
        %v1478 = vpack.c.b16 %v1176, %v1174
        %v1479 = vpack.c.b16 %v1177, %v1175
        %v1480 = vpack.c.b16 %v1180, %v1178
        %v1481 = vpack.c.b16 %v1181, %v1179
        %v1482 = vpack.c.b16 %v1184, %v1182
        %v1483 = vpack.c.b16 %v1185, %v1183
        %v1484 = vpack.c.b16 %v1188, %v1186
        %v1485 = vpack.c.b16 %v1189, %v1187
        %v1486 = vpack.c.b16 %v1192, %v1190
        %v1487 = vpack.c.b16 %v1193, %v1191
        %v1488 = vpack.c.b16 %v1196, %v1194
        %v1489 = vpack.c.b16 %v1197, %v1195
        %v1490 = vpack.c.b16 %v1200, %v1198
        %v1491 = vpack.c.b16 %v1201, %v1199
        %v1492 = vpack.c.b16 %v1204, %v1202
        %v1493 = vpack.c.b16 %v1205, %v1203
        %v1494 = vpack.c.b16 %v1208, %v1206
        %v1495 = vpack.c.b16 %v1209, %v1207
        %v1496 = vpack.c.b16 %v1212, %v1210
        %v1497 = vpack.c.b16 %v1213, %v1211
        %v1498 = vpack.c.b16 %v1216, %v1214
        %v1499 = vpack.c.b16 %v1217, %v1215
        %v1500 = vpack.c.b16 %v1220, %v1218
        %v1501 = vpack.c.b16 %v1221, %v1219
        %v1502 = vpack.c.b16 %v1224, %v1222
        %v1503 = vpack.c.b16 %v1225, %v1223
        %v1504 = vpack.c.b16 %v1228, %v1226
        %v1505 = vpack.c.b16 %v1229, %v1227
        %v1506 = vpack.c.b16 %v1232, %v1230
        %v1507 = vpack.c.b16 %v1233, %v1231
        %v1508 = vpack.c.b16 %v1236, %v1234
        %v1509 = vpack.c.b16 %v1237, %v1235
        %v1510 = vpack.c.b16 %v1240, %v1238
        %v1511 = vpack.c.b16 %v1241, %v1239
        %v1512 = vpack.c.b16 %v1244, %v1242
        %v1513 = vpack.c.b16 %v1245, %v1243
        %v1514 = vpack.c.b16 %v1248, %v1246
        %v1515 = vpack.c.b16 %v1249, %v1247
        %v1516 = vpack.c.b16 %v1252, %v1250
        %v1517 = vpack.c.b16 %v1253, %v1251
        %v1518 = vpack.c.b16 %v1256, %v1254
        %v1519 = vpack.c.b16 %v1257, %v1255
        %v1520 = vpack.c.b16 %v1260, %v1258
        %v1521 = vpack.c.b16 %v1261, %v1259
        %v1522 = vpack.c.b16 %v1264, %v1262
        %v1523 = vpack.c.b16 %v1265, %v1263
        %v1524 = vpack.c.b16 %v1268, %v1266
        %v1525 = vpack.c.b16 %v1269, %v1267
        %v1526 = vpack.c.b16 %v1272, %v1270
        %v1527 = vpack.c.b16 %v1273, %v1271
        %v1528 = vpack.c.b16 %v1276, %v1274
        %v1529 = vpack.c.b16 %v1277, %v1275
        %v1530 = vpack.c.b16 %v1280, %v1278
        %v1531 = vpack.c.b16 %v1281, %v1279
        %v1532 = vpack.c.b16 %v1284, %v1282
        %v1533 = vpack.c.b16 %v1285, %v1283
        %v1534 = vpack.c.b16 %v1288, %v1286
        %v1535 = vpack.c.b16 %v1289, %v1287
        %v1536 = vpack.c.b16 %v1292, %v1290
        %v1537 = vpack.c.b16 %v1293, %v1291
        %v1538 = vpack.c.b16 %v1296, %v1294
        %v1539 = vpack.c.b16 %v1297, %v1295
        %v1540 = vpack.c.b16 %v1300, %v1298
        %v1541 = vpack.c.b16 %v1301, %v1299
        %v1542 = vpack.c.b16 %v1304, %v1302
        %v1543 = vpack.c.b16 %v1305, %v1303
        %v1544 = vpack.c.b16 %v1308, %v1306
        %v1545 = vpack.c.b16 %v1309, %v1307
        %v1546 = vpack.c.b16 %v1312, %v1310
        %v1547 = vpack.c.b16 %v1313, %v1311
        %v1548 = vpack.c.b16 %v1316, %v1314
        %v1549 = vpack.c.b16 %v1317, %v1315
        %v1550 = vpack.c.b16 %v1320, %v1318
        %v1551 = vpack.c.b16 %v1321, %v1319
        %v1552 = vpack.c.b16 %v1324, %v1322
        %v1553 = vpack.c.b16 %v1325, %v1323
        %v1554 = vpack.c.b16 %v1328, %v1326
        %v1555 = vpack.c.b16 %v1329, %v1327
        %v1556 = vpack.c.b16 %v1332, %v1330
        %v1557 = vpack.c.b16 %v1333, %v1331
        %v1558 = vpack.c.b16 %v1336, %v1334
        %v1559 = vpack.c.b16 %v1337, %v1335
        %v1560 = vpack.c.b16 %v1340, %v1338
        %v1561 = vpack.c.b16 %v1341, %v1339
        %v1562 = vpack.c.b16 %v1344, %v1342
        %v1563 = vpack.c.b16 %v1345, %v1343
        %v1564 = vpack.c.b16 %v1348, %v1346
        %v1565 = vpack.c.b16 %v1349, %v1347
        %v1566 = vpack.c.b16 %v1352, %v1350
        %v1567 = vpack.c.b16 %v1353, %v1351
        %v1568 = vpack.c.b16 %v1356, %v1354
        %v1569 = vpack.c.b16 %v1357, %v1355
        %v1570 = vpack.c.b16 %v1360, %v1358
        %v1571 = vpack.c.b16 %v1361, %v1359
        %v1572 = vpack.c.b16 %v1364, %v1362
        %v1573 = vpack.c.b16 %v1365, %v1363
        %1782 = vmatprep.subr.bf16.mxu0 %v1367
        %1783 = vmatpush1.bf16.msra.mxu0 %v1366
        %1784 = vmatprep.subr.bf16.mxu0 %v1369
        %1785 = vmatpush1.bf16.msra.mxu0 %v1368
        %1786 = vmatprep.subr.bf16.mxu0 %v1371
        %1787 = vmatpush1.bf16.msra.mxu0 %v1370
        %1788 = vmatprep.subr.bf16.mxu0 %v1373
        %1789 = vmatpush1.bf16.msra.mxu0 %v1372
        %1790 = vmatprep.subr.bf16.mxu0 %v1375
        %1791 = vmatpush1.bf16.msra.mxu0 %v1374
        %1792 = vmatprep.subr.bf16.mxu0 %v1377
        %1793 = vmatpush1.bf16.msra.mxu0 %v1376
        %1794 = vmatprep.subr.bf16.mxu0 %v1379
        %1795 = vmatpush1.bf16.msra.mxu0 %v1378
        %1796 = vmatprep.subr.bf16.mxu0 %v1381
        %1797 = vmatpush1.bf16.msra.mxu0 %v1380
        %1798 = vmatprep.subr.bf16.mxu0 %v1383
        %1799 = vmatpush1.bf16.msra.mxu0 %v1382
        %1800 = vmatprep.subr.bf16.mxu0 %v1385
        %1801 = vmatpush1.bf16.msra.mxu0 %v1384
        %1802 = vmatprep.subr.bf16.mxu0 %v1387
        %1803 = vmatpush1.bf16.msra.mxu0 %v1386
        %1804 = vmatprep.subr.bf16.mxu0 %v1389
        %1805 = vmatpush1.bf16.msra.mxu0 %v1388
        %1806 = vmatprep.subr.bf16.mxu0 %v1391
        %1807 = vmatpush1.bf16.msra.mxu0 %v1390
        %1808 = vmatprep.subr.bf16.mxu0 %v1393
        %1809 = vmatpush1.bf16.msra.mxu0 %v1392
        %1810 = vmatprep.subr.bf16.mxu0 %v1395
        %1811 = vmatpush1.bf16.msra.mxu0 %v1394
        %1812 = vmatprep.subr.bf16.mxu0 %v1397
        %1813 = vmatpush1.bf16.msra.mxu0 %v1396
        %1814 = vmatprep.mubr.bf16.mxu0 %v639
        %1815 = vmatmul.mubr.bf16.gmra.mrb[0].mxu0 %v638
        %v1816 = vpop.f32.mrb[0].mxu0
        %v1817 = vadd.f32 %v471, %v1816
        %v1818 = vpop.f32.mrb[0].mxu0
        %v1819 = vadd.f32 %v475, %v1818
        %v1820 = vpop.f32.mrb[0].mxu0
        %v1821 = vadd.f32 %v471, %v1820
        %v1822 = vpop.f32.mrb[0].mxu0
        %v1823 = vadd.f32 %v475, %v1822
        %1824 = vmatprep.mubr.bf16.mxu0 %v652
        %1825 = vmatmul.mubr.bf16.gmra.mrb[0].mxu0 %v651
        %v1826 = vpop.f32.mrb[0].mxu0
        %v1827 = vadd.f32 %v471, %v1826
        %v1828 = vpop.f32.mrb[0].mxu0
        %v1829 = vadd.f32 %v475, %v1828
        %v1830 = vpop.f32.mrb[0].mxu0
        %v1831 = vadd.f32 %v471, %v1830
        %v1832 = vpop.f32.mrb[0].mxu0
        %v1833 = vadd.f32 %v475, %v1832
        %1834 = vmatprep.mubr.bf16.mxu0 %v665
        %1835 = vmatmul.mubr.bf16.gmra.mrb[0].mxu0 %v664
        %v1836 = vpop.f32.mrb[0].mxu0
        %v1837 = vadd.f32 %v471, %v1836
        %v1838 = vpop.f32.mrb[0].mxu0
        %v1839 = vadd.f32 %v475, %v1838
        %v1840 = vpop.f32.mrb[0].mxu0
        %v1841 = vadd.f32 %v471, %v1840
        %v1842 = vpop.f32.mrb[0].mxu0
        %v1843 = vadd.f32 %v475, %v1842
        %1844 = vmatprep.mubr.bf16.mxu0 %v678
        %1845 = vmatmul.mubr.bf16.gmra.mrb[0].mxu0 %v677
        %v1846 = vpop.f32.mrb[0].mxu0
        %v1847 = vadd.f32 %v471, %v1846
        %v1848 = vpop.f32.mrb[0].mxu0
        %v1849 = vadd.f32 %v475, %v1848
        %v1850 = vpop.f32.mrb[0].mxu0
        %v1851 = vadd.f32 %v471, %v1850
        %v1852 = vpop.f32.mrb[0].mxu0
        %v1853 = vadd.f32 %v475, %v1852
        %1854 = vdwg.mxu0
        %1855 = vmatprep.subr.bf16.mxu0 %v1399
        %1856 = vmatpush1.bf16.msra.mxu0 %v1398
        %1857 = vmatprep.subr.bf16.mxu0 %v1401
        %1858 = vmatpush1.bf16.msra.mxu0 %v1400
        %1859 = vmatprep.subr.bf16.mxu0 %v1403
        %1860 = vmatpush1.bf16.msra.mxu0 %v1402
        %1861 = vmatprep.subr.bf16.mxu0 %v1405
        %1862 = vmatpush1.bf16.msra.mxu0 %v1404
        %1863 = vmatprep.subr.bf16.mxu0 %v1407
        %1864 = vmatpush1.bf16.msra.mxu0 %v1406
        %1865 = vmatprep.subr.bf16.mxu0 %v1409
        %1866 = vmatpush1.bf16.msra.mxu0 %v1408
        %1867 = vmatprep.subr.bf16.mxu0 %v1411
        %1868 = vmatpush1.bf16.msra.mxu0 %v1410
        %1869 = vmatprep.subr.bf16.mxu0 %v1413
        %1870 = vmatpush1.bf16.msra.mxu0 %v1412
        %1871 = vmatprep.subr.bf16.mxu0 %v1415
        %1872 = vmatpush1.bf16.msra.mxu0 %v1414
        %1873 = vmatprep.subr.bf16.mxu0 %v1417
        %1874 = vmatpush1.bf16.msra.mxu0 %v1416
        %1875 = vmatprep.subr.bf16.mxu0 %v1419
        %1876 = vmatpush1.bf16.msra.mxu0 %v1418
        %1877 = vmatprep.subr.bf16.mxu0 %v1421
        %1878 = vmatpush1.bf16.msra.mxu0 %v1420
        %1879 = vmatprep.subr.bf16.mxu0 %v1423
        %1880 = vmatpush1.bf16.msra.mxu0 %v1422
        %1881 = vmatprep.subr.bf16.mxu0 %v1425
        %1882 = vmatpush1.bf16.msra.mxu0 %v1424
        %1883 = vmatprep.subr.bf16.mxu0 %v1427
        %1884 = vmatpush1.bf16.msra.mxu0 %v1426
        %1885 = vmatprep.subr.bf16.mxu0 %v1429
        %1886 = vmatpush1.bf16.msra.mxu0 %v1428
        %1887 = vmatprep.mubr.bf16.mxu0 %v641
        %1888 = vmatmul.mubr.bf16.gmra.mrb[0].mxu0 %v640
        %v1889 = vpop.f32.mrb[0].mxu0
        %v1890 = vadd.f32 %v1817, %v1889
        %v1891 = vpop.f32.mrb[0].mxu0
        %v1892 = vadd.f32 %v1819, %v1891
        %v1893 = vpop.f32.mrb[0].mxu0
        %v1894 = vadd.f32 %v1821, %v1893
        %v1895 = vpop.f32.mrb[0].mxu0
        %v1896 = vadd.f32 %v1823, %v1895
        %1897 = vmatprep.mubr.bf16.mxu0 %v654
        %1898 = vmatmul.mubr.bf16.gmra.mrb[0].mxu0 %v653
        %v1899 = vpop.f32.mrb[0].mxu0
        %v1900 = vadd.f32 %v1827, %v1899
        %v1901 = vpop.f32.mrb[0].mxu0
        %v1902 = vadd.f32 %v1829, %v1901
        %v1903 = vpop.f32.mrb[0].mxu0
        %v1904 = vadd.f32 %v1831, %v1903
        %v1905 = vpop.f32.mrb[0].mxu0
        %v1906 = vadd.f32 %v1833, %v1905
        %1907 = vmatprep.mubr.bf16.mxu0 %v667
        %1908 = vmatmul.mubr.bf16.gmra.mrb[0].mxu0 %v666
        %v1909 = vpop.f32.mrb[0].mxu0
        %v1910 = vadd.f32 %v1837, %v1909
        %v1911 = vpop.f32.mrb[0].mxu0
        %v1912 = vadd.f32 %v1839, %v1911
        %v1913 = vpop.f32.mrb[0].mxu0
        %v1914 = vadd.f32 %v1841, %v1913
        %v1915 = vpop.f32.mrb[0].mxu0
        %v1916 = vadd.f32 %v1843, %v1915
        %1917 = vmatprep.mubr.bf16.mxu0 %v680
        %1918 = vmatmul.mubr.bf16.gmra.mrb[0].mxu0 %v679
        %v1919 = vpop.f32.mrb[0].mxu0
        %v1920 = vadd.f32 %v1847, %v1919
        %v1921 = vpop.f32.mrb[0].mxu0
        %v1922 = vadd.f32 %v1849, %v1921
        %v1923 = vpop.f32.mrb[0].mxu0
        %v1924 = vadd.f32 %v1851, %v1923
        %v1925 = vpop.f32.mrb[0].mxu0
        %v1926 = vadd.f32 %v1853, %v1925
        %1927 = vdwg.mxu0
        %1928 = vmatprep.subr.bf16.mxu0 %v1431
        %1929 = vmatpush1.bf16.msra.mxu0 %v1430
        %1930 = vmatprep.subr.bf16.mxu0 %v1433
        %1931 = vmatpush1.bf16.msra.mxu0 %v1432
        %1932 = vmatprep.subr.bf16.mxu0 %v1435
        %1933 = vmatpush1.bf16.msra.mxu0 %v1434
        %1934 = vmatprep.subr.bf16.mxu0 %v1437
        %1935 = vmatpush1.bf16.msra.mxu0 %v1436
        %1936 = vmatprep.subr.bf16.mxu0 %v1439
        %1937 = vmatpush1.bf16.msra.mxu0 %v1438
        %1938 = vmatprep.subr.bf16.mxu0 %v1441
        %1939 = vmatpush1.bf16.msra.mxu0 %v1440
        %1940 = vmatprep.subr.bf16.mxu0 %v1443
        %1941 = vmatpush1.bf16.msra.mxu0 %v1442
        %1942 = vmatprep.subr.bf16.mxu0 %v1445
        %1943 = vmatpush1.bf16.msra.mxu0 %v1444
        %1944 = vmatprep.subr.bf16.mxu0 %v1447
        %1945 = vmatpush1.bf16.msra.mxu0 %v1446
        %1946 = vmatprep.subr.bf16.mxu0 %v1449
        %1947 = vmatpush1.bf16.msra.mxu0 %v1448
        %1948 = vmatprep.subr.bf16.mxu0 %v1451
        %1949 = vmatpush1.bf16.msra.mxu0 %v1450
        %1950 = vmatprep.subr.bf16.mxu0 %v1453
        %1951 = vmatpush1.bf16.msra.mxu0 %v1452
        %1952 = vmatprep.subr.bf16.mxu0 %v1455
        %1953 = vmatpush1.bf16.msra.mxu0 %v1454
        %1954 = vmatprep.subr.bf16.mxu0 %v1457
        %1955 = vmatpush1.bf16.msra.mxu0 %v1456
        %1956 = vmatprep.subr.bf16.mxu0 %v1459
        %1957 = vmatpush1.bf16.msra.mxu0 %v1458
        %1958 = vmatprep.subr.bf16.mxu0 %v1461
        %1959 = vmatpush1.bf16.msra.mxu0 %v1460
        %1960 = vmatprep.mubr.bf16.mxu0 %v643
        %1961 = vmatmul.mubr.bf16.gmra.mrb[0].mxu0 %v642
        %v1962 = vpop.f32.mrb[0].mxu0
        %v1963 = vadd.f32 %v1890, %v1962
        %v1964 = vpop.f32.mrb[0].mxu0
        %v1965 = vadd.f32 %v1892, %v1964
        %v1966 = vpop.f32.mrb[0].mxu0
        %v1967 = vadd.f32 %v1894, %v1966
        %v1968 = vpop.f32.mrb[0].mxu0
        %v1969 = vadd.f32 %v1896, %v1968
        %1970 = vmatprep.mubr.bf16.mxu0 %v656
        %1971 = vmatmul.mubr.bf16.gmra.mrb[0].mxu0 %v655
        %v1972 = vpop.f32.mrb[0].mxu0
        %v1973 = vadd.f32 %v1900, %v1972
        %v1974 = vpop.f32.mrb[0].mxu0
        %v1975 = vadd.f32 %v1902, %v1974
        %v1976 = vpop.f32.mrb[0].mxu0
        %v1977 = vadd.f32 %v1904, %v1976
        %v1978 = vpop.f32.mrb[0].mxu0
        %v1979 = vadd.f32 %v1906, %v1978
        %1980 = vmatprep.mubr.bf16.mxu0 %v669
        %1981 = vmatmul.mubr.bf16.gmra.mrb[0].mxu0 %v668
        %v1982 = vpop.f32.mrb[0].mxu0
        %v1983 = vadd.f32 %v1910, %v1982
        %v1984 = vpop.f32.mrb[0].mxu0
        %v1985 = vadd.f32 %v1912, %v1984
        %v1986 = vpop.f32.mrb[0].mxu0
        %v1987 = vadd.f32 %v1914, %v1986
        %v1988 = vpop.f32.mrb[0].mxu0
        %v1989 = vadd.f32 %v1916, %v1988
        %1990 = vmatprep.mubr.bf16.mxu0 %v682
        %1991 = vmatmul.mubr.bf16.gmra.mrb[0].mxu0 %v681
        %v1992 = vpop.f32.mrb[0].mxu0
        %v1993 = vadd.f32 %v1920, %v1992
        %v1994 = vpop.f32.mrb[0].mxu0
        %v1995 = vadd.f32 %v1922, %v1994
        %v1996 = vpop.f32.mrb[0].mxu0
        %v1997 = vadd.f32 %v1924, %v1996
        %v1998 = vpop.f32.mrb[0].mxu0
        %v1999 = vadd.f32 %v1926, %v1998
        %2000 = vdwg.mxu0
        %2001 = vmatprep.subr.bf16.mxu0 %v1463
        %2002 = vmatpush1.bf16.msra.mxu0 %v1462
        %2003 = vmatprep.subr.bf16.mxu0 %v1465
        %2004 = vmatpush1.bf16.msra.mxu0 %v1464
        %2005 = vmatprep.subr.bf16.mxu0 %v1467
        %2006 = vmatpush1.bf16.msra.mxu0 %v1466
        %2007 = vmatprep.subr.bf16.mxu0 %v1469
        %2008 = vmatpush1.bf16.msra.mxu0 %v1468
        %2009 = vmatprep.subr.bf16.mxu0 %v1471
        %2010 = vmatpush1.bf16.msra.mxu0 %v1470
        %2011 = vmatprep.subr.bf16.mxu0 %v1473
        %2012 = vmatpush1.bf16.msra.mxu0 %v1472
        %2013 = vmatprep.subr.bf16.mxu0 %v1475
        %2014 = vmatpush1.bf16.msra.mxu0 %v1474
        %2015 = vmatprep.subr.bf16.mxu0 %v1477
        %2016 = vmatpush1.bf16.msra.mxu0 %v1476
        %2017 = vmatprep.subr.bf16.mxu0 %v1479
        %2018 = vmatpush1.bf16.msra.mxu0 %v1478
        %2019 = vmatprep.subr.bf16.mxu0 %v1481
        %2020 = vmatpush1.bf16.msra.mxu0 %v1480
        %2021 = vmatprep.subr.bf16.mxu0 %v1483
        %2022 = vmatpush1.bf16.msra.mxu0 %v1482
        %2023 = vmatprep.subr.bf16.mxu0 %v1485
        %2024 = vmatpush1.bf16.msra.mxu0 %v1484
        %2025 = vmatprep.subr.bf16.mxu0 %v1487
        %2026 = vmatpush1.bf16.msra.mxu0 %v1486
        %2027 = vmatprep.subr.bf16.mxu0 %v1489
        %2028 = vmatpush1.bf16.msra.mxu0 %v1488
        %2029 = vmatprep.subr.bf16.mxu0 %v1491
        %2030 = vmatpush1.bf16.msra.mxu0 %v1490
        %2031 = vmatprep.subr.bf16.mxu0 %v1493
        %2032 = vmatpush1.bf16.msra.mxu0 %v1492
        %2033 = vmatprep.mubr.bf16.mxu0 %v645
        %2034 = vmatmul.mubr.bf16.gmra.mrb[0].mxu0 %v644
        %v2035 = vpop.f32.mrb[0].mxu0
        %v2036 = vadd.f32 %v1963, %v2035
        %v2037 = vpop.f32.mrb[0].mxu0
        %v2038 = vadd.f32 %v1965, %v2037
        %v2039 = vpop.f32.mrb[0].mxu0
        %v2040 = vadd.f32 %v1967, %v2039
        %v2041 = vpop.f32.mrb[0].mxu0
        %v2042 = vadd.f32 %v1969, %v2041
        %2043 = vmatprep.mubr.bf16.mxu0 %v658
        %2044 = vmatmul.mubr.bf16.gmra.mrb[0].mxu0 %v657
        %v2045 = vpop.f32.mrb[0].mxu0
        %v2046 = vadd.f32 %v1973, %v2045
        %v2047 = vpop.f32.mrb[0].mxu0
        %v2048 = vadd.f32 %v1975, %v2047
        %v2049 = vpop.f32.mrb[0].mxu0
        %v2050 = vadd.f32 %v1977, %v2049
        %v2051 = vpop.f32.mrb[0].mxu0
        %v2052 = vadd.f32 %v1979, %v2051
        %2053 = vmatprep.mubr.bf16.mxu0 %v671
        %2054 = vmatmul.mubr.bf16.gmra.mrb[0].mxu0 %v670
        %v2055 = vpop.f32.mrb[0].mxu0
        %v2056 = vadd.f32 %v1983, %v2055
        %v2057 = vpop.f32.mrb[0].mxu0
        %v2058 = vadd.f32 %v1985, %v2057
        %v2059 = vpop.f32.mrb[0].mxu0
        %v2060 = vadd.f32 %v1987, %v2059
        %v2061 = vpop.f32.mrb[0].mxu0
        %v2062 = vadd.f32 %v1989, %v2061
        %2063 = vmatprep.mubr.bf16.mxu0 %v684
        %2064 = vmatmul.mubr.bf16.gmra.mrb[0].mxu0 %v683
        %v2065 = vpop.f32.mrb[0].mxu0
        %v2066 = vadd.f32 %v1993, %v2065
        %v2067 = vpop.f32.mrb[0].mxu0
        %v2068 = vadd.f32 %v1995, %v2067
        %v2069 = vpop.f32.mrb[0].mxu0
        %v2070 = vadd.f32 %v1997, %v2069
        %v2071 = vpop.f32.mrb[0].mxu0
        %v2072 = vadd.f32 %v1999, %v2071
        %2073 = vdwg.mxu0
        %2074 = vmatprep.subr.bf16.mxu0 %v1495
        %2075 = vmatpush1.bf16.msra.mxu0 %v1494
        %2076 = vmatprep.subr.bf16.mxu0 %v1497
        %2077 = vmatpush1.bf16.msra.mxu0 %v1496
        %2078 = vmatprep.subr.bf16.mxu0 %v1499
        %2079 = vmatpush1.bf16.msra.mxu0 %v1498
        %2080 = vmatprep.subr.bf16.mxu0 %v1501
        %2081 = vmatpush1.bf16.msra.mxu0 %v1500
        %2082 = vmatprep.subr.bf16.mxu0 %v1503
        %2083 = vmatpush1.bf16.msra.mxu0 %v1502
        %2084 = vmatprep.subr.bf16.mxu0 %v1505
        %2085 = vmatpush1.bf16.msra.mxu0 %v1504
        %2086 = vmatprep.subr.bf16.mxu0 %v1507
        %2087 = vmatpush1.bf16.msra.mxu0 %v1506
        %2088 = vmatprep.subr.bf16.mxu0 %v1509
        %2089 = vmatpush1.bf16.msra.mxu0 %v1508
        %2090 = vmatprep.subr.bf16.mxu0 %v1511
        %2091 = vmatpush1.bf16.msra.mxu0 %v1510
        %2092 = vmatprep.subr.bf16.mxu0 %v1513
        %2093 = vmatpush1.bf16.msra.mxu0 %v1512
        %2094 = vmatprep.subr.bf16.mxu0 %v1515
        %2095 = vmatpush1.bf16.msra.mxu0 %v1514
        %2096 = vmatprep.subr.bf16.mxu0 %v1517
        %2097 = vmatpush1.bf16.msra.mxu0 %v1516
        %2098 = vmatprep.subr.bf16.mxu0 %v1519
        %2099 = vmatpush1.bf16.msra.mxu0 %v1518
        %2100 = vmatprep.subr.bf16.mxu0 %v1521
        %2101 = vmatpush1.bf16.msra.mxu0 %v1520
        %2102 = vmatprep.subr.bf16.mxu0 %v1523
        %2103 = vmatpush1.bf16.msra.mxu0 %v1522
        %2104 = vmatprep.subr.bf16.mxu0 %v1525
        %2105 = vmatpush1.bf16.msra.mxu0 %v1524
        %2106 = vmatprep.mubr.bf16.mxu0 %v647
        %2107 = vmatmul.mubr.bf16.gmra.mrb[0].mxu0 %v646
        %v2108 = vpop.f32.mrb[0].mxu0
        %v2109 = vadd.f32 %v2036, %v2108
        %v2110 = vpop.f32.mrb[0].mxu0
        %v2111 = vadd.f32 %v2038, %v2110
        %v2112 = vpop.f32.mrb[0].mxu0
        %v2113 = vadd.f32 %v2040, %v2112
        %v2114 = vpop.f32.mrb[0].mxu0
        %v2115 = vadd.f32 %v2042, %v2114
        %2116 = vmatprep.mubr.bf16.mxu0 %v660
        %2117 = vmatmul.mubr.bf16.gmra.mrb[0].mxu0 %v659
        %v2118 = vpop.f32.mrb[0].mxu0
        %v2119 = vadd.f32 %v2046, %v2118
        %v2120 = vpop.f32.mrb[0].mxu0
        %v2121 = vadd.f32 %v2048, %v2120
        %v2122 = vpop.f32.mrb[0].mxu0
        %v2123 = vadd.f32 %v2050, %v2122
        %v2124 = vpop.f32.mrb[0].mxu0
        %v2125 = vadd.f32 %v2052, %v2124
        %2126 = vmatprep.mubr.bf16.mxu0 %v673
        %2127 = vmatmul.mubr.bf16.gmra.mrb[0].mxu0 %v672
        %v2128 = vpop.f32.mrb[0].mxu0
        %v2129 = vadd.f32 %v2056, %v2128
        %v2130 = vpop.f32.mrb[0].mxu0
        %v2131 = vadd.f32 %v2058, %v2130
        %v2132 = vpop.f32.mrb[0].mxu0
        %v2133 = vadd.f32 %v2060, %v2132
        %v2134 = vpop.f32.mrb[0].mxu0
        %v2135 = vadd.f32 %v2062, %v2134
        %2136 = vmatprep.mubr.bf16.mxu0 %v686
        %2137 = vmatmul.mubr.bf16.gmra.mrb[0].mxu0 %v685
        %v2138 = vpop.f32.mrb[0].mxu0
        %v2139 = vadd.f32 %v2066, %v2138
        %v2140 = vpop.f32.mrb[0].mxu0
        %v2141 = vadd.f32 %v2068, %v2140
        %v2142 = vpop.f32.mrb[0].mxu0
        %v2143 = vadd.f32 %v2070, %v2142
        %v2144 = vpop.f32.mrb[0].mxu0
        %v2145 = vadd.f32 %v2072, %v2144
        %2146 = vdwg.mxu0
        %2147 = vmatprep.subr.bf16.mxu0 %v1527
        %2148 = vmatpush1.bf16.msra.mxu0 %v1526
        %2149 = vmatprep.subr.bf16.mxu0 %v1529
        %2150 = vmatpush1.bf16.msra.mxu0 %v1528
        %2151 = vmatprep.subr.bf16.mxu0 %v1531
        %2152 = vmatpush1.bf16.msra.mxu0 %v1530
        %2153 = vmatprep.subr.bf16.mxu0 %v1533
        %2154 = vmatpush1.bf16.msra.mxu0 %v1532
        %2155 = vmatprep.subr.bf16.mxu0 %v1535
        %2156 = vmatpush1.bf16.msra.mxu0 %v1534
        %2157 = vmatprep.subr.bf16.mxu0 %v1537
        %2158 = vmatpush1.bf16.msra.mxu0 %v1536
        %2159 = vmatprep.subr.bf16.mxu0 %v1539
        %2160 = vmatpush1.bf16.msra.mxu0 %v1538
        %2161 = vmatprep.subr.bf16.mxu0 %v1541
        %2162 = vmatpush1.bf16.msra.mxu0 %v1540
        %2163 = vmatprep.subr.bf16.mxu0 %v1543
        %2164 = vmatpush1.bf16.msra.mxu0 %v1542
        %2165 = vmatprep.subr.bf16.mxu0 %v1545
        %2166 = vmatpush1.bf16.msra.mxu0 %v1544
        %2167 = vmatprep.subr.bf16.mxu0 %v1547
        %2168 = vmatpush1.bf16.msra.mxu0 %v1546
        %2169 = vmatprep.subr.bf16.mxu0 %v1549
        %2170 = vmatpush1.bf16.msra.mxu0 %v1548
        %2171 = vmatprep.subr.bf16.mxu0 %v1551
        %2172 = vmatpush1.bf16.msra.mxu0 %v1550
        %2173 = vmatprep.subr.bf16.mxu0 %v1553
        %2174 = vmatpush1.bf16.msra.mxu0 %v1552
        %2175 = vmatprep.subr.bf16.mxu0 %v1555
        %2176 = vmatpush1.bf16.msra.mxu0 %v1554
        %2177 = vmatprep.subr.bf16.mxu0 %v1557
        %2178 = vmatpush1.bf16.msra.mxu0 %v1556
        %2179 = vmatprep.mubr.bf16.mxu0 %v649
        %2180 = vmatmul.mubr.bf16.gmra.mrb[0].mxu0 %v648
        %v2181 = vpop.f32.mrb[0].mxu0
        %v2182 = vadd.f32 %v2109, %v2181
        %v2183 = vpop.f32.mrb[0].mxu0
        %v2184 = vadd.f32 %v2111, %v2183
        %v2185 = vpop.f32.mrb[0].mxu0
        %v2186 = vadd.f32 %v2113, %v2185
        %v2187 = vpop.f32.mrb[0].mxu0
        %v2188 = vadd.f32 %v2115, %v2187
        %2189 = vmatprep.mubr.bf16.mxu0 %v662
        %2190 = vmatmul.mubr.bf16.gmra.mrb[0].mxu0 %v661
        %v2191 = vpop.f32.mrb[0].mxu0
        %v2192 = vadd.f32 %v2119, %v2191
        %v2193 = vpop.f32.mrb[0].mxu0
        %v2194 = vadd.f32 %v2121, %v2193
        %v2195 = vpop.f32.mrb[0].mxu0
        %v2196 = vadd.f32 %v2123, %v2195
        %v2197 = vpop.f32.mrb[0].mxu0
        %v2198 = vadd.f32 %v2125, %v2197
        %2199 = vmatprep.mubr.bf16.mxu0 %v675
        %2200 = vmatmul.mubr.bf16.gmra.mrb[0].mxu0 %v674
        %v2201 = vpop.f32.mrb[0].mxu0
        %v2202 = vadd.f32 %v2129, %v2201
        %v2203 = vpop.f32.mrb[0].mxu0
        %v2204 = vadd.f32 %v2131, %v2203
        %v2205 = vpop.f32.mrb[0].mxu0
        %v2206 = vadd.f32 %v2133, %v2205
        %v2207 = vpop.f32.mrb[0].mxu0
        %v2208 = vadd.f32 %v2135, %v2207
        %2209 = vmatprep.mubr.bf16.mxu0 %v688
        %2210 = vmatmul.mubr.bf16.gmra.mrb[0].mxu0 %v687
        %v2211 = vpop.f32.mrb[0].mxu0
        %v2212 = vadd.f32 %v2139, %v2211
        %v2213 = vpop.f32.mrb[0].mxu0
        %v2214 = vadd.f32 %v2141, %v2213
        %v2215 = vpop.f32.mrb[0].mxu0
        %v2216 = vadd.f32 %v2143, %v2215
        %v2217 = vpop.f32.mrb[0].mxu0
        %v2218 = vadd.f32 %v2145, %v2217
        %2219 = vdwg.mxu0
        %2220 = vmatprep.subr.bf16.mxu0 %v1559
        %2221 = vmatpush1.bf16.msra.mxu0 %v1558
        %2222 = vmatprep.subr.bf16.mxu0 %v1561
        %2223 = vmatpush1.bf16.msra.mxu0 %v1560
        %2224 = vmatprep.subr.bf16.mxu0 %v1563
        %2225 = vmatpush1.bf16.msra.mxu0 %v1562
        %2226 = vmatprep.subr.bf16.mxu0 %v1565
        %2227 = vmatpush1.bf16.msra.mxu0 %v1564
        %2228 = vmatprep.subr.bf16.mxu0 %v1567
        %2229 = vmatpush1.bf16.msra.mxu0 %v1566
        %2230 = vmatprep.subr.bf16.mxu0 %v1569
        %2231 = vmatpush1.bf16.msra.mxu0 %v1568
        %2232 = vmatprep.subr.bf16.mxu0 %v1571
        %2233 = vmatpush1.bf16.msra.mxu0 %v1570
        %2234 = vmatprep.subr.bf16.mxu0 %v1573
        %2235 = vmatpush1.bf16.msra.mxu0 %v1572
        %2236 = vmatprep.subr.bf16.mxu0 0
        %2237 = vmatpush1.bf16.msra.mxu0 0
        %2238 = vmatprep.subr.bf16.mxu0 0
        %2239 = vmatpush1.bf16.msra.mxu0 0
        %2240 = vmatprep.subr.bf16.mxu0 0
        %2241 = vmatpush1.bf16.msra.mxu0 0
        %2242 = vmatprep.subr.bf16.mxu0 0
        %2243 = vmatpush1.bf16.msra.mxu0 0
        %2244 = vmatprep.subr.bf16.mxu0 0
        %2245 = vmatpush1.bf16.msra.mxu0 0
        %2246 = vmatprep.subr.bf16.mxu0 0
        %2247 = vmatpush1.bf16.msra.mxu0 0
        %2248 = vmatprep.subr.bf16.mxu0 0
        %2249 = vmatpush1.bf16.msra.mxu0 0
        %2250 = vmatprep.subr.bf16.mxu0 0
        %2251 = vmatpush1.bf16.msra.mxu0 0
        %2252 = vmatprep.mubr.bf16.mxu0 0
        %2253 = vmatmul.mubr.bf16.gmra.mrb[0].mxu0 %v650
        %v2254 = vpop.f32.mrb[0].mxu0
        %v2255 = vadd.f32 %v2182, %v2254
        %v2256 = vpop.f32.mrb[0].mxu0
        %v2257 = vadd.f32 %v2184, %v2256
        %v2258 = vpop.f32.mrb[0].mxu0
        %v2259 = vadd.f32 %v2186, %v2258
        %v2260 = vpop.f32.mrb[0].mxu0
        %v2261 = vadd.f32 %v2188, %v2260
        %2262 = vmatprep.mubr.bf16.mxu0 0
        %2263 = vmatmul.mubr.bf16.gmra.mrb[0].mxu0 %v663
        %v2264 = vpop.f32.mrb[0].mxu0
        %v2265 = vadd.f32 %v2192, %v2264
        %v2266 = vpop.f32.mrb[0].mxu0
        %v2267 = vadd.f32 %v2194, %v2266
        %v2268 = vpop.f32.mrb[0].mxu0
        %v2269 = vadd.f32 %v2196, %v2268
        %v2270 = vpop.f32.mrb[0].mxu0
        %v2271 = vadd.f32 %v2198, %v2270
        %2272 = vmatprep.mubr.bf16.mxu0 0
        %2273 = vmatmul.mubr.bf16.gmra.mrb[0].mxu0 %v676
        %v2274 = vpop.f32.mrb[0].mxu0
        %v2275 = vadd.f32 %v2202, %v2274
        %v2276 = vpop.f32.mrb[0].mxu0
        %v2277 = vadd.f32 %v2204, %v2276
        %v2278 = vpop.f32.mrb[0].mxu0
        %v2279 = vadd.f32 %v2206, %v2278
        %v2280 = vpop.f32.mrb[0].mxu0
        %v2281 = vadd.f32 %v2208, %v2280
        %2282 = vmatprep.mubr.bf16.mxu0 0
        %2283 = vmatmul.mubr.bf16.gmra.mrb[0].mxu0 %v689
        %v2284 = vpop.f32.mrb[0].mxu0
        %v2285 = vadd.f32 %v2212, %v2284
        %v2286 = vpop.f32.mrb[0].mxu0
        %v2287 = vadd.f32 %v2214, %v2286
        %v2288 = vpop.f32.mrb[0].mxu0
        %v2289 = vadd.f32 %v2216, %v2288
        %v2290 = vpop.f32.mrb[0].mxu0
        %v2291 = vadd.f32 %v2218, %v2290
        %2292 = vdwg.mxu0
        %v2293 = vmax.f32 %v2255, 0.0
        %v2294 = vmax.f32 %v2257, 0.0
        %v2295 = vmax.f32 %v2259, 0.0
        %v2296 = vmax.f32 %v2261, 0.0
        %v2297 = vmax.f32 %v2265, 0.0
        %v2298 = vmax.f32 %v2267, 0.0
        %v2299 = vmax.f32 %v2269, 0.0
        %v2300 = vmax.f32 %v2271, 0.0
        %v2301 = vmax.f32 %v2275, 0.0
        %v2302 = vmax.f32 %v2277, 0.0
        %v2303 = vmax.f32 %v2279, 0.0
        %v2304 = vmax.f32 %v2281, 0.0
        %v2305 = vmax.f32 %v2285, 0.0
        %v2306 = vmax.f32 %v2287, 0.0
        %v2307 = vmax.f32 %v2289, 0.0
        %v2308 = vmax.f32 %v2291, 0.0
        %2309 = vst [vmem:[%s177] sm:$0xff] %v2293
        %vm2310 = vcmask 523264
        %2311 = vst.msk [vmem:[%s177 + $0x8] sm:$0xff] %vm2310, %v2294
        %2312 = vst [vmem:[%s177 + $0x10] sm:$0xff] %v2295
        %2313 = vst.msk [vmem:[%s177 + $0x18] sm:$0xff] %vm2310, %v2296
        %2314 = vst [vmem:[%s177 + $0x20] sm:$0xff] %v2297
        %2315 = vst.msk [vmem:[%s177 + $0x28] sm:$0xff] %vm2310, %v2298
        %2316 = vst [vmem:[%s177 + $0x30] sm:$0xff] %v2299
        %2317 = vst.msk [vmem:[%s177 + $0x38] sm:$0xff] %vm2310, %v2300
        %2318 = vst [vmem:[%s177 + $0x40] sm:$0xff] %v2301
        %2319 = vst.msk [vmem:[%s177 + $0x48] sm:$0xff] %vm2310, %v2302
        %2320 = vst [vmem:[%s177 + $0x50] sm:$0xff] %v2303
        %2321 = vst.msk [vmem:[%s177 + $0x58] sm:$0xff] %vm2310, %v2304
        %2322 = vst [vmem:[%s177 + $0x60] sm:$0xff] %v2305
        %2323 = vst.msk [vmem:[%s177 + $0x68] sm:$0xff] %vm2310, %v2306
        %2324 = vst [vmem:[%s177 + $0x70] sm:$0xff] %v2307
        %2325 = vst.msk [vmem:[%s177 + $0x78] sm:$0xff] %vm2310, %v2308
        %s2326 = sand.u32 %s90, 1
        %s2327 = sand.u32 %s90, 1
        %s2328 = smul.addr %s2327, 128
        %s2329 = scalar_lea.vmem [#allocation2], %s2328
        // Predicated region
        $region33: #{alexnet_client_forward.6} parent=31 // pred_check
          %p2330 = pneg %p100
        $region34: #{alexnet_client_forward.6} parent=31 // pred_check_branch
          %2332 = sbr.rel (%p2330) target = $region36
        $region35: #{alexnet_client_forward.6} parent=31 // pred_region
          %s2333 = smul.u32 8, %s14
          %s2334 = ssub.s32 13, %s2333
          %p2335 = scmp.lt.s32.totalorder %s2334, 8
          %s2336 = scalar_select %p2335, %s2334, 8
          %s2337 = smul.u32 128, %s2336
          %s2338 = smul.u32 %s2337, 2
          %p2339 = scmp.ne.s32.totalorder 0, %s2338
          %s2340 = smul.addr %s2333, 2
          %s2341 = smul.addr %s2340, 8
          %s2342 = scalar_lea.vmem %s3, %s2341
          // Predicated region
          $region37: #{alexnet_client_forward.6} parent=35 // pred_check
            %p2343 = pneg %p2339
          $region38: #{alexnet_client_forward.6} parent=35 // pred_check_branch
            %2345 = sbr.rel (%p2343) target = $region40
          $region39: #{alexnet_client_forward.6} parent=35 // pred_region
            // Predicated region
            $region41: #{alexnet_client_forward.6} parent=39 // pred_check
              _
            $region42: #{alexnet_client_forward.6} parent=39 // pred_check_branch
              %2347 = sbr.rel (0) target = $region44
            $region43: #{alexnet_client_forward.6} parent=39 // pred_region
              %s2348 = sshrl.u32 %s2336, 3
              // While loop
              $region45: #{alexnet_client_forward.6} parent=43 // loop_pre_header
                _
              $region46: #{alexnet_client_forward.6} parent=43 // loop_header
                %s2350 = sphi 0, %s2352
                %p2351 = scmp.ge.s32.totalorder %s2350, %s2348
                %s2355 = sphi 0, %s2392
                %s2356 = sphi %s2329, %s2395
                %s2357 = sphi %s2342, %s2396
              $region47: #{alexnet_client_forward.6} parent=43 // loop_header_branch
                %2354 = sbr.rel (%p2351) target = $region51
              $region48: #{alexnet_client_forward.6} parent=43 // loop_body
                %v2358 = vld [vmem:[%s2356] sm:$0xff]
                %2359 = vst [vmem:[%s2357] sm:$0xff] %v2358
                %v2360 = vld [vmem:[%s2356 + $0x10] sm:$0xff]
                %2361 = vst [vmem:[%s2357 + $0x10] sm:$0xff] %v2360
                %v2362 = vld [vmem:[%s2356 + $0x20] sm:$0xff]
                %2363 = vst [vmem:[%s2357 + $0x20] sm:$0xff] %v2362
                %v2364 = vld [vmem:[%s2356 + $0x30] sm:$0xff]
                %2365 = vst [vmem:[%s2357 + $0x30] sm:$0xff] %v2364
                %v2366 = vld [vmem:[%s2356 + $0x40] sm:$0xff]
                %2367 = vst [vmem:[%s2357 + $0x40] sm:$0xff] %v2366
                %v2368 = vld [vmem:[%s2356 + $0x50] sm:$0xff]
                %2369 = vst [vmem:[%s2357 + $0x50] sm:$0xff] %v2368
                %v2370 = vld [vmem:[%s2356 + $0x60] sm:$0xff]
                %2371 = vst [vmem:[%s2357 + $0x60] sm:$0xff] %v2370
                %v2372 = vld [vmem:[%s2356 + $0x70] sm:$0xff]
                %2373 = vst [vmem:[%s2357 + $0x70] sm:$0xff] %v2372
                %v2374 = vld [vmem:[%s2356 + $0x8] sm:$0xff]
                %2375 = vst [vmem:[%s2357 + $0x8] sm:$0xff] %v2374
                %v2376 = vld [vmem:[%s2356 + $0x18] sm:$0xff]
                %2377 = vst [vmem:[%s2357 + $0x18] sm:$0xff] %v2376
                %v2378 = vld [vmem:[%s2356 + $0x28] sm:$0xff]
                %2379 = vst [vmem:[%s2357 + $0x28] sm:$0xff] %v2378
                %v2380 = vld [vmem:[%s2356 + $0x38] sm:$0xff]
                %2381 = vst [vmem:[%s2357 + $0x38] sm:$0xff] %v2380
                %v2382 = vld [vmem:[%s2356 + $0x48] sm:$0xff]
                %2383 = vst [vmem:[%s2357 + $0x48] sm:$0xff] %v2382
                %v2384 = vld [vmem:[%s2356 + $0x58] sm:$0xff]
                %2385 = vst [vmem:[%s2357 + $0x58] sm:$0xff] %v2384
                %v2386 = vld [vmem:[%s2356 + $0x68] sm:$0xff]
                %2387 = vst [vmem:[%s2357 + $0x68] sm:$0xff] %v2386
                %v2388 = vld [vmem:[%s2356 + $0x78] sm:$0xff]
                %2389 = vst [vmem:[%s2357 + $0x78] sm:$0xff] %v2388
                %s2390 = sadd.s32 1, %s2355
                %p2391 = scmp.ge.s32.totalorder %s2390, %s2348
                %s2392 = scalar_select %p2391, 0, %s2390
                %s2393 = smul.u32 %s2392, 128
                %s2394 = smul.u32 %s2392, 128
                %s2395 = scalar_lea.vmem %s2329, %s2393 [#allocation2]
                %s2396 = scalar_lea.vmem %s2342, %s2394
              $region49: #{alexnet_client_forward.6} parent=43 // loop_footer
                %s2352 = sadd.s32 %s2350, 1
              $region50: #{alexnet_client_forward.6} parent=43 // loop_footer_branch
                %2349 = sbr.rel target = $region46
              $region51: #{alexnet_client_forward.6} parent=43 // loop_exit
                _
              %s2397 = sshrl.u32 %s2336, 3
              %s2398 = sand.u32 %s2336, 7
              %s2399 = smul.u32 %s2397, 8
              %s2400 = smul.u32 16, %s2399
              %s2401 = scalar_lea.vmem %s2329, %s2400 [#allocation2]
              %s2402 = smul.u32 16, %s2399
              %s2403 = scalar_lea.vmem %s2342, %s2402
              // While loop
              $region52: #{alexnet_client_forward.6} parent=43 // loop_pre_header
                _
              $region53: #{alexnet_client_forward.6} parent=43 // loop_header
                %s2405 = sphi 0, %s2407
                %p2406 = scmp.ge.s32.totalorder %s2405, %s2398
                %s2410 = sphi 0, %s2419
                %s2411 = sphi %s2401, %s2422
                %s2412 = sphi %s2403, %s2423
              $region54: #{alexnet_client_forward.6} parent=43 // loop_header_branch
                %2409 = sbr.rel (%p2406) target = $region58
              $region55: #{alexnet_client_forward.6} parent=43 // loop_body
                %v2413 = vld [vmem:[%s2411] sm:$0xff]
                %2414 = vst [vmem:[%s2412] sm:$0xff] %v2413
                %v2415 = vld [vmem:[%s2411 + $0x8] sm:$0xff]
                %2416 = vst [vmem:[%s2412 + $0x8] sm:$0xff] %v2415
                %s2417 = sadd.s32 1, %s2410
                %p2418 = scmp.ge.s32.totalorder %s2417, %s2398
                %s2419 = scalar_select %p2418, 0, %s2417
                %s2420 = smul.u32 %s2419, 16
                %s2421 = smul.u32 %s2419, 16
                %s2422 = scalar_lea.vmem %s2401, %s2420 [#allocation2]
                %s2423 = scalar_lea.vmem %s2403, %s2421
              $region56: #{alexnet_client_forward.6} parent=43 // loop_footer
                %s2407 = sadd.s32 %s2405, 1
              $region57: #{alexnet_client_forward.6} parent=43 // loop_footer_branch
                %2404 = sbr.rel target = $region53
              $region58: #{alexnet_client_forward.6} parent=43 // loop_exit
                _
            $region44: #{alexnet_client_forward.6} parent=39 // pred_fallthru
              _
            // Predicated region
            $region59: #{alexnet_client_forward.6} parent=39 // pred_check
              _
            $region60: #{alexnet_client_forward.6} parent=39 // pred_check_branch
              %2425 = sbr.rel target = $region62
            $region61: #{alexnet_client_forward.6} parent=39 // pred_region
              _
            $region62: #{alexnet_client_forward.6} parent=39 // pred_fallthru
              _
          $region40: #{alexnet_client_forward.6} parent=35 // pred_fallthru
            _
          %2426 = vnop
        $region36: #{alexnet_client_forward.6} parent=31 // pred_fallthru
          _
      $region32: #{alexnet_client_forward.6} parent=5 // pred_fallthru
        _
      %p2427 = scmp.le.s32.totalorder 2, %s9
      // Predicated region
      $region63: #{alexnet_client_forward.6} parent=5 // pred_check
        %p2428 = pneg %p2427
      $region64: #{alexnet_client_forward.6} parent=5 // pred_check_branch
        %2430 = sbr.rel (%p2428) target = $region66
      $region65: #{alexnet_client_forward.6} parent=5 // pred_region
        %s2431 = ssub.s32 %s9, 2
        // Predicated region
        $region67: #{alexnet_client_forward.6} parent=65 // pred_check
          %p2432 = pneg %p106
        $region68: #{alexnet_client_forward.6} parent=65 // pred_check_branch
          %2434 = sbr.rel (%p2432) target = $region70
        $region69: #{alexnet_client_forward.6} parent=65 // pred_region
          %s2435 = sand.u32 %s91, 1
          %s2436 = sand.u32 %s91, 1
          %s2437 = smul.addr %s2436, 128
          %s2438 = scalar_lea.vmem [#allocation2], %s2437
        $region70: #{alexnet_client_forward.6} parent=65 // pred_fallthru
          _
      $region66: #{alexnet_client_forward.6} parent=5 // pred_fallthru
        _
    $region6: #{alexnet_client_forward.6} parent=1 // loop_footer
      %s13 = sadd.s32 1, %s9
    $region7: #{alexnet_client_forward.6} parent=1 // loop_footer_branch
      %8 = sbr.rel target = $region3
    $region8: #{alexnet_client_forward.6} parent=1 // loop_exit
      _

// kernel: alexnet_client_forward.7
$region0: #{alexnet_client_forward.7}
  #allocation0 [shape = 'u32[]', space=smem, size = 0x4, offset = 0x4, fixed_abs, tag = 'smem constant byte address 0x4 - core index']
  #allocation1 [shape = 'u32[144,128]{1,0:T(1,128)}', space=vmem, size = 0x12000, scoped, tag = 'internal scratch']
  %s0 = inlined_call_operand.vmem [shape: f32[2,7,4,192], index: 0, kind: input, shape index: {}]
  %s1 = inlined_call_operand.vmem [shape: f32[2,7,3,192], index: 1, kind: input, shape index: {}]
  %s2 = inlined_call_operand.vmem [shape: f32[2,3,3,192], index: 2, kind: output, shape index: {}]
  %s3 = sld [smem:[#allocation0]]
  $region41: #{alexnet_client_forward.7} parent=0
    _
  %s5 = ssub.s32 1, %s3
  %s6 = scalar_select 0, %s5, %s3
  loop: start=0, step=1, limit=4
  $region2: #{alexnet_client_forward.7} parent=0 // loop_pre_header
    _
  $region3: #{alexnet_client_forward.7} parent=0 // loop_header
    %s8 = sphi 0, %s12
    %p9 = scmp.ge.s32.totalorder %s8, 4
    %s18 = sphi 0, %s20
    %s21 = sphi 0, %s18
    %s22 = sphi 0, %s21
    %s38 = sphi 0, %s22
    %s44 = sphi 0, %s46
    %s47 = sphi 0, %s44
    %s48 = sphi 0, %s47
    %s64 = sphi 0, %s48
    %s70 = sphi 0, %s72
    %s73 = sphi 0, %s70
    %s74 = sphi 0, %s73
    %s90 = sphi 0, %s74
  $region4: #{alexnet_client_forward.7} parent=0 // loop_header_branch
    %11 = sbr.rel (%p9) target = $region8
  $region5: #{alexnet_client_forward.7} parent=0 // loop_body
    %s13 = ssub.s32 %s8, 1
    %s14 = ssub.s32 %s8, 2
    %s15 = sadd.s32 %s8, 1
    %s16 = ssub.s32 %s8, %s15
    %p17 = scmp.eq.s32.totalorder %s16, 0
    %s19 = sadd.s32 %s18, 1
    %s20 = scalar_select %p17, %s18, %s19
    %p23 = pneg %p17
    %p24 = scmp.eq.s32.totalorder %s8, 1
    %p25 = por %p23, %p24
    %p26 = scmp.ne.s32.totalorder %s18, %s21
    %p27 = scmp.eq.s32.totalorder %s8, 0
    %p28 = por %p26, %p27
    %p29 = scmp.ne.s32.totalorder %s18, %s21
    %p30 = scmp.eq.s32.totalorder %s13, 1
    %p31 = por %p29, %p30
    %p32 = scmp.ne.s32.totalorder %s21, %s22
    %p33 = scmp.eq.s32.totalorder %s13, 0
    %p34 = por %p32, %p33
    %p35 = scmp.ne.s32.totalorder %s21, %s22
    %p36 = scmp.eq.s32.totalorder %s14, 1
    %p37 = por %p35, %p36
    %p39 = scmp.ne.s32.totalorder %s22, %s38
    %p40 = scmp.eq.s32.totalorder %s14, 0
    %p41 = por %p39, %p40
    %s42 = ssub.s32 %s8, %s15
    %p43 = scmp.eq.s32.totalorder %s42, 0
    %s45 = sadd.s32 %s44, 1
    %s46 = scalar_select %p43, %s44, %s45
    %p49 = pneg %p43
    %p50 = scmp.eq.s32.totalorder %s8, 1
    %p51 = por %p49, %p50
    %p52 = scmp.ne.s32.totalorder %s44, %s47
    %p53 = scmp.eq.s32.totalorder %s8, 0
    %p54 = por %p52, %p53
    %p55 = scmp.ne.s32.totalorder %s44, %s47
    %p56 = scmp.eq.s32.totalorder %s13, 1
    %p57 = por %p55, %p56
    %p58 = scmp.ne.s32.totalorder %s47, %s48
    %p59 = scmp.eq.s32.totalorder %s13, 0
    %p60 = por %p58, %p59
    %p61 = scmp.ne.s32.totalorder %s47, %s48
    %p62 = scmp.eq.s32.totalorder %s14, 1
    %p63 = por %p61, %p62
    %p65 = scmp.ne.s32.totalorder %s48, %s64
    %p66 = scmp.eq.s32.totalorder %s14, 0
    %p67 = por %p65, %p66
    %s68 = ssub.s32 %s8, %s15
    %p69 = scmp.eq.s32.totalorder %s68, 0
    %s71 = sadd.s32 %s70, 1
    %s72 = scalar_select %p69, %s70, %s71
    %p75 = pneg %p69
    %p76 = scmp.eq.s32.totalorder %s8, 1
    %p77 = por %p75, %p76
    %p78 = scmp.ne.s32.totalorder %s70, %s73
    %p79 = scmp.eq.s32.totalorder %s8, 0
    %p80 = por %p78, %p79
    %p81 = scmp.ne.s32.totalorder %s70, %s73
    %p82 = scmp.eq.s32.totalorder %s13, 1
    %p83 = por %p81, %p82
    %p84 = scmp.ne.s32.totalorder %s73, %s74
    %p85 = scmp.eq.s32.totalorder %s13, 0
    %p86 = por %p84, %p85
    %p87 = scmp.ne.s32.totalorder %s73, %s74
    %p88 = scmp.eq.s32.totalorder %s14, 1
    %p89 = por %p87, %p88
    %p91 = scmp.ne.s32.totalorder %s74, %s90
    %p92 = scmp.eq.s32.totalorder %s14, 0
    %p93 = por %p91, %p92
    %p94 = scmp.le.s32.totalorder 1, %s8
    %p95 = scmp.lt.s32.totalorder %s8, 3
    %p96 = pnand %p94, %p95
    %p97 = pneg %p96
    // Predicated region
    $region9: #{alexnet_client_forward.7} parent=5 // pred_check
      _
    $region10: #{alexnet_client_forward.7} parent=5 // pred_check_branch
      %99 = sbr.rel (%p96) target = $region12
    $region11: #{alexnet_client_forward.7} parent=5 // pred_region
      %s100 = ssub.s32 %s8, 1
    $region12: #{alexnet_client_forward.7} parent=5 // pred_fallthru
      _
    %p101 = scmp.lt.s32.totalorder %s8, 2
    // Predicated region
    $region13: #{alexnet_client_forward.7} parent=5 // pred_check
      %p102 = pneg %p101
    $region14: #{alexnet_client_forward.7} parent=5 // pred_check_branch
      %104 = sbr.rel (%p102) target = $region16
    $region15: #{alexnet_client_forward.7} parent=5 // pred_region
      // Predicated region
      $region17: #{alexnet_client_forward.7} parent=15 // pred_check
        %p105 = pneg %p28
      $region18: #{alexnet_client_forward.7} parent=15 // pred_check_branch
        %107 = sbr.rel (%p105) target = $region20
      $region19: #{alexnet_client_forward.7} parent=15 // pred_region
        %p108 = scmp.lt.s32.totalorder %s8, 1
        %s109 = scalar_select %p108, %s8, 1
        %s110 = smul.addr %s109, 14
        %s111 = smul.addr %s110, 4
        %s112 = scalar_lea.vmem %s0, %s111
      $region20: #{alexnet_client_forward.7} parent=15 // pred_fallthru
        _
      // Predicated region
      $region21: #{alexnet_client_forward.7} parent=15 // pred_check
        %p113 = pneg %p54
      $region22: #{alexnet_client_forward.7} parent=15 // pred_check_branch
        %115 = sbr.rel (%p113) target = $region24
      $region23: #{alexnet_client_forward.7} parent=15 // pred_region
        %p116 = scmp.lt.s32.totalorder %s8, 1
        %s117 = scalar_select %p116, %s8, 1
        %s118 = smul.addr %s117, 14
        %s119 = smul.addr %s118, 4
        %s120 = scalar_lea.vmem %s1, %s119
      $region24: #{alexnet_client_forward.7} parent=15 // pred_fallthru
        _
    $region16: #{alexnet_client_forward.7} parent=5 // pred_fallthru
      _
    %p121 = scmp.le.s32.totalorder 1, %s8
    %p122 = scmp.lt.s32.totalorder %s8, 3
    %p123 = pnand %p121, %p122
    %p124 = pneg %p123
    // Predicated region
    $region25: #{alexnet_client_forward.7} parent=5 // pred_check
      _
    $region26: #{alexnet_client_forward.7} parent=5 // pred_check_branch
      %126 = sbr.rel (%p123) target = $region28
    $region27: #{alexnet_client_forward.7} parent=5 // pred_region
      %s127 = ssub.s32 %s8, 1
      %p128 = scmp.lt.s32.totalorder %s13, 1
      %s129 = scalar_select %p128, %s13, 1
      %s130 = smul.addr %s129, 14
      %s131 = smul.addr %s130, 4
      %s132 = scalar_lea.vmem %s0, %s131
      %p133 = pneg %p34
      %p134 = pneg %p31
      %p135 = scmp.lt.s32.totalorder %s13, 1
      %s136 = scalar_select %p135, %s13, 1
      %s137 = smul.addr %s136, 14
      %s138 = smul.addr %s137, 4
      %s139 = scalar_lea.vmem %s1, %s138
      %p140 = pneg %p60
      %p141 = pneg %p57
      %p142 = pneg %p86
      %p143 = pneg %p83
      %p144 = scmp.lt.s32.totalorder %s13, 1
      %s145 = scalar_select %p144, %s13, 1
      %s146 = smul.addr %s145, 6
      %s147 = smul.addr %s146, 4
      %s148 = scalar_lea.vmem %s2, %s147
      %p149 = scmp.lt.s32.totalorder %s13, 1
      %s150 = scalar_select %p149, %s13, 1
      %s151 = smul.addr %s150, 14
      %s152 = smul.addr %s151, 4
      %s153 = scalar_lea.vmem %s0, %s152
      %p154 = scmp.lt.s32.totalorder %s13, 1
      %s155 = scalar_select %p154, %s13, 1
      %s156 = smul.addr %s155, 14
      %s157 = smul.addr %s156, 4
      %s158 = scalar_lea.vmem %s1, %s157
      %p159 = scmp.lt.s32.totalorder %s13, 1
      %s160 = scalar_select %p159, %s13, 1
      %s161 = smul.addr %s160, 6
      %s162 = smul.addr %s161, 4
      %s163 = scalar_lea.vmem %s2, %s162
      %v164 = vld [vmem:[%s153] sm:$0xff]
      %v165 = vld [vmem:[%s153 + $0x8] sm:$0xff]
      %v166 = vld [vmem:[%s153 + $0x10] sm:$0xff]
      %vm167 = vcmask 1043456
      %vm168 = vcmask 523268
      %vm169 = vmor %vm168, %vm167
      %v170 = vsel %vm169, %v164, -inf
      %v171 = vsel %vm169, %v165, -inf
      %v172 = vsel %vm169, %v166, -inf
      %v173 = vmax.f32 %v170, %v171
      %v174 = vmax.f32 %v173, %v172
      %v175 = vld [vmem:[%s158] sm:$0x77]
      %v176 = vld [vmem:[%s158 + $0x8] sm:$0x77]
      %v177 = vld [vmem:[%s158 + $0x10] sm:$0x77]
      %vm178 = vcmask 1042432
      %vm179 = vcmask 522244
      %vm180 = vmor %vm179, %vm178
      %v181 = vsel %vm180, %v175, -inf
      %v182 = vsel %vm180, %v176, -inf
      %v183 = vsel %vm180, %v177, -inf
      %v184 = vmax.f32 %v181, %v182
      %v185 = vmax.f32 %v184, %v183
      %v187 = vrot.slane %v174, 5
      %v188 = vrot.slane %v187, 4
      %v190 = vmax.f32 %v174, %v188
      %v191 = vmax.f32 %v190, %v185
      %v192 = vmax.f32 %v191, 0.0
      %193 = vst.msk [vmem:[%s163] sm:$0x77] %vm180, %v192
      %s194 = scalar_lea.vmem %s153, 16
      %v195 = vld [vmem:[%s194] sm:$0xff]
      %v196 = vld [vmem:[%s194 + $0x8] sm:$0xff]
      %v197 = vld [vmem:[%s194 + $0x10] sm:$0xff]
      %v198 = vsel %vm169, %v195, -inf
      %v199 = vsel %vm169, %v196, -inf
      %v200 = vsel %vm169, %v197, -inf
      %v201 = vmax.f32 %v198, %v199
      %v202 = vmax.f32 %v201, %v200
      %s203 = scalar_lea.vmem %s158, 16
      %v204 = vld [vmem:[%s203] sm:$0x77]
      %v205 = vld [vmem:[%s203 + $0x8] sm:$0x77]
      %v206 = vld [vmem:[%s203 + $0x10] sm:$0x77]
      %v207 = vsel %vm180, %v204, -inf
      %v208 = vsel %vm180, %v205, -inf
      %v209 = vsel %vm180, %v206, -inf
      %v210 = vmax.f32 %v207, %v208
      %v211 = vmax.f32 %v210, %v209
      %v213 = vrot.slane %v202, 5
      %v214 = vrot.slane %v213, 4
      %v216 = vmax.f32 %v202, %v214
      %v217 = vmax.f32 %v216, %v211
      %v218 = vmax.f32 %v217, 0.0
      %s219 = scalar_lea.vmem %s163, 8
      %220 = vst.msk [vmem:[%s219] sm:$0x77] %vm180, %v218
      %s221 = scalar_lea.vmem %s153, 32
      %v222 = vld [vmem:[%s221] sm:$0xff]
      %v223 = vld [vmem:[%s221 + $0x8] sm:$0xff]
      %v224 = vld [vmem:[%s221 + $0x10] sm:$0xff]
      %v225 = vsel %vm169, %v222, -inf
      %v226 = vsel %vm169, %v223, -inf
      %v227 = vsel %vm169, %v224, -inf
      %v228 = vmax.f32 %v225, %v226
      %v229 = vmax.f32 %v228, %v227
      %s230 = scalar_lea.vmem %s158, 32
      %v231 = vld [vmem:[%s230] sm:$0x77]
      %v232 = vld [vmem:[%s230 + $0x8] sm:$0x77]
      %v233 = vld [vmem:[%s230 + $0x10] sm:$0x77]
      %v234 = vsel %vm180, %v231, -inf
      %v235 = vsel %vm180, %v232, -inf
      %v236 = vsel %vm180, %v233, -inf
      %v237 = vmax.f32 %v234, %v235
      %v238 = vmax.f32 %v237, %v236
      %v240 = vrot.slane %v229, 5
      %v241 = vrot.slane %v240, 4
      %v243 = vmax.f32 %v229, %v241
      %v244 = vmax.f32 %v243, %v238
      %v245 = vmax.f32 %v244, 0.0
      %s246 = scalar_lea.vmem %s163, 16
      %247 = vst.msk [vmem:[%s246] sm:$0x77] %vm180, %v245
      %p248 = scmp.lt.s32.totalorder %s13, 1
      %s249 = scalar_select %p248, %s13, 1
      %s250 = smul.addr %s249, 6
      %s251 = smul.addr %s250, 4
      %s252 = scalar_lea.vmem %s2, %s251
      // Predicated region
      $region29: #{alexnet_client_forward.7} parent=27 // pred_check
        %p253 = pneg %p83
      $region30: #{alexnet_client_forward.7} parent=27 // pred_check_branch
        %255 = sbr.rel (%p253) target = $region32
      $region31: #{alexnet_client_forward.7} parent=27 // pred_region
        _
      $region32: #{alexnet_client_forward.7} parent=27 // pred_fallthru
        _
    $region28: #{alexnet_client_forward.7} parent=5 // pred_fallthru
      _
    %p256 = scmp.le.s32.totalorder 2, %s8
    // Predicated region
    $region33: #{alexnet_client_forward.7} parent=5 // pred_check
      %p257 = pneg %p256
    $region34: #{alexnet_client_forward.7} parent=5 // pred_check_branch
      %259 = sbr.rel (%p257) target = $region36
    $region35: #{alexnet_client_forward.7} parent=5 // pred_region
      %s260 = ssub.s32 %s8, 2
      // Predicated region
      $region37: #{alexnet_client_forward.7} parent=35 // pred_check
        %p261 = pneg %p89
      $region38: #{alexnet_client_forward.7} parent=35 // pred_check_branch
        %263 = sbr.rel (%p261) target = $region40
      $region39: #{alexnet_client_forward.7} parent=35 // pred_region
        %p264 = scmp.lt.s32.totalorder %s14, 1
        %s265 = scalar_select %p264, %s14, 1
        %s266 = smul.addr %s265, 6
        %s267 = smul.addr %s266, 4
        %s268 = scalar_lea.vmem %s2, %s267
      $region40: #{alexnet_client_forward.7} parent=35 // pred_fallthru
        _
    $region36: #{alexnet_client_forward.7} parent=5 // pred_fallthru
      _
  $region6: #{alexnet_client_forward.7} parent=0 // loop_footer
    %s12 = sadd.s32 1, %s8
  $region7: #{alexnet_client_forward.7} parent=0 // loop_footer_branch
    %7 = sbr.rel target = $region3
  $region8: #{alexnet_client_forward.7} parent=0 // loop_exit
    _

</llo_original>
